<compile_context>
chip_gen: v6e
topology: v6e:2x2x1
jax: 0.10.0
libtpu: 0.0.40
codegen_flags: <defaults>
</compile_context>

<pallas_src>
import jax
import jax.numpy as jnp
from jax import lax
from jax.experimental import pallas as pl
from jax.experimental.pallas import tpu as pltpu

EPS = 1e-5


# ----------------------------- fused TTL kernel -------------------------------------------
def _make_ttl_kernel(D, Cin_pad, Cout, H, W, K_pad, slab_maps):
    HW = H * W
    K_real = 9 * Cin_pad
    PAD = W + 1           # flat-spatial halo width on each side of the padded activation

    def kernel(x_ref, scale_ref, shift_ref, w_ref, bias_ref, mask_ref, pool_ref,
               out_ref, tap_ref, acc_ref):
        # ---- stage 1: BN + ReLU + im2col tap block, ONE aligned store per input depth ------
        # NOTE: relu(shift) is nonzero in the zero-padded flat halo; every tap lane that reads
        # halo is zeroed by the precomputed border masks (invariant requires PAD == W + 1).
        mrow = [mask_ref[t:t + 1, :] for t in range(9)]                 # hoisted mask rows
        zero_tail = (jnp.zeros((K_pad - K_real, HW), jnp.float32)
                     if K_pad > K_real else None)
        for d in range(D):
            xd = x_ref[0, d]                                            # (Cin_pad, HWp) f32
            xn = jnp.maximum(xd * scale_ref[...] + shift_ref[...], 0.0)
            pieces = []
            for kh in range(3):
                for kw in range(3):
                    t = kh * 3 + kw
                    dh, dw = kh - 1, kw - 1
                    p0 = PAD + dh * W + dw                              # static lane offset
                    tap = xn[:, p0:p0 + HW]                             # (Cin_pad, HW) shifted
                    if dh != 0 or dw != 0:
                        tap = tap * mrow[t]                             # zero out-of-image lanes
                    pieces.append(tap)
            if zero_tail is not None:
                pieces.append(zero_tail)
            tap_ref[d] = jnp.concatenate(pieces, axis=0).astype(jnp.bfloat16)

        # ---- stage 2: one stacked matmul per input depth + per depth-pair accumulation -----
        for d in range(D):
            smap = slab_maps[d]
            if not smap:
                continue
            res = jnp.dot(w_ref[d], tap_ref[d],
                          preferred_element_type=jnp.float32)           # (M_max, HW) f32
            for src, dest, first in smap:
                chunk = res[src:src + Cout, :]
                if first:
                    acc_ref[dest:dest + Cout, :] = chunk
                else:
                    acc_ref[dest:dest + Cout, :] = acc_ref[dest:dest + Cout, :] + chunk

        # ---- stage 3: ONE pooling matmul (depth-pair avg folded into 0.125 weights) --------
        pooled = jnp.dot(acc_ref[...].astype(jnp.bfloat16), pool_ref[...],
                         preferred_element_type=jnp.float32)            # (Dp*Cout, Hh*Wh) f32
        out_ref[0] = pooled + bias_ref[...]                             # single output store

    return kernel


# ----------------------------- wrapper-side constant prep ---------------------------------
def _conv_slab(w, kd, Cin_pad, K_pad):
    """(O, C, KD, KH, KW), depth tap kd -> (O, K_pad) f32, tap-major / channel-minor layout
    with channels zero-padded to Cin_pad; 1x1 kernels embedded at the centre tap (t=4)."""
    O, C, KD, KH, KW = w.shape
    s = jnp.transpose(w[:, :, kd], (2, 3, 1, 0))                        # (KH, KW, C, O)
    s = jnp.pad(s, ((0, 0), (0, 0), (0, Cin_pad - C), (0, 0)))          # pad channels
    s = s.reshape(KH * KW * Cin_pad, O).T                               # (O, KH*KW*Cin_pad)
    if KH == 1 and KW == 1:
        s = jnp.pad(s, ((0, 0), (4 * Cin_pad, 4 * Cin_pad)))            # centre of the 3x3 grid
    return jnp.pad(s, ((0, 0), (0, K_pad - s.shape[1])))                # pad K -> K_pad


def _stack_weights(params, D, depths, Cin_pad, Cout, Dp, K_pad):
    """Per input depth: merge (sum) all weight slabs targeting the same output depth-pair and
    stack them -> (D, M_max, K_pad) bf16 plus a static (src_row, dest_row, first) map."""
    KDs = tuple(depths)
    D_outs = [D - kd + 1 for kd in KDs]
    t_base = [0, D_outs[0], D_outs[0] + D_outs[1]]
    n_kept = 2 * Dp
    ws = [params["w1"], params["w2"], params["w3"]]

    per_d_slabs, slab_maps, seen = [], [], set()
    for d in range(D):
        groups, order = {}, []
        for ci in range(3):
            for kd in range(KDs[ci]):
                d_out = d - kd
                if not (0 <= d_out < D_outs[ci]):
                    continue
                t_global = t_base[ci] + d_out
                if t_global >= n_kept:          # AvgPool depth-floor drops this output
                    continue
                dest = (t_global // 2) * Cout
                s = _conv_slab(ws[ci], kd, Cin_pad, K_pad)
                if dest in groups:              # same pair + same RHS -> pre-sum the weights
                    groups[dest] = groups[dest] + s
                else:
                    groups[dest] = s
                    order.append(dest)
        smap, slabs = [], []
        for i, dest in enumerate(order):
            smap.append((i * Cout, dest, dest not in seen))
            seen.add(dest)
            slabs.append(groups[dest])
        per_d_slabs.append(slabs)
        slab_maps.append(tuple(smap))

    M_max = max(8, max((len(s) * Cout for s in per_d_slabs), default=8))
    M_max = ((M_max + 7) // 8) * 8
    stacks = []
    for slabs in per_d_slabs:
        s = (jnp.concatenate(slabs, axis=0) if slabs
             else jnp.zeros((0, K_pad), jnp.float32))
        stacks.append(jnp.pad(s, ((0, M_max - s.shape[0]), (0, 0))))
    w_stacked = jnp.stack(stacks, axis=0).astype(jnp.bfloat16)          # (D, M_max, K_pad)
    return w_stacked, tuple(slab_maps), M_max


def _stack_bias(params, D, depths, Cout, Dp):
    """Per output depth-pair bias (added after pooling): 0.5*(b_a + b_b) -> (Dp*Cout, 1)."""
    D_outs = [D - kd + 1 for kd in depths]
    conv_of_t = []
    for ci, nd in enumerate(D_outs):
        conv_of_t += [ci] * nd
    bs = [params["b1"], params["b2"], params["b3"]]
    rows = [0.5 * (bs[conv_of_t[2 * dp]] + bs[conv_of_t[2 * dp + 1]]) for dp in range(Dp)]
    return jnp.concatenate(rows).reshape(Dp * Cout, 1).astype(jnp.float32)


def _pool_matrix(H, W, weight):
    """(H*W, (H//2)*(W//2)) with `weight` at 2x2 window memberships (floor behaviour)."""
    Hh, Wh = H // 2, W // 2
    h, w = jnp.arange(H), jnp.arange(W)
    out_idx = (h[:, None] // 2) * Wh + (w[None, :] // 2)                # (H, W)
    valid = (h[:, None] < 2 * Hh) & (w[None, :] < 2 * Wh)
    onehot = (out_idx.reshape(H * W, 1) == jnp.arange(Hh * Wh)[None, :]) \
        & valid.reshape(H * W, 1)
    return onehot.astype(jnp.float32) * weight


def _border_masks(H, W):
    """(9, H*W) validity masks for the 3x3 taps with spatial padding (1,1)."""
    h, w = jnp.arange(H), jnp.arange(W)
    rows = []
    for kh in range(3):
        for kw in range(3):
            dh, dw = kh - 1, kw - 1
            v = ((h[:, None] + dh >= 0) & (h[:, None] + dh < H) &
                 (w[None, :] + dw >= 0) & (w[None, :] + dw < W))
            rows.append(v.reshape(H * W))
    return jnp.stack(rows, axis=0).astype(jnp.float32)


# ----------------------------- parameters (deterministic, shapes per __init__) ------------
def init_params(key, cin, cout, depths=(1, 3, 6)):
    ks = jax.random.split(key, 8)
    params = {
        "gamma": 1.0 + 0.1 * jax.random.normal(ks[0], (cin,), jnp.float32),
        "beta": 0.1 * jax.random.normal(ks[1], (cin,), jnp.float32),
    }
    kernels = [(depths[0], 1, 1), (depths[1], 3, 3), (depths[2], 3, 3)]
    for i, (kd, kh, kw) in enumerate(kernels):
        params[f"w{i+1}"] = 0.1 * jax.random.normal(
            ks[2 + 2 * i], (cout, cin, kd, kh, kw), jnp.float32)
        params[f"b{i+1}"] = 0.1 * jax.random.normal(ks[3 + 2 * i], (cout,), jnp.float32)
    return params


# ----------------------------- forward pass ------------------------------------------------
def ttl_forward_pallas(x_ncdhw, params, depths=(1, 3, 6)):
    N, Cin, D, H, W = x_ncdhw.shape
    Cout = params["w1"].shape[0]
    HW, Hh, Wh = H * W, H // 2, W // 2
    PAD = W + 1
    HWp = HW + 2 * PAD
    Cin_pad = ((Cin + 7) // 8) * 8                     # f32 sublane-tile aligned channels
    K_pad = ((9 * Cin_pad + 15) // 16) * 16            # bf16 sublane-tile aligned contraction
    D_outs = [D - kd + 1 for kd in depths]
    Dp = sum(D_outs) // 2

    # BatchNorm3d (training-mode batch statistics) folded to per-channel scale/shift.
    mean = jnp.mean(x_ncdhw, axis=(0, 2, 3, 4))
    var = jnp.var(x_ncdhw, axis=(0, 2, 3, 4))
    scale = params["gamma"] / jnp.sqrt(var + EPS)
    shift = params["beta"] - mean * scale
    scale = jnp.pad(scale, (0, Cin_pad - Cin)).reshape(Cin_pad, 1).astype(jnp.float32)
    shift = jnp.pad(shift, (0, Cin_pad - Cin)).reshape(Cin_pad, 1).astype(jnp.float32)

    # Activations: (N, D, Cin_pad, HW + 2*PAD) f32; zero channel pad and flat-spatial halo
    # (pad channels normalize to relu(0*0 + 0) = 0 inside the kernel).
    x_flat = jnp.transpose(x_ncdhw, (0, 2, 1, 3, 4)).reshape(N, D, Cin, HW)
    x_pad = jnp.pad(x_flat, ((0, 0), (0, 0), (0, Cin_pad - Cin), (PAD, PAD))) \
        .astype(jnp.float32)

    w_stacked, slab_maps, M_max = _stack_weights(params, D, depths, Cin_pad, Cout, Dp, K_pad)
    bias_stacked = _stack_bias(params, D, depths, Cout, Dp)
    masks = _border_masks(H, W)
    pool_mat = _pool_matrix(H, W, 0.125).astype(jnp.bfloat16)   # 0.125 = 2x2 avg * pair avg

    kernel = _make_ttl_kernel(D, Cin_pad, Cout, H, W, K_pad, slab_maps)

    out = pl.pallas_call(
        kernel,
        out_shape=jax.ShapeDtypeStruct((N, Dp * Cout, Hh * Wh), jnp.float32),
        grid=(N,),
        in_specs=[
            pl.BlockSpec((1, D, Cin_pad, HWp), lambda n: (n, 0, 0, 0)),   # activations
            pl.BlockSpec((Cin_pad, 1), lambda n: (0, 0)),                 # BN scale
            pl.BlockSpec((Cin_pad, 1), lambda n: (0, 0)),                 # BN shift
            pl.BlockSpec((D, M_max, K_pad), lambda n: (0, 0, 0)),         # stacked conv weights
            pl.BlockSpec((Dp * Cout, 1), lambda n: (0, 0)),               # pair-averaged bias
            pl.BlockSpec((9, HW), lambda n: (0, 0)),                      # 3x3 border masks
            pl.BlockSpec((HW, Hh * Wh), lambda n: (0, 0)),                # pooling matrix
        ],
        out_specs=pl.BlockSpec((1, Dp * Cout, Hh * Wh), lambda n: (n, 0, 0)),
        scratch_shapes=[pltpu.VMEM((D, K_pad, HW), jnp.bfloat16),         # im2col taps (bf16)
                        pltpu.VMEM((Dp * Cout, HW), jnp.float32)],        # pair accumulator
        compiler_params=pltpu.CompilerParams(dimension_semantics=("parallel",)),
    )(x_pad, scale, shift, w_stacked, bias_stacked, masks, pool_mat)

    # (N, Dp*Cout, Hh*Wh) -> NCDHW
    return jnp.transpose(out.reshape(N, Dp, Cout, Hh, Wh), (0, 2, 1, 3, 4))


# ----------------------------- pure-JAX reference (for correctness check) ------------------
def ttl_forward_reference(x, params):
    N, Cin, D, H, W = x.shape
    mean = jnp.mean(x, axis=(0, 2, 3, 4), keepdims=True)
    var = jnp.var(x, axis=(0, 2, 3, 4), keepdims=True)
    g = params["gamma"][None, :, None, None, None]
    b = params["beta"][None, :, None, None, None]
    xn = jax.nn.relu((x - mean) / jnp.sqrt(var + EPS) * g + b)

    def conv(xx, w, bias, p):
        o = lax.conv_general_dilated(xx, w, window_strides=(1, 1, 1),
                                     padding=((0, 0), (p, p), (p, p)),
                                     dimension_numbers=("NCDHW", "OIDHW", "NCDHW"))
        return o + bias[None, :, None, None, None]

    x1 = conv(xn, params["w1"], params["b1"], 0)
    x2 = conv(xn, params["w2"], params["b2"], 1)
    x3 = conv(xn, params["w3"], params["b3"], 1)
    y = jnp.concatenate([x1, x2, x3], axis=2)
    Cout, Dt = y.shape[1], y.shape[2]
    Dp, Hh, Wh = Dt // 2, H // 2, W // 2
    yw = y[:, :, :2 * Dp, :2 * Hh, :2 * Wh].reshape(N, Cout, Dp, 2, Hh, 2, Wh, 2)
    return yw.mean(axis=(3, 5, 7))


if __name__ == "__main__":
    key = jax.random.PRNGKey(0)
    k_x, k_p = jax.random.split(key)
    N, Cin, Cout, D, H, W = 2, 4, 8, 8, 16, 16
    x = jax.random.normal(k_x, (N, Cin, D, H, W), jnp.float32)
    params = init_params(k_p, Cin, Cout)

    out = ttl_forward_pallas(x, params)
    out = jax.block_until_ready(out)

    ref = ttl_forward_reference(x, params)
    Dp = (D + (D - 2) + (D - 5)) // 2
    expected_shape = (N, Cout, Dp, H // 2, W // 2)
    assert out.shape == expected_shape, (out.shape, expected_shape)
    if not jnp.allclose(out, ref, atol=2e-2, rtol=2e-2):
        raise AssertionError(
            f"mismatch vs reference, max abs err = {float(jnp.max(jnp.abs(out - ref)))}")
    print("KERNEL_OK")
</pallas_src>

<mosaic_0001>
module attributes {stable_mosaic.version = 11 : i64} {
  func.func @kernel(%arg0: i32, %arg1: memref<1x8x8x290xf32, #tpu.memory_space<vmem>>, %arg2: memref<8x1xf32, #tpu.memory_space<vmem>>, %arg3: memref<8x1xf32, #tpu.memory_space<vmem>>, %arg4: memref<8x32x80xbf16, #tpu.memory_space<vmem>>, %arg5: memref<64x1xf32, #tpu.memory_space<vmem>>, %arg6: memref<9x256xf32, #tpu.memory_space<vmem>>, %arg7: memref<256x64xbf16, #tpu.memory_space<vmem>>, %arg8: memref<1x64x64xf32, #tpu.memory_space<vmem>>, %arg9: memref<8x80x256xbf16, #tpu.memory_space<vmem>>, %arg10: memref<64x256xf32, #tpu.memory_space<vmem>>) attributes {dimension_semantics = [#tpu.dimension_semantics<parallel>], iteration_bounds = array<i64: 2>, scalar_prefetch = 0 : i64, scratch_operands = 2 : i64, tpu.core_type = #tpu.core_type<tc>, window_params = [{transform_indices = @transform_0, window_bounds = array<i64: 1, 8, 8, 290>}, {pipeline_mode = #tpu.pipeline_mode<synchronous>, transform_indices = @transform_1, window_bounds = array<i64: 8, 1>}, {pipeline_mode = #tpu.pipeline_mode<synchronous>, transform_indices = @transform_2, window_bounds = array<i64: 8, 1>}, {pipeline_mode = #tpu.pipeline_mode<synchronous>, transform_indices = @transform_3, window_bounds = array<i64: 8, 32, 80>}, {pipeline_mode = #tpu.pipeline_mode<synchronous>, transform_indices = @transform_4, window_bounds = array<i64: 64, 1>}, {pipeline_mode = #tpu.pipeline_mode<synchronous>, transform_indices = @transform_5, window_bounds = array<i64: 9, 256>}, {pipeline_mode = #tpu.pipeline_mode<synchronous>, transform_indices = @transform_6, window_bounds = array<i64: 256, 64>}, {transform_indices = @transform_7, window_bounds = array<i64: 1, 64, 64>}]} {
    %c0 = arith.constant 0 : index
    %c0_0 = arith.constant 0 : index
    %0 = vector.load %arg6[%c0, %c0_0] : memref<9x256xf32, #tpu.memory_space<vmem>>, vector<1x256xf32>
    %c1 = arith.constant 1 : index
    %c0_1 = arith.constant 0 : index
    %1 = vector.load %arg6[%c1, %c0_1] : memref<9x256xf32, #tpu.memory_space<vmem>>, vector<1x256xf32>
    %c2 = arith.constant 2 : index
    %c0_2 = arith.constant 0 : index
    %2 = vector.load %arg6[%c2, %c0_2] : memref<9x256xf32, #tpu.memory_space<vmem>>, vector<1x256xf32>
    %c3 = arith.constant 3 : index
    %c0_3 = arith.constant 0 : index
    %3 = vector.load %arg6[%c3, %c0_3] : memref<9x256xf32, #tpu.memory_space<vmem>>, vector<1x256xf32>
    %c5 = arith.constant 5 : index
    %c0_4 = arith.constant 0 : index
    %4 = vector.load %arg6[%c5, %c0_4] : memref<9x256xf32, #tpu.memory_space<vmem>>, vector<1x256xf32>
    %c6 = arith.constant 6 : index
    %c0_5 = arith.constant 0 : index
    %5 = vector.load %arg6[%c6, %c0_5] : memref<9x256xf32, #tpu.memory_space<vmem>>, vector<1x256xf32>
    %c7 = arith.constant 7 : index
    %c0_6 = arith.constant 0 : index
    %6 = vector.load %arg6[%c7, %c0_6] : memref<9x256xf32, #tpu.memory_space<vmem>>, vector<1x256xf32>
    %c8 = arith.constant 8 : index
    %c0_7 = arith.constant 0 : index
    %7 = vector.load %arg6[%c8, %c0_7] : memref<9x256xf32, #tpu.memory_space<vmem>>, vector<1x256xf32>
    %cst = arith.constant 0.000000e+00 : f32
    %8 = vector.broadcast %cst : f32 to vector<8x256xf32>
    %c0_8 = arith.constant 0 : index
    %c0_9 = arith.constant 0 : index
    %c0_10 = arith.constant 0 : index
    %c0_11 = arith.constant 0 : index
    %9 = vector.load %arg1[%c0_8, %c0_9, %c0_10, %c0_11] : memref<1x8x8x290xf32, #tpu.memory_space<vmem>>, vector<1x1x8x290xf32>
    %10 = vector.shape_cast %9 : vector<1x1x8x290xf32> to vector<8x290xf32>
    %c0_12 = arith.constant 0 : index
    %c0_13 = arith.constant 0 : index
    %11 = vector.load %arg2[%c0_12, %c0_13] : memref<8x1xf32, #tpu.memory_space<vmem>>, vector<8x1xf32>
    %12 = vector.broadcast %11 : vector<8x1xf32> to vector<8x290xf32>
    %13 = arith.mulf %10, %12 : vector<8x290xf32>
    %c0_14 = arith.constant 0 : index
    %c0_15 = arith.constant 0 : index
    %14 = vector.load %arg3[%c0_14, %c0_15] : memref<8x1xf32, #tpu.memory_space<vmem>>, vector<8x1xf32>
    %15 = vector.broadcast %14 : vector<8x1xf32> to vector<8x290xf32>
    %16 = arith.addf %13, %15 : vector<8x290xf32>
    %cst_16 = arith.constant 0.000000e+00 : f32
    %17 = vector.broadcast %cst_16 : f32 to vector<8x290xf32>
    %18 = arith.maximumf %16, %17 : vector<8x290xf32>
    %19 = vector.extract_strided_slice %18 {offsets = [0, 0], sizes = [8, 256], strides = [1, 1]} : vector<8x290xf32> to vector<8x256xf32>
    %20 = vector.broadcast %0 : vector<1x256xf32> to vector<8x256xf32>
    %21 = arith.mulf %19, %20 : vector<8x256xf32>
    %22 = vector.extract_strided_slice %18 {offsets = [0, 1], sizes = [8, 256], strides = [1, 1]} : vector<8x290xf32> to vector<8x256xf32>
    %23 = vector.broadcast %1 : vector<1x256xf32> to vector<8x256xf32>
    %24 = arith.mulf %22, %23 : vector<8x256xf32>
    %25 = vector.extract_strided_slice %18 {offsets = [0, 2], sizes = [8, 256], strides = [1, 1]} : vector<8x290xf32> to vector<8x256xf32>
    %26 = vector.broadcast %2 : vector<1x256xf32> to vector<8x256xf32>
    %27 = arith.mulf %25, %26 : vector<8x256xf32>
    %28 = vector.extract_strided_slice %18 {offsets = [0, 16], sizes = [8, 256], strides = [1, 1]} : vector<8x290xf32> to vector<8x256xf32>
    %29 = vector.broadcast %3 : vector<1x256xf32> to vector<8x256xf32>
    %30 = arith.mulf %28, %29 : vector<8x256xf32>
    %31 = vector.extract_strided_slice %18 {offsets = [0, 17], sizes = [8, 256], strides = [1, 1]} : vector<8x290xf32> to vector<8x256xf32>
    %32 = vector.extract_strided_slice %18 {offsets = [0, 18], sizes = [8, 256], strides = [1, 1]} : vector<8x290xf32> to vector<8x256xf32>
    %33 = vector.broadcast %4 : vector<1x256xf32> to vector<8x256xf32>
    %34 = arith.mulf %32, %33 : vector<8x256xf32>
    %35 = vector.extract_strided_slice %18 {offsets = [0, 32], sizes = [8, 256], strides = [1, 1]} : vector<8x290xf32> to vector<8x256xf32>
    %36 = vector.broadcast %5 : vector<1x256xf32> to vector<8x256xf32>
    %37 = arith.mulf %35, %36 : vector<8x256xf32>
    %38 = vector.extract_strided_slice %18 {offsets = [0, 33], sizes = [8, 256], strides = [1, 1]} : vector<8x290xf32> to vector<8x256xf32>
    %39 = vector.broadcast %6 : vector<1x256xf32> to vector<8x256xf32>
    %40 = arith.mulf %38, %39 : vector<8x256xf32>
    %41 = vector.extract_strided_slice %18 {offsets = [0, 34], sizes = [8, 256], strides = [1, 1]} : vector<8x290xf32> to vector<8x256xf32>
    %42 = vector.broadcast %7 : vector<1x256xf32> to vector<8x256xf32>
    %43 = arith.mulf %41, %42 : vector<8x256xf32>
    %44 = tpu.concatenate %21, %24, %27, %30, %31, %34, %37, %40, %43, %8 in 0 : vector<8x256xf32>, vector<8x256xf32>, vector<8x256xf32>, vector<8x256xf32>, vector<8x256xf32>, vector<8x256xf32>, vector<8x256xf32>, vector<8x256xf32>, vector<8x256xf32>, vector<8x256xf32> -> vector<80x256xf32>
    %45 = arith.truncf %44 : vector<80x256xf32> to vector<80x256xbf16>
    %c0_17 = arith.constant 0 : index
    %c0_18 = arith.constant 0 : index
    %c0_19 = arith.constant 0 : index
    %46 = vector.load %arg9[%c0_17, %c0_18, %c0_19] : memref<8x80x256xbf16, #tpu.memory_space<vmem>>, vector<1x80x256xbf16>
    %47 = vector.shape_cast %46 : vector<1x80x256xbf16> to vector<80x256xbf16>
    %48 = vector.shape_cast %45 : vector<80x256xbf16> to vector<1x80x256xbf16>
    tpu.vector_store %arg9[%c0_17, %c0_18, %c0_19], %48 {strides = array<i32>} : memref<8x80x256xbf16, #tpu.memory_space<vmem>>, vector<1x80x256xbf16>,
    %c0_20 = arith.constant 0 : index
    %c1_21 = arith.constant 1 : index
    %c0_22 = arith.constant 0 : index
    %c0_23 = arith.constant 0 : index
    %49 = vector.load %arg1[%c0_20, %c1_21, %c0_22, %c0_23] : memref<1x8x8x290xf32, #tpu.memory_space<vmem>>, vector<1x1x8x290xf32>
    %50 = vector.shape_cast %49 : vector<1x1x8x290xf32> to vector<8x290xf32>
    %c0_24 = arith.constant 0 : index
    %c0_25 = arith.constant 0 : index
    %51 = vector.load %arg2[%c0_24, %c0_25] : memref<8x1xf32, #tpu.memory_space<vmem>>, vector<8x1xf32>
    %52 = vector.broadcast %51 : vector<8x1xf32> to vector<8x290xf32>
    %53 = arith.mulf %50, %52 : vector<8x290xf32>
    %c0_26 = arith.constant 0 : index
    %c0_27 = arith.constant 0 : index
    %54 = vector.load %arg3[%c0_26, %c0_27] : memref<8x1xf32, #tpu.memory_space<vmem>>, vector<8x1xf32>
    %55 = vector.broadcast %54 : vector<8x1xf32> to vector<8x290xf32>
    %56 = arith.addf %53, %55 : vector<8x290xf32>
    %cst_28 = arith.constant 0.000000e+00 : f32
    %57 = vector.broadcast %cst_28 : f32 to vector<8x290xf32>
    %58 = arith.maximumf %56, %57 : vector<8x290xf32>
    %59 = vector.extract_strided_slice %58 {offsets = [0, 0], sizes = [8, 256], strides = [1, 1]} : vector<8x290xf32> to vector<8x256xf32>
    %60 = vector.broadcast %0 : vector<1x256xf32> to vector<8x256xf32>
    %61 = arith.mulf %59, %60 : vector<8x256xf32>
    %62 = vector.extract_strided_slice %58 {offsets = [0, 1], sizes = [8, 256], strides = [1, 1]} : vector<8x290xf32> to vector<8x256xf32>
    %63 = vector.broadcast %1 : vector<1x256xf32> to vector<8x256xf32>
    %64 = arith.mulf %62, %63 : vector<8x256xf32>
    %65 = vector.extract_strided_slice %58 {offsets = [0, 2], sizes = [8, 256], strides = [1, 1]} : vector<8x290xf32> to vector<8x256xf32>
    %66 = vector.broadcast %2 : vector<1x256xf32> to vector<8x256xf32>
    %67 = arith.mulf %65, %66 : vector<8x256xf32>
    %68 = vector.extract_strided_slice %58 {offsets = [0, 16], sizes = [8, 256], strides = [1, 1]} : vector<8x290xf32> to vector<8x256xf32>
    %69 = vector.broadcast %3 : vector<1x256xf32> to vector<8x256xf32>
    %70 = arith.mulf %68, %69 : vector<8x256xf32>
    %71 = vector.extract_strided_slice %58 {offsets = [0, 17], sizes = [8, 256], strides = [1, 1]} : vector<8x290xf32> to vector<8x256xf32>
    %72 = vector.extract_strided_slice %58 {offsets = [0, 18], sizes = [8, 256], strides = [1, 1]} : vector<8x290xf32> to vector<8x256xf32>
    %73 = vector.broadcast %4 : vector<1x256xf32> to vector<8x256xf32>
    %74 = arith.mulf %72, %73 : vector<8x256xf32>
    %75 = vector.extract_strided_slice %58 {offsets = [0, 32], sizes = [8, 256], strides = [1, 1]} : vector<8x290xf32> to vector<8x256xf32>
    %76 = vector.broadcast %5 : vector<1x256xf32> to vector<8x256xf32>
    %77 = arith.mulf %75, %76 : vector<8x256xf32>
    %78 = vector.extract_strided_slice %58 {offsets = [0, 33], sizes = [8, 256], strides = [1, 1]} : vector<8x290xf32> to vector<8x256xf32>
    %79 = vector.broadcast %6 : vector<1x256xf32> to vector<8x256xf32>
    %80 = arith.mulf %78, %79 : vector<8x256xf32>
    %81 = vector.extract_strided_slice %58 {offsets = [0, 34], sizes = [8, 256], strides = [1, 1]} : vector<8x290xf32> to vector<8x256xf32>
    %82 = vector.broadcast %7 : vector<1x256xf32> to vector<8x256xf32>
    %83 = arith.mulf %81, %82 : vector<8x256xf32>
    %84 = tpu.concatenate %61, %64, %67, %70, %71, %74, %77, %80, %83, %8 in 0 : vector<8x256xf32>, vector<8x256xf32>, vector<8x256xf32>, vector<8x256xf32>, vector<8x256xf32>, vector<8x256xf32>, vector<8x256xf32>, vector<8x256xf32>, vector<8x256xf32>, vector<8x256xf32> -> vector<80x256xf32>
    %85 = arith.truncf %84 : vector<80x256xf32> to vector<80x256xbf16>
    %c1_29 = arith.constant 1 : index
    %c0_30 = arith.constant 0 : index
    %c0_31 = arith.constant 0 : index
    %86 = vector.load %arg9[%c1_29, %c0_30, %c0_31] : memref<8x80x256xbf16, #tpu.memory_space<vmem>>, vector<1x80x256xbf16>
    %87 = vector.shape_cast %86 : vector<1x80x256xbf16> to vector<80x256xbf16>
    %88 = vector.shape_cast %85 : vector<80x256xbf16> to vector<1x80x256xbf16>
    tpu.vector_store %arg9[%c1_29, %c0_30, %c0_31], %88 {strides = array<i32>} : memref<8x80x256xbf16, #tpu.memory_space<vmem>>, vector<1x80x256xbf16>,
    %c0_32 = arith.constant 0 : index
    %c2_33 = arith.constant 2 : index
    %c0_34 = arith.constant 0 : index
    %c0_35 = arith.constant 0 : index
    %89 = vector.load %arg1[%c0_32, %c2_33, %c0_34, %c0_35] : memref<1x8x8x290xf32, #tpu.memory_space<vmem>>, vector<1x1x8x290xf32>
    %90 = vector.shape_cast %89 : vector<1x1x8x290xf32> to vector<8x290xf32>
    %c0_36 = arith.constant 0 : index
    %c0_37 = arith.constant 0 : index
    %91 = vector.load %arg2[%c0_36, %c0_37] : memref<8x1xf32, #tpu.memory_space<vmem>>, vector<8x1xf32>
    %92 = vector.broadcast %91 : vector<8x1xf32> to vector<8x290xf32>
    %93 = arith.mulf %90, %92 : vector<8x290xf32>
    %c0_38 = arith.constant 0 : index
    %c0_39 = arith.constant 0 : index
    %94 = vector.load %arg3[%c0_38, %c0_39] : memref<8x1xf32, #tpu.memory_space<vmem>>, vector<8x1xf32>
    %95 = vector.broadcast %94 : vector<8x1xf32> to vector<8x290xf32>
    %96 = arith.addf %93, %95 : vector<8x290xf32>
    %cst_40 = arith.constant 0.000000e+00 : f32
    %97 = vector.broadcast %cst_40 : f32 to vector<8x290xf32>
    %98 = arith.maximumf %96, %97 : vector<8x290xf32>
    %99 = vector.extract_strided_slice %98 {offsets = [0, 0], sizes = [8, 256], strides = [1, 1]} : vector<8x290xf32> to vector<8x256xf32>
    %100 = vector.broadcast %0 : vector<1x256xf32> to vector<8x256xf32>
    %101 = arith.mulf %99, %100 : vector<8x256xf32>
    %102 = vector.extract_strided_slice %98 {offsets = [0, 1], sizes = [8, 256], strides = [1, 1]} : vector<8x290xf32> to vector<8x256xf32>
    %103 = vector.broadcast %1 : vector<1x256xf32> to vector<8x256xf32>
    %104 = arith.mulf %102, %103 : vector<8x256xf32>
    %105 = vector.extract_strided_slice %98 {offsets = [0, 2], sizes = [8, 256], strides = [1, 1]} : vector<8x290xf32> to vector<8x256xf32>
    %106 = vector.broadcast %2 : vector<1x256xf32> to vector<8x256xf32>
    %107 = arith.mulf %105, %106 : vector<8x256xf32>
    %108 = vector.extract_strided_slice %98 {offsets = [0, 16], sizes = [8, 256], strides = [1, 1]} : vector<8x290xf32> to vector<8x256xf32>
    %109 = vector.broadcast %3 : vector<1x256xf32> to vector<8x256xf32>
    %110 = arith.mulf %108, %109 : vector<8x256xf32>
    %111 = vector.extract_strided_slice %98 {offsets = [0, 17], sizes = [8, 256], strides = [1, 1]} : vector<8x290xf32> to vector<8x256xf32>
    %112 = vector.extract_strided_slice %98 {offsets = [0, 18], sizes = [8, 256], strides = [1, 1]} : vector<8x290xf32> to vector<8x256xf32>
    %113 = vector.broadcast %4 : vector<1x256xf32> to vector<8x256xf32>
    %114 = arith.mulf %112, %113 : vector<8x256xf32>
    %115 = vector.extract_strided_slice %98 {offsets = [0, 32], sizes = [8, 256], strides = [1, 1]} : vector<8x290xf32> to vector<8x256xf32>
    %116 = vector.broadcast %5 : vector<1x256xf32> to vector<8x256xf32>
    %117 = arith.mulf %115, %116 : vector<8x256xf32>
    %118 = vector.extract_strided_slice %98 {offsets = [0, 33], sizes = [8, 256], strides = [1, 1]} : vector<8x290xf32> to vector<8x256xf32>
    %119 = vector.broadcast %6 : vector<1x256xf32> to vector<8x256xf32>
    %120 = arith.mulf %118, %119 : vector<8x256xf32>
    %121 = vector.extract_strided_slice %98 {offsets = [0, 34], sizes = [8, 256], strides = [1, 1]} : vector<8x290xf32> to vector<8x256xf32>
    %122 = vector.broadcast %7 : vector<1x256xf32> to vector<8x256xf32>
    %123 = arith.mulf %121, %122 : vector<8x256xf32>
    %124 = tpu.concatenate %101, %104, %107, %110, %111, %114, %117, %120, %123, %8 in 0 : vector<8x256xf32>, vector<8x256xf32>, vector<8x256xf32>, vector<8x256xf32>, vector<8x256xf32>, vector<8x256xf32>, vector<8x256xf32>, vector<8x256xf32>, vector<8x256xf32>, vector<8x256xf32> -> vector<80x256xf32>
    %125 = arith.truncf %124 : vector<80x256xf32> to vector<80x256xbf16>
    %c2_41 = arith.constant 2 : index
    %c0_42 = arith.constant 0 : index
    %c0_43 = arith.constant 0 : index
    %126 = vector.load %arg9[%c2_41, %c0_42, %c0_43] : memref<8x80x256xbf16, #tpu.memory_space<vmem>>, vector<1x80x256xbf16>
    %127 = vector.shape_cast %126 : vector<1x80x256xbf16> to vector<80x256xbf16>
    %128 = vector.shape_cast %125 : vector<80x256xbf16> to vector<1x80x256xbf16>
    tpu.vector_store %arg9[%c2_41, %c0_42, %c0_43], %128 {strides = array<i32>} : memref<8x80x256xbf16, #tpu.memory_space<vmem>>, vector<1x80x256xbf16>,
    %c0_44 = arith.constant 0 : index
    %c3_45 = arith.constant 3 : index
    %c0_46 = arith.constant 0 : index
    %c0_47 = arith.constant 0 : index
    %129 = vector.load %arg1[%c0_44, %c3_45, %c0_46, %c0_47] : memref<1x8x8x290xf32, #tpu.memory_space<vmem>>, vector<1x1x8x290xf32>
    %130 = vector.shape_cast %129 : vector<1x1x8x290xf32> to vector<8x290xf32>
    %c0_48 = arith.constant 0 : index
    %c0_49 = arith.constant 0 : index
    %131 = vector.load %arg2[%c0_48, %c0_49] : memref<8x1xf32, #tpu.memory_space<vmem>>, vector<8x1xf32>
    %132 = vector.broadcast %131 : vector<8x1xf32> to vector<8x290xf32>
    %133 = arith.mulf %130, %132 : vector<8x290xf32>
    %c0_50 = arith.constant 0 : index
    %c0_51 = arith.constant 0 : index
    %134 = vector.load %arg3[%c0_50, %c0_51] : memref<8x1xf32, #tpu.memory_space<vmem>>, vector<8x1xf32>
    %135 = vector.broadcast %134 : vector<8x1xf32> to vector<8x290xf32>
    %136 = arith.addf %133, %135 : vector<8x290xf32>
    %cst_52 = arith.constant 0.000000e+00 : f32
    %137 = vector.broadcast %cst_52 : f32 to vector<8x290xf32>
    %138 = arith.maximumf %136, %137 : vector<8x290xf32>
    %139 = vector.extract_strided_slice %138 {offsets = [0, 0], sizes = [8, 256], strides = [1, 1]} : vector<8x290xf32> to vector<8x256xf32>
    %140 = vector.broadcast %0 : vector<1x256xf32> to vector<8x256xf32>
    %141 = arith.mulf %139, %140 : vector<8x256xf32>
    %142 = vector.extract_strided_slice %138 {offsets = [0, 1], sizes = [8, 256], strides = [1, 1]} : vector<8x290xf32> to vector<8x256xf32>
    %143 = vector.broadcast %1 : vector<1x256xf32> to vector<8x256xf32>
    %144 = arith.mulf %142, %143 : vector<8x256xf32>
    %145 = vector.extract_strided_slice %138 {offsets = [0, 2], sizes = [8, 256], strides = [1, 1]} : vector<8x290xf32> to vector<8x256xf32>
    %146 = vector.broadcast %2 : vector<1x256xf32> to vector<8x256xf32>
    %147 = arith.mulf %145, %146 : vector<8x256xf32>
    %148 = vector.extract_strided_slice %138 {offsets = [0, 16], sizes = [8, 256], strides = [1, 1]} : vector<8x290xf32> to vector<8x256xf32>
    %149 = vector.broadcast %3 : vector<1x256xf32> to vector<8x256xf32>
    %150 = arith.mulf %148, %149 : vector<8x256xf32>
    %151 = vector.extract_strided_slice %138 {offsets = [0, 17], sizes = [8, 256], strides = [1, 1]} : vector<8x290xf32> to vector<8x256xf32>
    %152 = vector.extract_strided_slice %138 {offsets = [0, 18], sizes = [8, 256], strides = [1, 1]} : vector<8x290xf32> to vector<8x256xf32>
    %153 = vector.broadcast %4 : vector<1x256xf32> to vector<8x256xf32>
    %154 = arith.mulf %152, %153 : vector<8x256xf32>
    %155 = vector.extract_strided_slice %138 {offsets = [0, 32], sizes = [8, 256], strides = [1, 1]} : vector<8x290xf32> to vector<8x256xf32>
    %156 = vector.broadcast %5 : vector<1x256xf32> to vector<8x256xf32>
    %157 = arith.mulf %155, %156 : vector<8x256xf32>
    %158 = vector.extract_strided_slice %138 {offsets = [0, 33], sizes = [8, 256], strides = [1, 1]} : vector<8x290xf32> to vector<8x256xf32>
    %159 = vector.broadcast %6 : vector<1x256xf32> to vector<8x256xf32>
    %160 = arith.mulf %158, %159 : vector<8x256xf32>
    %161 = vector.extract_strided_slice %138 {offsets = [0, 34], sizes = [8, 256], strides = [1, 1]} : vector<8x290xf32> to vector<8x256xf32>
    %162 = vector.broadcast %7 : vector<1x256xf32> to vector<8x256xf32>
    %163 = arith.mulf %161, %162 : vector<8x256xf32>
    %164 = tpu.concatenate %141, %144, %147, %150, %151, %154, %157, %160, %163, %8 in 0 : vector<8x256xf32>, vector<8x256xf32>, vector<8x256xf32>, vector<8x256xf32>, vector<8x256xf32>, vector<8x256xf32>, vector<8x256xf32>, vector<8x256xf32>, vector<8x256xf32>, vector<8x256xf32> -> vector<80x256xf32>
    %165 = arith.truncf %164 : vector<80x256xf32> to vector<80x256xbf16>
    %c3_53 = arith.constant 3 : index
    %c0_54 = arith.constant 0 : index
    %c0_55 = arith.constant 0 : index
    %166 = vector.load %arg9[%c3_53, %c0_54, %c0_55] : memref<8x80x256xbf16, #tpu.memory_space<vmem>>, vector<1x80x256xbf16>
    %167 = vector.shape_cast %166 : vector<1x80x256xbf16> to vector<80x256xbf16>
    %168 = vector.shape_cast %165 : vector<80x256xbf16> to vector<1x80x256xbf16>
    tpu.vector_store %arg9[%c3_53, %c0_54, %c0_55], %168 {strides = array<i32>} : memref<8x80x256xbf16, #tpu.memory_space<vmem>>, vector<1x80x256xbf16>,
    %c0_56 = arith.constant 0 : index
    %c4 = arith.constant 4 : index
    %c0_57 = arith.constant 0 : index
    %c0_58 = arith.constant 0 : index
    %169 = vector.load %arg1[%c0_56, %c4, %c0_57, %c0_58] : memref<1x8x8x290xf32, #tpu.memory_space<vmem>>, vector<1x1x8x290xf32>
    %170 = vector.shape_cast %169 : vector<1x1x8x290xf32> to vector<8x290xf32>
    %c0_59 = arith.constant 0 : index
    %c0_60 = arith.constant 0 : index
    %171 = vector.load %arg2[%c0_59, %c0_60] : memref<8x1xf32, #tpu.memory_space<vmem>>, vector<8x1xf32>
    %172 = vector.broadcast %171 : vector<8x1xf32> to vector<8x290xf32>
    %173 = arith.mulf %170, %172 : vector<8x290xf32>
    %c0_61 = arith.constant 0 : index
    %c0_62 = arith.constant 0 : index
    %174 = vector.load %arg3[%c0_61, %c0_62] : memref<8x1xf32, #tpu.memory_space<vmem>>, vector<8x1xf32>
    %175 = vector.broadcast %174 : vector<8x1xf32> to vector<8x290xf32>
    %176 = arith.addf %173, %175 : vector<8x290xf32>
    %cst_63 = arith.constant 0.000000e+00 : f32
    %177 = vector.broadcast %cst_63 : f32 to vector<8x290xf32>
    %178 = arith.maximumf %176, %177 : vector<8x290xf32>
    %179 = vector.extract_strided_slice %178 {offsets = [0, 0], sizes = [8, 256], strides = [1, 1]} : vector<8x290xf32> to vector<8x256xf32>
    %180 = vector.broadcast %0 : vector<1x256xf32> to vector<8x256xf32>
    %181 = arith.mulf %179, %180 : vector<8x256xf32>
    %182 = vector.extract_strided_slice %178 {offsets = [0, 1], sizes = [8, 256], strides = [1, 1]} : vector<8x290xf32> to vector<8x256xf32>
    %183 = vector.broadcast %1 : vector<1x256xf32> to vector<8x256xf32>
    %184 = arith.mulf %182, %183 : vector<8x256xf32>
    %185 = vector.extract_strided_slice %178 {offsets = [0, 2], sizes = [8, 256], strides = [1, 1]} : vector<8x290xf32> to vector<8x256xf32>
    %186 = vector.broadcast %2 : vector<1x256xf32> to vector<8x256xf32>
    %187 = arith.mulf %185, %186 : vector<8x256xf32>
    %188 = vector.extract_strided_slice %178 {offsets = [0, 16], sizes = [8, 256], strides = [1, 1]} : vector<8x290xf32> to vector<8x256xf32>
    %189 = vector.broadcast %3 : vector<1x256xf32> to vector<8x256xf32>
    %190 = arith.mulf %188, %189 : vector<8x256xf32>
    %191 = vector.extract_strided_slice %178 {offsets = [0, 17], sizes = [8, 256], strides = [1, 1]} : vector<8x290xf32> to vector<8x256xf32>
    %192 = vector.extract_strided_slice %178 {offsets = [0, 18], sizes = [8, 256], strides = [1, 1]} : vector<8x290xf32> to vector<8x256xf32>
    %193 = vector.broadcast %4 : vector<1x256xf32> to vector<8x256xf32>
    %194 = arith.mulf %192, %193 : vector<8x256xf32>
    %195 = vector.extract_strided_slice %178 {offsets = [0, 32], sizes = [8, 256], strides = [1, 1]} : vector<8x290xf32> to vector<8x256xf32>
    %196 = vector.broadcast %5 : vector<1x256xf32> to vector<8x256xf32>
    %197 = arith.mulf %195, %196 : vector<8x256xf32>
    %198 = vector.extract_strided_slice %178 {offsets = [0, 33], sizes = [8, 256], strides = [1, 1]} : vector<8x290xf32> to vector<8x256xf32>
    %199 = vector.broadcast %6 : vector<1x256xf32> to vector<8x256xf32>
    %200 = arith.mulf %198, %199 : vector<8x256xf32>
    %201 = vector.extract_strided_slice %178 {offsets = [0, 34], sizes = [8, 256], strides = [1, 1]} : vector<8x290xf32> to vector<8x256xf32>
    %202 = vector.broadcast %7 : vector<1x256xf32> to vector<8x256xf32>
    %203 = arith.mulf %201, %202 : vector<8x256xf32>
    %204 = tpu.concatenate %181, %184, %187, %190, %191, %194, %197, %200, %203, %8 in 0 : vector<8x256xf32>, vector<8x256xf32>, vector<8x256xf32>, vector<8x256xf32>, vector<8x256xf32>, vector<8x256xf32>, vector<8x256xf32>, vector<8x256xf32>, vector<8x256xf32>, vector<8x256xf32> -> vector<80x256xf32>
    %205 = arith.truncf %204 : vector<80x256xf32> to vector<80x256xbf16>
    %c4_64 = arith.constant 4 : index
    %c0_65 = arith.constant 0 : index
    %c0_66 = arith.constant 0 : index
    %206 = vector.load %arg9[%c4_64, %c0_65, %c0_66] : memref<8x80x256xbf16, #tpu.memory_space<vmem>>, vector<1x80x256xbf16>
    %207 = vector.shape_cast %206 : vector<1x80x256xbf16> to vector<80x256xbf16>
    %208 = vector.shape_cast %205 : vector<80x256xbf16> to vector<1x80x256xbf16>
    tpu.vector_store %arg9[%c4_64, %c0_65, %c0_66], %208 {strides = array<i32>} : memref<8x80x256xbf16, #tpu.memory_space<vmem>>, vector<1x80x256xbf16>,
    %c0_67 = arith.constant 0 : index
    %c5_68 = arith.constant 5 : index
    %c0_69 = arith.constant 0 : index
    %c0_70 = arith.constant 0 : index
    %209 = vector.load %arg1[%c0_67, %c5_68, %c0_69, %c0_70] : memref<1x8x8x290xf32, #tpu.memory_space<vmem>>, vector<1x1x8x290xf32>
    %210 = vector.shape_cast %209 : vector<1x1x8x290xf32> to vector<8x290xf32>
    %c0_71 = arith.constant 0 : index
    %c0_72 = arith.constant 0 : index
    %211 = vector.load %arg2[%c0_71, %c0_72] : memref<8x1xf32, #tpu.memory_space<vmem>>, vector<8x1xf32>
    %212 = vector.broadcast %211 : vector<8x1xf32> to vector<8x290xf32>
    %213 = arith.mulf %210, %212 : vector<8x290xf32>
    %c0_73 = arith.constant 0 : index
    %c0_74 = arith.constant 0 : index
    %214 = vector.load %arg3[%c0_73, %c0_74] : memref<8x1xf32, #tpu.memory_space<vmem>>, vector<8x1xf32>
    %215 = vector.broadcast %214 : vector<8x1xf32> to vector<8x290xf32>
    %216 = arith.addf %213, %215 : vector<8x290xf32>
    %cst_75 = arith.constant 0.000000e+00 : f32
    %217 = vector.broadcast %cst_75 : f32 to vector<8x290xf32>
    %218 = arith.maximumf %216, %217 : vector<8x290xf32>
    %219 = vector.extract_strided_slice %218 {offsets = [0, 0], sizes = [8, 256], strides = [1, 1]} : vector<8x290xf32> to vector<8x256xf32>
    %220 = vector.broadcast %0 : vector<1x256xf32> to vector<8x256xf32>
    %221 = arith.mulf %219, %220 : vector<8x256xf32>
    %222 = vector.extract_strided_slice %218 {offsets = [0, 1], sizes = [8, 256], strides = [1, 1]} : vector<8x290xf32> to vector<8x256xf32>
    %223 = vector.broadcast %1 : vector<1x256xf32> to vector<8x256xf32>
    %224 = arith.mulf %222, %223 : vector<8x256xf32>
    %225 = vector.extract_strided_slice %218 {offsets = [0, 2], sizes = [8, 256], strides = [1, 1]} : vector<8x290xf32> to vector<8x256xf32>
    %226 = vector.broadcast %2 : vector<1x256xf32> to vector<8x256xf32>
    %227 = arith.mulf %225, %226 : vector<8x256xf32>
    %228 = vector.extract_strided_slice %218 {offsets = [0, 16], sizes = [8, 256], strides = [1, 1]} : vector<8x290xf32> to vector<8x256xf32>
    %229 = vector.broadcast %3 : vector<1x256xf32> to vector<8x256xf32>
    %230 = arith.mulf %228, %229 : vector<8x256xf32>
    %231 = vector.extract_strided_slice %218 {offsets = [0, 17], sizes = [8, 256], strides = [1, 1]} : vector<8x290xf32> to vector<8x256xf32>
    %232 = vector.extract_strided_slice %218 {offsets = [0, 18], sizes = [8, 256], strides = [1, 1]} : vector<8x290xf32> to vector<8x256xf32>
    %233 = vector.broadcast %4 : vector<1x256xf32> to vector<8x256xf32>
    %234 = arith.mulf %232, %233 : vector<8x256xf32>
    %235 = vector.extract_strided_slice %218 {offsets = [0, 32], sizes = [8, 256], strides = [1, 1]} : vector<8x290xf32> to vector<8x256xf32>
    %236 = vector.broadcast %5 : vector<1x256xf32> to vector<8x256xf32>
    %237 = arith.mulf %235, %236 : vector<8x256xf32>
    %238 = vector.extract_strided_slice %218 {offsets = [0, 33], sizes = [8, 256], strides = [1, 1]} : vector<8x290xf32> to vector<8x256xf32>
    %239 = vector.broadcast %6 : vector<1x256xf32> to vector<8x256xf32>
    %240 = arith.mulf %238, %239 : vector<8x256xf32>
    %241 = vector.extract_strided_slice %218 {offsets = [0, 34], sizes = [8, 256], strides = [1, 1]} : vector<8x290xf32> to vector<8x256xf32>
    %242 = vector.broadcast %7 : vector<1x256xf32> to vector<8x256xf32>
    %243 = arith.mulf %241, %242 : vector<8x256xf32>
    %244 = tpu.concatenate %221, %224, %227, %230, %231, %234, %237, %240, %243, %8 in 0 : vector<8x256xf32>, vector<8x256xf32>, vector<8x256xf32>, vector<8x256xf32>, vector<8x256xf32>, vector<8x256xf32>, vector<8x256xf32>, vector<8x256xf32>, vector<8x256xf32>, vector<8x256xf32> -> vector<80x256xf32>
    %245 = arith.truncf %244 : vector<80x256xf32> to vector<80x256xbf16>
    %c5_76 = arith.constant 5 : index
    %c0_77 = arith.constant 0 : index
    %c0_78 = arith.constant 0 : index
    %246 = vector.load %arg9[%c5_76, %c0_77, %c0_78] : memref<8x80x256xbf16, #tpu.memory_space<vmem>>, vector<1x80x256xbf16>
    %247 = vector.shape_cast %246 : vector<1x80x256xbf16> to vector<80x256xbf16>
    %248 = vector.shape_cast %245 : vector<80x256xbf16> to vector<1x80x256xbf16>
    tpu.vector_store %arg9[%c5_76, %c0_77, %c0_78], %248 {strides = array<i32>} : memref<8x80x256xbf16, #tpu.memory_space<vmem>>, vector<1x80x256xbf16>,
    %c0_79 = arith.constant 0 : index
    %c6_80 = arith.constant 6 : index
    %c0_81 = arith.constant 0 : index
    %c0_82 = arith.constant 0 : index
    %249 = vector.load %arg1[%c0_79, %c6_80, %c0_81, %c0_82] : memref<1x8x8x290xf32, #tpu.memory_space<vmem>>, vector<1x1x8x290xf32>
    %250 = vector.shape_cast %249 : vector<1x1x8x290xf32> to vector<8x290xf32>
    %c0_83 = arith.constant 0 : index
    %c0_84 = arith.constant 0 : index
    %251 = vector.load %arg2[%c0_83, %c0_84] : memref<8x1xf32, #tpu.memory_space<vmem>>, vector<8x1xf32>
    %252 = vector.broadcast %251 : vector<8x1xf32> to vector<8x290xf32>
    %253 = arith.mulf %250, %252 : vector<8x290xf32>
    %c0_85 = arith.constant 0 : index
    %c0_86 = arith.constant 0 : index
    %254 = vector.load %arg3[%c0_85, %c0_86] : memref<8x1xf32, #tpu.memory_space<vmem>>, vector<8x1xf32>
    %255 = vector.broadcast %254 : vector<8x1xf32> to vector<8x290xf32>
    %256 = arith.addf %253, %255 : vector<8x290xf32>
    %cst_87 = arith.constant 0.000000e+00 : f32
    %257 = vector.broadcast %cst_87 : f32 to vector<8x290xf32>
    %258 = arith.maximumf %256, %257 : vector<8x290xf32>
    %259 = vector.extract_strided_slice %258 {offsets = [0, 0], sizes = [8, 256], strides = [1, 1]} : vector<8x290xf32> to vector<8x256xf32>
    %260 = vector.broadcast %0 : vector<1x256xf32> to vector<8x256xf32>
    %261 = arith.mulf %259, %260 : vector<8x256xf32>
    %262 = vector.extract_strided_slice %258 {offsets = [0, 1], sizes = [8, 256], strides = [1, 1]} : vector<8x290xf32> to vector<8x256xf32>
    %263 = vector.broadcast %1 : vector<1x256xf32> to vector<8x256xf32>
    %264 = arith.mulf %262, %263 : vector<8x256xf32>
    %265 = vector.extract_strided_slice %258 {offsets = [0, 2], sizes = [8, 256], strides = [1, 1]} : vector<8x290xf32> to vector<8x256xf32>
    %266 = vector.broadcast %2 : vector<1x256xf32> to vector<8x256xf32>
    %267 = arith.mulf %265, %266 : vector<8x256xf32>
    %268 = vector.extract_strided_slice %258 {offsets = [0, 16], sizes = [8, 256], strides = [1, 1]} : vector<8x290xf32> to vector<8x256xf32>
    %269 = vector.broadcast %3 : vector<1x256xf32> to vector<8x256xf32>
    %270 = arith.mulf %268, %269 : vector<8x256xf32>
    %271 = vector.extract_strided_slice %258 {offsets = [0, 17], sizes = [8, 256], strides = [1, 1]} : vector<8x290xf32> to vector<8x256xf32>
    %272 = vector.extract_strided_slice %258 {offsets = [0, 18], sizes = [8, 256], strides = [1, 1]} : vector<8x290xf32> to vector<8x256xf32>
    %273 = vector.broadcast %4 : vector<1x256xf32> to vector<8x256xf32>
    %274 = arith.mulf %272, %273 : vector<8x256xf32>
    %275 = vector.extract_strided_slice %258 {offsets = [0, 32], sizes = [8, 256], strides = [1, 1]} : vector<8x290xf32> to vector<8x256xf32>
    %276 = vector.broadcast %5 : vector<1x256xf32> to vector<8x256xf32>
    %277 = arith.mulf %275, %276 : vector<8x256xf32>
    %278 = vector.extract_strided_slice %258 {offsets = [0, 33], sizes = [8, 256], strides = [1, 1]} : vector<8x290xf32> to vector<8x256xf32>
    %279 = vector.broadcast %6 : vector<1x256xf32> to vector<8x256xf32>
    %280 = arith.mulf %278, %279 : vector<8x256xf32>
    %281 = vector.extract_strided_slice %258 {offsets = [0, 34], sizes = [8, 256], strides = [1, 1]} : vector<8x290xf32> to vector<8x256xf32>
    %282 = vector.broadcast %7 : vector<1x256xf32> to vector<8x256xf32>
    %283 = arith.mulf %281, %282 : vector<8x256xf32>
    %284 = tpu.concatenate %261, %264, %267, %270, %271, %274, %277, %280, %283, %8 in 0 : vector<8x256xf32>, vector<8x256xf32>, vector<8x256xf32>, vector<8x256xf32>, vector<8x256xf32>, vector<8x256xf32>, vector<8x256xf32>, vector<8x256xf32>, vector<8x256xf32>, vector<8x256xf32> -> vector<80x256xf32>
    %285 = arith.truncf %284 : vector<80x256xf32> to vector<80x256xbf16>
    %c6_88 = arith.constant 6 : index
    %c0_89 = arith.constant 0 : index
    %c0_90 = arith.constant 0 : index
    %286 = vector.load %arg9[%c6_88, %c0_89, %c0_90] : memref<8x80x256xbf16, #tpu.memory_space<vmem>>, vector<1x80x256xbf16>
    %287 = vector.shape_cast %286 : vector<1x80x256xbf16> to vector<80x256xbf16>
    %288 = vector.shape_cast %285 : vector<80x256xbf16> to vector<1x80x256xbf16>
    tpu.vector_store %arg9[%c6_88, %c0_89, %c0_90], %288 {strides = array<i32>} : memref<8x80x256xbf16, #tpu.memory_space<vmem>>, vector<1x80x256xbf16>,
    %c0_91 = arith.constant 0 : index
    %c7_92 = arith.constant 7 : index
    %c0_93 = arith.constant 0 : index
    %c0_94 = arith.constant 0 : index
    %289 = vector.load %arg1[%c0_91, %c7_92, %c0_93, %c0_94] : memref<1x8x8x290xf32, #tpu.memory_space<vmem>>, vector<1x1x8x290xf32>
    %290 = vector.shape_cast %289 : vector<1x1x8x290xf32> to vector<8x290xf32>
    %c0_95 = arith.constant 0 : index
    %c0_96 = arith.constant 0 : index
    %291 = vector.load %arg2[%c0_95, %c0_96] : memref<8x1xf32, #tpu.memory_space<vmem>>, vector<8x1xf32>
    %292 = vector.broadcast %291 : vector<8x1xf32> to vector<8x290xf32>
    %293 = arith.mulf %290, %292 : vector<8x290xf32>
    %c0_97 = arith.constant 0 : index
    %c0_98 = arith.constant 0 : index
    %294 = vector.load %arg3[%c0_97, %c0_98] : memref<8x1xf32, #tpu.memory_space<vmem>>, vector<8x1xf32>
    %295 = vector.broadcast %294 : vector<8x1xf32> to vector<8x290xf32>
    %296 = arith.addf %293, %295 : vector<8x290xf32>
    %cst_99 = arith.constant 0.000000e+00 : f32
    %297 = vector.broadcast %cst_99 : f32 to vector<8x290xf32>
    %298 = arith.maximumf %296, %297 : vector<8x290xf32>
    %299 = vector.extract_strided_slice %298 {offsets = [0, 0], sizes = [8, 256], strides = [1, 1]} : vector<8x290xf32> to vector<8x256xf32>
    %300 = vector.broadcast %0 : vector<1x256xf32> to vector<8x256xf32>
    %301 = arith.mulf %299, %300 : vector<8x256xf32>
    %302 = vector.extract_strided_slice %298 {offsets = [0, 1], sizes = [8, 256], strides = [1, 1]} : vector<8x290xf32> to vector<8x256xf32>
    %303 = vector.broadcast %1 : vector<1x256xf32> to vector<8x256xf32>
    %304 = arith.mulf %302, %303 : vector<8x256xf32>
    %305 = vector.extract_strided_slice %298 {offsets = [0, 2], sizes = [8, 256], strides = [1, 1]} : vector<8x290xf32> to vector<8x256xf32>
    %306 = vector.broadcast %2 : vector<1x256xf32> to vector<8x256xf32>
    %307 = arith.mulf %305, %306 : vector<8x256xf32>
    %308 = vector.extract_strided_slice %298 {offsets = [0, 16], sizes = [8, 256], strides = [1, 1]} : vector<8x290xf32> to vector<8x256xf32>
    %309 = vector.broadcast %3 : vector<1x256xf32> to vector<8x256xf32>
    %310 = arith.mulf %308, %309 : vector<8x256xf32>
    %311 = vector.extract_strided_slice %298 {offsets = [0, 17], sizes = [8, 256], strides = [1, 1]} : vector<8x290xf32> to vector<8x256xf32>
    %312 = vector.extract_strided_slice %298 {offsets = [0, 18], sizes = [8, 256], strides = [1, 1]} : vector<8x290xf32> to vector<8x256xf32>
    %313 = vector.broadcast %4 : vector<1x256xf32> to vector<8x256xf32>
    %314 = arith.mulf %312, %313 : vector<8x256xf32>
    %315 = vector.extract_strided_slice %298 {offsets = [0, 32], sizes = [8, 256], strides = [1, 1]} : vector<8x290xf32> to vector<8x256xf32>
    %316 = vector.broadcast %5 : vector<1x256xf32> to vector<8x256xf32>
    %317 = arith.mulf %315, %316 : vector<8x256xf32>
    %318 = vector.extract_strided_slice %298 {offsets = [0, 33], sizes = [8, 256], strides = [1, 1]} : vector<8x290xf32> to vector<8x256xf32>
    %319 = vector.broadcast %6 : vector<1x256xf32> to vector<8x256xf32>
    %320 = arith.mulf %318, %319 : vector<8x256xf32>
    %321 = vector.extract_strided_slice %298 {offsets = [0, 34], sizes = [8, 256], strides = [1, 1]} : vector<8x290xf32> to vector<8x256xf32>
    %322 = vector.broadcast %7 : vector<1x256xf32> to vector<8x256xf32>
    %323 = arith.mulf %321, %322 : vector<8x256xf32>
    %324 = tpu.concatenate %301, %304, %307, %310, %311, %314, %317, %320, %323, %8 in 0 : vector<8x256xf32>, vector<8x256xf32>, vector<8x256xf32>, vector<8x256xf32>, vector<8x256xf32>, vector<8x256xf32>, vector<8x256xf32>, vector<8x256xf32>, vector<8x256xf32>, vector<8x256xf32> -> vector<80x256xf32>
    %325 = arith.truncf %324 : vector<80x256xf32> to vector<80x256xbf16>
    %c7_100 = arith.constant 7 : index
    %c0_101 = arith.constant 0 : index
    %c0_102 = arith.constant 0 : index
    %326 = vector.load %arg9[%c7_100, %c0_101, %c0_102] : memref<8x80x256xbf16, #tpu.memory_space<vmem>>, vector<1x80x256xbf16>
    %327 = vector.shape_cast %326 : vector<1x80x256xbf16> to vector<80x256xbf16>
    %328 = vector.shape_cast %325 : vector<80x256xbf16> to vector<1x80x256xbf16>
    tpu.vector_store %arg9[%c7_100, %c0_101, %c0_102], %328 {strides = array<i32>} : memref<8x80x256xbf16, #tpu.memory_space<vmem>>, vector<1x80x256xbf16>,
    %c0_103 = arith.constant 0 : index
    %c0_104 = arith.constant 0 : index
    %c0_105 = arith.constant 0 : index
    %329 = vector.load %arg4[%c0_103, %c0_104, %c0_105] : memref<8x32x80xbf16, #tpu.memory_space<vmem>>, vector<1x32x80xbf16>
    %330 = vector.shape_cast %329 : vector<1x32x80xbf16> to vector<32x80xbf16>
    %c0_106 = arith.constant 0 : index
    %c0_107 = arith.constant 0 : index
    %c0_108 = arith.constant 0 : index
    %331 = vector.load %arg9[%c0_106, %c0_107, %c0_108] : memref<8x80x256xbf16, #tpu.memory_space<vmem>>, vector<1x80x256xbf16>
    %332 = vector.shape_cast %331 : vector<1x80x256xbf16> to vector<80x256xbf16>
    %cst_109 = arith.constant dense<0.000000e+00> : vector<32x256xf32>
    %333 = tpu.matmul %330, %332, %cst_109 {dimension_numbers = #tpu.dot_dimension_numbers<[1], [0], [0], [1], [0, 0, 1, 1], [], []>} : vector<32x80xbf16>, vector<80x256xbf16>, vector<32x256xf32> -> vector<32x256xf32>
    %334 = vector.extract_strided_slice %333 {offsets = [0, 0], sizes = [8, 256], strides = [1, 1]} : vector<32x256xf32> to vector<8x256xf32>
    %c0_110 = arith.constant 0 : index
    %c0_111 = arith.constant 0 : index
    %335 = vector.load %arg10[%c0_110, %c0_111] : memref<64x256xf32, #tpu.memory_space<vmem>>, vector<8x256xf32>
    tpu.vector_store %arg10[%c0_110, %c0_111], %334 {strides = array<i32>} : memref<64x256xf32, #tpu.memory_space<vmem>>, vector<8x256xf32>,
    %336 = vector.extract_strided_slice %333 {offsets = [8, 0], sizes = [8, 256], strides = [1, 1]} : vector<32x256xf32> to vector<8x256xf32>
    %c32 = arith.constant 32 : index
    %c0_112 = arith.constant 0 : index
    %337 = vector.load %arg10[%c32, %c0_112] : memref<64x256xf32, #tpu.memory_space<vmem>>, vector<8x256xf32>
    tpu.vector_store %arg10[%c32, %c0_112], %336 {strides = array<i32>} : memref<64x256xf32, #tpu.memory_space<vmem>>, vector<8x256xf32>,
    %338 = vector.extract_strided_slice %333 {offsets = [16, 0], sizes = [8, 256], strides = [1, 1]} : vector<32x256xf32> to vector<8x256xf32>
    %c56 = arith.constant 56 : index
    %c0_113 = arith.constant 0 : index
    %339 = vector.load %arg10[%c56, %c0_113] : memref<64x256xf32, #tpu.memory_space<vmem>>, vector<8x256xf32>
    tpu.vector_store %arg10[%c56, %c0_113], %338 {strides = array<i32>} : memref<64x256xf32, #tpu.memory_space<vmem>>, vector<8x256xf32>,
    %c1_114 = arith.constant 1 : index
    %c0_115 = arith.constant 0 : index
    %c0_116 = arith.constant 0 : index
    %340 = vector.load %arg4[%c1_114, %c0_115, %c0_116] : memref<8x32x80xbf16, #tpu.memory_space<vmem>>, vector<1x32x80xbf16>
    %341 = vector.shape_cast %340 : vector<1x32x80xbf16> to vector<32x80xbf16>
    %c1_117 = arith.constant 1 : index
    %c0_118 = arith.constant 0 : index
    %c0_119 = arith.constant 0 : index
    %342 = vector.load %arg9[%c1_117, %c0_118, %c0_119] : memref<8x80x256xbf16, #tpu.memory_space<vmem>>, vector<1x80x256xbf16>
    %343 = vector.shape_cast %342 : vector<1x80x256xbf16> to vector<80x256xbf16>
    %cst_120 = arith.constant dense<0.000000e+00> : vector<32x256xf32>
    %344 = tpu.matmul %341, %343, %cst_120 {dimension_numbers = #tpu.dot_dimension_numbers<[1], [0], [0], [1], [0, 0, 1, 1], [], []>} : vector<32x80xbf16>, vector<80x256xbf16>, vector<32x256xf32> -> vector<32x256xf32>
    %345 = vector.extract_strided_slice %344 {offsets = [0, 0], sizes = [8, 256], strides = [1, 1]} : vector<32x256xf32> to vector<8x256xf32>
    %c0_121 = arith.constant 0 : index
    %c0_122 = arith.constant 0 : index
    %346 = vector.load %arg10[%c0_121, %c0_122] : memref<64x256xf32, #tpu.memory_space<vmem>>, vector<8x256xf32>
    %347 = arith.addf %346, %345 : vector<8x256xf32>
    %c0_123 = arith.constant 0 : index
    %c0_124 = arith.constant 0 : index
    %348 = vector.load %arg10[%c0_123, %c0_124] : memref<64x256xf32, #tpu.memory_space<vmem>>, vector<8x256xf32>
    tpu.vector_store %arg10[%c0_123, %c0_124], %347 {strides = array<i32>} : memref<64x256xf32, #tpu.memory_space<vmem>>, vector<8x256xf32>,
    %349 = vector.extract_strided_slice %344 {offsets = [8, 0], sizes = [8, 256], strides = [1, 1]} : vector<32x256xf32> to vector<8x256xf32>
    %c32_125 = arith.constant 32 : index
    %c0_126 = arith.constant 0 : index
    %350 = vector.load %arg10[%c32_125, %c0_126] : memref<64x256xf32, #tpu.memory_space<vmem>>, vector<8x256xf32>
    %351 = arith.addf %350, %349 : vector<8x256xf32>
    %c32_127 = arith.constant 32 : index
    %c0_128 = arith.constant 0 : index
    %352 = vector.load %arg10[%c32_127, %c0_128] : memref<64x256xf32, #tpu.memory_space<vmem>>, vector<8x256xf32>
    tpu.vector_store %arg10[%c32_127, %c0_128], %351 {strides = array<i32>} : memref<64x256xf32, #tpu.memory_space<vmem>>, vector<8x256xf32>,
    %353 = vector.extract_strided_slice %344 {offsets = [16, 0], sizes = [8, 256], strides = [1, 1]} : vector<32x256xf32> to vector<8x256xf32>
    %c56_129 = arith.constant 56 : index
    %c0_130 = arith.constant 0 : index
    %354 = vector.load %arg10[%c56_129, %c0_130] : memref<64x256xf32, #tpu.memory_space<vmem>>, vector<8x256xf32>
    %355 = arith.addf %354, %353 : vector<8x256xf32>
    %c56_131 = arith.constant 56 : index
    %c0_132 = arith.constant 0 : index
    %356 = vector.load %arg10[%c56_131, %c0_132] : memref<64x256xf32, #tpu.memory_space<vmem>>, vector<8x256xf32>
    tpu.vector_store %arg10[%c56_131, %c0_132], %355 {strides = array<i32>} : memref<64x256xf32, #tpu.memory_space<vmem>>, vector<8x256xf32>,
    %c2_133 = arith.constant 2 : index
    %c0_134 = arith.constant 0 : index
    %c0_135 = arith.constant 0 : index
    %357 = vector.load %arg4[%c2_133, %c0_134, %c0_135] : memref<8x32x80xbf16, #tpu.memory_space<vmem>>, vector<1x32x80xbf16>
    %358 = vector.shape_cast %357 : vector<1x32x80xbf16> to vector<32x80xbf16>
    %c2_136 = arith.constant 2 : index
    %c0_137 = arith.constant 0 : index
    %c0_138 = arith.constant 0 : index
    %359 = vector.load %arg9[%c2_136, %c0_137, %c0_138] : memref<8x80x256xbf16, #tpu.memory_space<vmem>>, vector<1x80x256xbf16>
    %360 = vector.shape_cast %359 : vector<1x80x256xbf16> to vector<80x256xbf16>
    %cst_139 = arith.constant dense<0.000000e+00> : vector<32x256xf32>
    %361 = tpu.matmul %358, %360, %cst_139 {dimension_numbers = #tpu.dot_dimension_numbers<[1], [0], [0], [1], [0, 0, 1, 1], [], []>} : vector<32x80xbf16>, vector<80x256xbf16>, vector<32x256xf32> -> vector<32x256xf32>
    %362 = vector.extract_strided_slice %361 {offsets = [0, 0], sizes = [8, 256], strides = [1, 1]} : vector<32x256xf32> to vector<8x256xf32>
    %c8_140 = arith.constant 8 : index
    %c0_141 = arith.constant 0 : index
    %363 = vector.load %arg10[%c8_140, %c0_141] : memref<64x256xf32, #tpu.memory_space<vmem>>, vector<8x256xf32>
    tpu.vector_store %arg10[%c8_140, %c0_141], %362 {strides = array<i32>} : memref<64x256xf32, #tpu.memory_space<vmem>>, vector<8x256xf32>,
    %364 = vector.extract_strided_slice %361 {offsets = [8, 0], sizes = [8, 256], strides = [1, 1]} : vector<32x256xf32> to vector<8x256xf32>
    %c40 = arith.constant 40 : index
    %c0_142 = arith.constant 0 : index
    %365 = vector.load %arg10[%c40, %c0_142] : memref<64x256xf32, #tpu.memory_space<vmem>>, vector<8x256xf32>
    tpu.vector_store %arg10[%c40, %c0_142], %364 {strides = array<i32>} : memref<64x256xf32, #tpu.memory_space<vmem>>, vector<8x256xf32>,
    %366 = vector.extract_strided_slice %361 {offsets = [16, 0], sizes = [8, 256], strides = [1, 1]} : vector<32x256xf32> to vector<8x256xf32>
    %c32_143 = arith.constant 32 : index
    %c0_144 = arith.constant 0 : index
    %367 = vector.load %arg10[%c32_143, %c0_144] : memref<64x256xf32, #tpu.memory_space<vmem>>, vector<8x256xf32>
    %368 = arith.addf %367, %366 : vector<8x256xf32>
    %c32_145 = arith.constant 32 : index
    %c0_146 = arith.constant 0 : index
    %369 = vector.load %arg10[%c32_145, %c0_146] : memref<64x256xf32, #tpu.memory_space<vmem>>, vector<8x256xf32>
    tpu.vector_store %arg10[%c32_145, %c0_146], %368 {strides = array<i32>} : memref<64x256xf32, #tpu.memory_space<vmem>>, vector<8x256xf32>,
    %370 = vector.extract_strided_slice %361 {offsets = [24, 0], sizes = [8, 256], strides = [1, 1]} : vector<32x256xf32> to vector<8x256xf32>
    %c56_147 = arith.constant 56 : index
    %c0_148 = arith.constant 0 : index
    %371 = vector.load %arg10[%c56_147, %c0_148] : memref<64x256xf32, #tpu.memory_space<vmem>>, vector<8x256xf32>
    %372 = arith.addf %371, %370 : vector<8x256xf32>
    %c56_149 = arith.constant 56 : index
    %c0_150 = arith.constant 0 : index
    %373 = vector.load %arg10[%c56_149, %c0_150] : memref<64x256xf32, #tpu.memory_space<vmem>>, vector<8x256xf32>
    tpu.vector_store %arg10[%c56_149, %c0_150], %372 {strides = array<i32>} : memref<64x256xf32, #tpu.memory_space<vmem>>, vector<8x256xf32>,
    %c3_151 = arith.constant 3 : index
    %c0_152 = arith.constant 0 : index
    %c0_153 = arith.constant 0 : index
    %374 = vector.load %arg4[%c3_151, %c0_152, %c0_153] : memref<8x32x80xbf16, #tpu.memory_space<vmem>>, vector<1x32x80xbf16>
    %375 = vector.shape_cast %374 : vector<1x32x80xbf16> to vector<32x80xbf16>
    %c3_154 = arith.constant 3 : index
    %c0_155 = arith.constant 0 : index
    %c0_156 = arith.constant 0 : index
    %376 = vector.load %arg9[%c3_154, %c0_155, %c0_156] : memref<8x80x256xbf16, #tpu.memory_space<vmem>>, vector<1x80x256xbf16>
    %377 = vector.shape_cast %376 : vector<1x80x256xbf16> to vector<80x256xbf16>
    %cst_157 = arith.constant dense<0.000000e+00> : vector<32x256xf32>
    %378 = tpu.matmul %375, %377, %cst_157 {dimension_numbers = #tpu.dot_dimension_numbers<[1], [0], [0], [1], [0, 0, 1, 1], [], []>} : vector<32x80xbf16>, vector<80x256xbf16>, vector<32x256xf32> -> vector<32x256xf32>
    %379 = vector.extract_strided_slice %378 {offsets = [0, 0], sizes = [8, 256], strides = [1, 1]} : vector<32x256xf32> to vector<8x256xf32>
    %c8_158 = arith.constant 8 : index
    %c0_159 = arith.constant 0 : index
    %380 = vector.load %arg10[%c8_158, %c0_159] : memref<64x256xf32, #tpu.memory_space<vmem>>, vector<8x256xf32>
    %381 = arith.addf %380, %379 : vector<8x256xf32>
    %c8_160 = arith.constant 8 : index
    %c0_161 = arith.constant 0 : index
    %382 = vector.load %arg10[%c8_160, %c0_161] : memref<64x256xf32, #tpu.memory_space<vmem>>, vector<8x256xf32>
    tpu.vector_store %arg10[%c8_160, %c0_161], %381 {strides = array<i32>} : memref<64x256xf32, #tpu.memory_space<vmem>>, vector<8x256xf32>,
    %383 = vector.extract_strided_slice %378 {offsets = [8, 0], sizes = [8, 256], strides = [1, 1]} : vector<32x256xf32> to vector<8x256xf32>
    %c40_162 = arith.constant 40 : index
    %c0_163 = arith.constant 0 : index
    %384 = vector.load %arg10[%c40_162, %c0_163] : memref<64x256xf32, #tpu.memory_space<vmem>>, vector<8x256xf32>
    %385 = arith.addf %384, %383 : vector<8x256xf32>
    %c40_164 = arith.constant 40 : index
    %c0_165 = arith.constant 0 : index
    %386 = vector.load %arg10[%c40_164, %c0_165] : memref<64x256xf32, #tpu.memory_space<vmem>>, vector<8x256xf32>
    tpu.vector_store %arg10[%c40_164, %c0_165], %385 {strides = array<i32>} : memref<64x256xf32, #tpu.memory_space<vmem>>, vector<8x256xf32>,
    %387 = vector.extract_strided_slice %378 {offsets = [16, 0], sizes = [8, 256], strides = [1, 1]} : vector<32x256xf32> to vector<8x256xf32>
    %c32_166 = arith.constant 32 : index
    %c0_167 = arith.constant 0 : index
    %388 = vector.load %arg10[%c32_166, %c0_167] : memref<64x256xf32, #tpu.memory_space<vmem>>, vector<8x256xf32>
    %389 = arith.addf %388, %387 : vector<8x256xf32>
    %c32_168 = arith.constant 32 : index
    %c0_169 = arith.constant 0 : index
    %390 = vector.load %arg10[%c32_168, %c0_169] : memref<64x256xf32, #tpu.memory_space<vmem>>, vector<8x256xf32>
    tpu.vector_store %arg10[%c32_168, %c0_169], %389 {strides = array<i32>} : memref<64x256xf32, #tpu.memory_space<vmem>>, vector<8x256xf32>,
    %391 = vector.extract_strided_slice %378 {offsets = [24, 0], sizes = [8, 256], strides = [1, 1]} : vector<32x256xf32> to vector<8x256xf32>
    %c56_170 = arith.constant 56 : index
    %c0_171 = arith.constant 0 : index
    %392 = vector.load %arg10[%c56_170, %c0_171] : memref<64x256xf32, #tpu.memory_space<vmem>>, vector<8x256xf32>
    %393 = arith.addf %392, %391 : vector<8x256xf32>
    %c56_172 = arith.constant 56 : index
    %c0_173 = arith.constant 0 : index
    %394 = vector.load %arg10[%c56_172, %c0_173] : memref<64x256xf32, #tpu.memory_space<vmem>>, vector<8x256xf32>
    tpu.vector_store %arg10[%c56_172, %c0_173], %393 {strides = array<i32>} : memref<64x256xf32, #tpu.memory_space<vmem>>, vector<8x256xf32>,
    %c4_174 = arith.constant 4 : index
    %c0_175 = arith.constant 0 : index
    %c0_176 = arith.constant 0 : index
    %395 = vector.load %arg4[%c4_174, %c0_175, %c0_176] : memref<8x32x80xbf16, #tpu.memory_space<vmem>>, vector<1x32x80xbf16>
    %396 = vector.shape_cast %395 : vector<1x32x80xbf16> to vector<32x80xbf16>
    %c4_177 = arith.constant 4 : index
    %c0_178 = arith.constant 0 : index
    %c0_179 = arith.constant 0 : index
    %397 = vector.load %arg9[%c4_177, %c0_178, %c0_179] : memref<8x80x256xbf16, #tpu.memory_space<vmem>>, vector<1x80x256xbf16>
    %398 = vector.shape_cast %397 : vector<1x80x256xbf16> to vector<80x256xbf16>
    %cst_180 = arith.constant dense<0.000000e+00> : vector<32x256xf32>
    %399 = tpu.matmul %396, %398, %cst_180 {dimension_numbers = #tpu.dot_dimension_numbers<[1], [0], [0], [1], [0, 0, 1, 1], [], []>} : vector<32x80xbf16>, vector<80x256xbf16>, vector<32x256xf32> -> vector<32x256xf32>
    %400 = vector.extract_strided_slice %399 {offsets = [0, 0], sizes = [8, 256], strides = [1, 1]} : vector<32x256xf32> to vector<8x256xf32>
    %c16 = arith.constant 16 : index
    %c0_181 = arith.constant 0 : index
    %401 = vector.load %arg10[%c16, %c0_181] : memref<64x256xf32, #tpu.memory_space<vmem>>, vector<8x256xf32>
    tpu.vector_store %arg10[%c16, %c0_181], %400 {strides = array<i32>} : memref<64x256xf32, #tpu.memory_space<vmem>>, vector<8x256xf32>,
    %402 = vector.extract_strided_slice %399 {offsets = [8, 0], sizes = [8, 256], strides = [1, 1]} : vector<32x256xf32> to vector<8x256xf32>
    %c48 = arith.constant 48 : index
    %c0_182 = arith.constant 0 : index
    %403 = vector.load %arg10[%c48, %c0_182] : memref<64x256xf32, #tpu.memory_space<vmem>>, vector<8x256xf32>
    tpu.vector_store %arg10[%c48, %c0_182], %402 {strides = array<i32>} : memref<64x256xf32, #tpu.memory_space<vmem>>, vector<8x256xf32>,
    %404 = vector.extract_strided_slice %399 {offsets = [16, 0], sizes = [8, 256], strides = [1, 1]} : vector<32x256xf32> to vector<8x256xf32>
    %c40_183 = arith.constant 40 : index
    %c0_184 = arith.constant 0 : index
    %405 = vector.load %arg10[%c40_183, %c0_184] : memref<64x256xf32, #tpu.memory_space<vmem>>, vector<8x256xf32>
    %406 = arith.addf %405, %404 : vector<8x256xf32>
    %c40_185 = arith.constant 40 : index
    %c0_186 = arith.constant 0 : index
    %407 = vector.load %arg10[%c40_185, %c0_186] : memref<64x256xf32, #tpu.memory_space<vmem>>, vector<8x256xf32>
    tpu.vector_store %arg10[%c40_185, %c0_186], %406 {strides = array<i32>} : memref<64x256xf32, #tpu.memory_space<vmem>>, vector<8x256xf32>,
    %408 = vector.extract_strided_slice %399 {offsets = [24, 0], sizes = [8, 256], strides = [1, 1]} : vector<32x256xf32> to vector<8x256xf32>
    %c56_187 = arith.constant 56 : index
    %c0_188 = arith.constant 0 : index
    %409 = vector.load %arg10[%c56_187, %c0_188] : memref<64x256xf32, #tpu.memory_space<vmem>>, vector<8x256xf32>
    %410 = arith.addf %409, %408 : vector<8x256xf32>
    %c56_189 = arith.constant 56 : index
    %c0_190 = arith.constant 0 : index
    %411 = vector.load %arg10[%c56_189, %c0_190] : memref<64x256xf32, #tpu.memory_space<vmem>>, vector<8x256xf32>
    tpu.vector_store %arg10[%c56_189, %c0_190], %410 {strides = array<i32>} : memref<64x256xf32, #tpu.memory_space<vmem>>, vector<8x256xf32>,
    %c5_191 = arith.constant 5 : index
    %c0_192 = arith.constant 0 : index
    %c0_193 = arith.constant 0 : index
    %412 = vector.load %arg4[%c5_191, %c0_192, %c0_193] : memref<8x32x80xbf16, #tpu.memory_space<vmem>>, vector<1x32x80xbf16>
    %413 = vector.shape_cast %412 : vector<1x32x80xbf16> to vector<32x80xbf16>
    %c5_194 = arith.constant 5 : index
    %c0_195 = arith.constant 0 : index
    %c0_196 = arith.constant 0 : index
    %414 = vector.load %arg9[%c5_194, %c0_195, %c0_196] : memref<8x80x256xbf16, #tpu.memory_space<vmem>>, vector<1x80x256xbf16>
    %415 = vector.shape_cast %414 : vector<1x80x256xbf16> to vector<80x256xbf16>
    %cst_197 = arith.constant dense<0.000000e+00> : vector<32x256xf32>
    %416 = tpu.matmul %413, %415, %cst_197 {dimension_numbers = #tpu.dot_dimension_numbers<[1], [0], [0], [1], [0, 0, 1, 1], [], []>} : vector<32x80xbf16>, vector<80x256xbf16>, vector<32x256xf32> -> vector<32x256xf32>
    %417 = vector.extract_strided_slice %416 {offsets = [0, 0], sizes = [8, 256], strides = [1, 1]} : vector<32x256xf32> to vector<8x256xf32>
    %c16_198 = arith.constant 16 : index
    %c0_199 = arith.constant 0 : index
    %418 = vector.load %arg10[%c16_198, %c0_199] : memref<64x256xf32, #tpu.memory_space<vmem>>, vector<8x256xf32>
    %419 = arith.addf %418, %417 : vector<8x256xf32>
    %c16_200 = arith.constant 16 : index
    %c0_201 = arith.constant 0 : index
    %420 = vector.load %arg10[%c16_200, %c0_201] : memref<64x256xf32, #tpu.memory_space<vmem>>, vector<8x256xf32>
    tpu.vector_store %arg10[%c16_200, %c0_201], %419 {strides = array<i32>} : memref<64x256xf32, #tpu.memory_space<vmem>>, vector<8x256xf32>,
    %421 = vector.extract_strided_slice %416 {offsets = [8, 0], sizes = [8, 256], strides = [1, 1]} : vector<32x256xf32> to vector<8x256xf32>
    %c48_202 = arith.constant 48 : index
    %c0_203 = arith.constant 0 : index
    %422 = vector.load %arg10[%c48_202, %c0_203] : memref<64x256xf32, #tpu.memory_space<vmem>>, vector<8x256xf32>
    %423 = arith.addf %422, %421 : vector<8x256xf32>
    %c48_204 = arith.constant 48 : index
    %c0_205 = arith.constant 0 : index
    %424 = vector.load %arg10[%c48_204, %c0_205] : memref<64x256xf32, #tpu.memory_space<vmem>>, vector<8x256xf32>
    tpu.vector_store %arg10[%c48_204, %c0_205], %423 {strides = array<i32>} : memref<64x256xf32, #tpu.memory_space<vmem>>, vector<8x256xf32>,
    %425 = vector.extract_strided_slice %416 {offsets = [16, 0], sizes = [8, 256], strides = [1, 1]} : vector<32x256xf32> to vector<8x256xf32>
    %c40_206 = arith.constant 40 : index
    %c0_207 = arith.constant 0 : index
    %426 = vector.load %arg10[%c40_206, %c0_207] : memref<64x256xf32, #tpu.memory_space<vmem>>, vector<8x256xf32>
    %427 = arith.addf %426, %425 : vector<8x256xf32>
    %c40_208 = arith.constant 40 : index
    %c0_209 = arith.constant 0 : index
    %428 = vector.load %arg10[%c40_208, %c0_209] : memref<64x256xf32, #tpu.memory_space<vmem>>, vector<8x256xf32>
    tpu.vector_store %arg10[%c40_208, %c0_209], %427 {strides = array<i32>} : memref<64x256xf32, #tpu.memory_space<vmem>>, vector<8x256xf32>,
    %429 = vector.extract_strided_slice %416 {offsets = [24, 0], sizes = [8, 256], strides = [1, 1]} : vector<32x256xf32> to vector<8x256xf32>
    %c56_210 = arith.constant 56 : index
    %c0_211 = arith.constant 0 : index
    %430 = vector.load %arg10[%c56_210, %c0_211] : memref<64x256xf32, #tpu.memory_space<vmem>>, vector<8x256xf32>
    %431 = arith.addf %430, %429 : vector<8x256xf32>
    %c56_212 = arith.constant 56 : index
    %c0_213 = arith.constant 0 : index
    %432 = vector.load %arg10[%c56_212, %c0_213] : memref<64x256xf32, #tpu.memory_space<vmem>>, vector<8x256xf32>
    tpu.vector_store %arg10[%c56_212, %c0_213], %431 {strides = array<i32>} : memref<64x256xf32, #tpu.memory_space<vmem>>, vector<8x256xf32>,
    %c6_214 = arith.constant 6 : index
    %c0_215 = arith.constant 0 : index
    %c0_216 = arith.constant 0 : index
    %433 = vector.load %arg4[%c6_214, %c0_215, %c0_216] : memref<8x32x80xbf16, #tpu.memory_space<vmem>>, vector<1x32x80xbf16>
    %434 = vector.shape_cast %433 : vector<1x32x80xbf16> to vector<32x80xbf16>
    %c6_217 = arith.constant 6 : index
    %c0_218 = arith.constant 0 : index
    %c0_219 = arith.constant 0 : index
    %435 = vector.load %arg9[%c6_217, %c0_218, %c0_219] : memref<8x80x256xbf16, #tpu.memory_space<vmem>>, vector<1x80x256xbf16>
    %436 = vector.shape_cast %435 : vector<1x80x256xbf16> to vector<80x256xbf16>
    %cst_220 = arith.constant dense<0.000000e+00> : vector<32x256xf32>
    %437 = tpu.matmul %434, %436, %cst_220 {dimension_numbers = #tpu.dot_dimension_numbers<[1], [0], [0], [1], [0, 0, 1, 1], [], []>} : vector<32x80xbf16>, vector<80x256xbf16>, vector<32x256xf32> -> vector<32x256xf32>
    %438 = vector.extract_strided_slice %437 {offsets = [0, 0], sizes = [8, 256], strides = [1, 1]} : vector<32x256xf32> to vector<8x256xf32>
    %c24 = arith.constant 24 : index
    %c0_221 = arith.constant 0 : index
    %439 = vector.load %arg10[%c24, %c0_221] : memref<64x256xf32, #tpu.memory_space<vmem>>, vector<8x256xf32>
    tpu.vector_store %arg10[%c24, %c0_221], %438 {strides = array<i32>} : memref<64x256xf32, #tpu.memory_space<vmem>>, vector<8x256xf32>,
    %440 = vector.extract_strided_slice %437 {offsets = [8, 0], sizes = [8, 256], strides = [1, 1]} : vector<32x256xf32> to vector<8x256xf32>
    %c48_222 = arith.constant 48 : index
    %c0_223 = arith.constant 0 : index
    %441 = vector.load %arg10[%c48_222, %c0_223] : memref<64x256xf32, #tpu.memory_space<vmem>>, vector<8x256xf32>
    %442 = arith.addf %441, %440 : vector<8x256xf32>
    %c48_224 = arith.constant 48 : index
    %c0_225 = arith.constant 0 : index
    %443 = vector.load %arg10[%c48_224, %c0_225] : memref<64x256xf32, #tpu.memory_space<vmem>>, vector<8x256xf32>
    tpu.vector_store %arg10[%c48_224, %c0_225], %442 {strides = array<i32>} : memref<64x256xf32, #tpu.memory_space<vmem>>, vector<8x256xf32>,
    %444 = vector.extract_strided_slice %437 {offsets = [16, 0], sizes = [8, 256], strides = [1, 1]} : vector<32x256xf32> to vector<8x256xf32>
    %c56_226 = arith.constant 56 : index
    %c0_227 = arith.constant 0 : index
    %445 = vector.load %arg10[%c56_226, %c0_227] : memref<64x256xf32, #tpu.memory_space<vmem>>, vector<8x256xf32>
    %446 = arith.addf %445, %444 : vector<8x256xf32>
    %c56_228 = arith.constant 56 : index
    %c0_229 = arith.constant 0 : index
    %447 = vector.load %arg10[%c56_228, %c0_229] : memref<64x256xf32, #tpu.memory_space<vmem>>, vector<8x256xf32>
    tpu.vector_store %arg10[%c56_228, %c0_229], %446 {strides = array<i32>} : memref<64x256xf32, #tpu.memory_space<vmem>>, vector<8x256xf32>,
    %c7_230 = arith.constant 7 : index
    %c0_231 = arith.constant 0 : index
    %c0_232 = arith.constant 0 : index
    %448 = vector.load %arg4[%c7_230, %c0_231, %c0_232] : memref<8x32x80xbf16, #tpu.memory_space<vmem>>, vector<1x32x80xbf16>
    %449 = vector.shape_cast %448 : vector<1x32x80xbf16> to vector<32x80xbf16>
    %c7_233 = arith.constant 7 : index
    %c0_234 = arith.constant 0 : index
    %c0_235 = arith.constant 0 : index
    %450 = vector.load %arg9[%c7_233, %c0_234, %c0_235] : memref<8x80x256xbf16, #tpu.memory_space<vmem>>, vector<1x80x256xbf16>
    %451 = vector.shape_cast %450 : vector<1x80x256xbf16> to vector<80x256xbf16>
    %cst_236 = arith.constant dense<0.000000e+00> : vector<32x256xf32>
    %452 = tpu.matmul %449, %451, %cst_236 {dimension_numbers = #tpu.dot_dimension_numbers<[1], [0], [0], [1], [0, 0, 1, 1], [], []>} : vector<32x80xbf16>, vector<80x256xbf16>, vector<32x256xf32> -> vector<32x256xf32>
    %453 = vector.extract_strided_slice %452 {offsets = [0, 0], sizes = [8, 256], strides = [1, 1]} : vector<32x256xf32> to vector<8x256xf32>
    %c24_237 = arith.constant 24 : index
    %c0_238 = arith.constant 0 : index
    %454 = vector.load %arg10[%c24_237, %c0_238] : memref<64x256xf32, #tpu.memory_space<vmem>>, vector<8x256xf32>
    %455 = arith.addf %454, %453 : vector<8x256xf32>
    %c24_239 = arith.constant 24 : index
    %c0_240 = arith.constant 0 : index
    %456 = vector.load %arg10[%c24_239, %c0_240] : memref<64x256xf32, #tpu.memory_space<vmem>>, vector<8x256xf32>
    tpu.vector_store %arg10[%c24_239, %c0_240], %455 {strides = array<i32>} : memref<64x256xf32, #tpu.memory_space<vmem>>, vector<8x256xf32>,
    %457 = vector.extract_strided_slice %452 {offsets = [8, 0], sizes = [8, 256], strides = [1, 1]} : vector<32x256xf32> to vector<8x256xf32>
    %c48_241 = arith.constant 48 : index
    %c0_242 = arith.constant 0 : index
    %458 = vector.load %arg10[%c48_241, %c0_242] : memref<64x256xf32, #tpu.memory_space<vmem>>, vector<8x256xf32>
    %459 = arith.addf %458, %457 : vector<8x256xf32>
    %c48_243 = arith.constant 48 : index
    %c0_244 = arith.constant 0 : index
    %460 = vector.load %arg10[%c48_243, %c0_244] : memref<64x256xf32, #tpu.memory_space<vmem>>, vector<8x256xf32>
    tpu.vector_store %arg10[%c48_243, %c0_244], %459 {strides = array<i32>} : memref<64x256xf32, #tpu.memory_space<vmem>>, vector<8x256xf32>,
    %c0_245 = arith.constant 0 : index
    %c0_246 = arith.constant 0 : index
    %461 = vector.load %arg10[%c0_245, %c0_246] : memref<64x256xf32, #tpu.memory_space<vmem>>, vector<64x256xf32>
    %462 = arith.truncf %461 : vector<64x256xf32> to vector<64x256xbf16>
    %c0_247 = arith.constant 0 : index
    %c0_248 = arith.constant 0 : index
    %463 = vector.load %arg7[%c0_247, %c0_248] : memref<256x64xbf16, #tpu.memory_space<vmem>>, vector<256x64xbf16>
    %cst_249 = arith.constant dense<0.000000e+00> : vector<64x64xf32>
    %464 = tpu.matmul %462, %463, %cst_249 {dimension_numbers = #tpu.dot_dimension_numbers<[1], [0], [0], [1], [0, 0, 1, 1], [], []>} : vector<64x256xbf16>, vector<256x64xbf16>, vector<64x64xf32> -> vector<64x64xf32>
    %c0_250 = arith.constant 0 : index
    %c0_251 = arith.constant 0 : index
    %465 = vector.load %arg5[%c0_250, %c0_251] : memref<64x1xf32, #tpu.memory_space<vmem>>, vector<64x1xf32>
    %466 = vector.broadcast %465 : vector<64x1xf32> to vector<64x64xf32>
    %467 = arith.addf %464, %466 : vector<64x64xf32>
    %c0_252 = arith.constant 0 : index
    %c0_253 = arith.constant 0 : index
    %c0_254 = arith.constant 0 : index
    %468 = vector.load %arg8[%c0_252, %c0_253, %c0_254] : memref<1x64x64xf32, #tpu.memory_space<vmem>>, vector<1x64x64xf32>
    %469 = vector.shape_cast %468 : vector<1x64x64xf32> to vector<64x64xf32>
    %470 = vector.shape_cast %467 : vector<64x64xf32> to vector<1x64x64xf32>
    tpu.vector_store %arg8[%c0_252, %c0_253, %c0_254], %470 {strides = array<i32>} : memref<1x64x64xf32, #tpu.memory_space<vmem>>, vector<1x64x64xf32>,
    return
  }
  func.func @transform_0(%arg0: i32) -> (i32, i32, i32, i32) {
    %c0_i32 = arith.constant 0 : i32
    %c0_i32_0 = arith.constant 0 : i32
    %c0_i32_1 = arith.constant 0 : i32
    %c0_i32_2 = arith.constant 0 : i32
    return %arg0, %c0_i32, %c0_i32_0, %c0_i32_1 : i32, i32, i32, i32
  }
  func.func @transform_1(%arg0: i32) -> (i32, i32) {
    %c0_i32 = arith.constant 0 : i32
    %c0_i32_0 = arith.constant 0 : i32
    %c0_i32_1 = arith.constant 0 : i32
    return %c0_i32, %c0_i32_0 : i32, i32
  }
  func.func @transform_2(%arg0: i32) -> (i32, i32) {
    %c0_i32 = arith.constant 0 : i32
    %c0_i32_0 = arith.constant 0 : i32
    %c0_i32_1 = arith.constant 0 : i32
    return %c0_i32, %c0_i32_0 : i32, i32
  }
  func.func @transform_3(%arg0: i32) -> (i32, i32, i32) {
    %c0_i32 = arith.constant 0 : i32
    %c0_i32_0 = arith.constant 0 : i32
    %c0_i32_1 = arith.constant 0 : i32
    %c0_i32_2 = arith.constant 0 : i32
    return %c0_i32, %c0_i32_0, %c0_i32_1 : i32, i32, i32
  }
  func.func @transform_4(%arg0: i32) -> (i32, i32) {
    %c0_i32 = arith.constant 0 : i32
    %c0_i32_0 = arith.constant 0 : i32
    %c0_i32_1 = arith.constant 0 : i32
    return %c0_i32, %c0_i32_0 : i32, i32
  }
  func.func @transform_5(%arg0: i32) -> (i32, i32) {
    %c0_i32 = arith.constant 0 : i32
    %c0_i32_0 = arith.constant 0 : i32
    %c0_i32_1 = arith.constant 0 : i32
    return %c0_i32, %c0_i32_0 : i32, i32
  }
  func.func @transform_6(%arg0: i32) -> (i32, i32) {
    %c0_i32 = arith.constant 0 : i32
    %c0_i32_0 = arith.constant 0 : i32
    %c0_i32_1 = arith.constant 0 : i32
    return %c0_i32, %c0_i32_0 : i32, i32
  }
  func.func @transform_7(%arg0: i32) -> (i32, i32, i32) {
    %c0_i32 = arith.constant 0 : i32
    %c0_i32_0 = arith.constant 0 : i32
    %c0_i32_1 = arith.constant 0 : i32
    return %arg0, %c0_i32, %c0_i32_0 : i32, i32, i32
  }
}

</mosaic_0001>

<llo_original>
// kernel: tpu_custom_call.1
$region0: #{tpu_custom_call.1}
  #allocation0 [shape = 'u32[]', space=smem, size = 0x4, offset = 0x4, fixed_abs, tag = 'smem constant byte address 0x4 - core index']
  #allocation1 [shape = 'u32[144,128]{1,0:T(1,128)}', space=vmem, size = 0x12000, scoped, tag = 'internal scratch']
  #allocation2 [shape = 'bf16[8,80,256]{2,1,0:T(8,128)(2,1)}', space=vmem, size = 0x50000, scoped, tag = 'scratch operand']
  #allocation3 [shape = 'f32[64,256]{1,0:T(8,128)}', space=vmem, size = 0x10000, scoped, tag = 'scratch operand']
  %s0 = inlined_call_operand.hbm [shape: f32[2,8,8,290], index: 0, kind: input, shape index: {}]
  %s1 = inlined_call_operand.vmem [shape: f32[8,1], index: 1, kind: input, shape index: {}]
  %s2 = inlined_call_operand.vmem [shape: f32[8,1], index: 2, kind: input, shape index: {}]
  %s3 = inlined_call_operand.vmem [shape: bf16[8,32,80], index: 3, kind: input, shape index: {}]
  %s4 = inlined_call_operand.vmem [shape: f32[64,1], index: 4, kind: input, shape index: {}]
  %s5 = inlined_call_operand.vmem [shape: f32[9,256], index: 5, kind: input, shape index: {}]
  %s6 = inlined_call_operand.vmem [shape: bf16[256,64], index: 6, kind: input, shape index: {}]
  %s7 = inlined_call_operand.hbm [shape: f32[2,64,64], index: 7, kind: output, shape index: {}]
  %s8 = sld [smem:[#allocation0]]
  $region65: #{tpu_custom_call.1} parent=0
    _
  %s10 = ssub.s32 1, %s8
  %s11 = scalar_select 0, %s10, %s8
  $region1: #{tpu_custom_call.1} parent=0
    #allocation4 [shape = 'u8[196608]{0}', space=vmem, size = 0x30000, scoped, tag = 'input window, operand 0']
    #allocation5 [shape = 's32[2]{0}', space=sflag, size = 0x8, scoped, tag = 'scoped memory for tpu_custom_call.1']
    #allocation6 [shape = 's32[2]{0}', space=sflag, size = 0x8, scoped, tag = 'scoped memory for tpu_custom_call.1']
    #allocation7 [shape = 'u8[65536]{0}', space=vmem, size = 0x10000, scoped, tag = 'output window, operand 0']
    %12 = vsyncpa [#allocation5], 0
    %s13 = scalar_lea.sflag [#allocation5], 1
    %14 = vsyncpa %s13, 0
    %15 = vsyncpa [#allocation6], 0
    %s16 = scalar_lea.sflag [#allocation6], 1
    %17 = vsyncpa %s16, 0
    loop: start=0, step=1, limit=4
    $region2: #{tpu_custom_call.1} parent=1 // loop_pre_header
      _
    $region3: #{tpu_custom_call.1} parent=1 // loop_header
      %s19 = sphi 0, %s23
      %p20 = scmp.ge.s32.totalorder %s19, 4
      %s29 = sphi 0, %s31
      %s32 = sphi 0, %s29
      %s33 = sphi 0, %s32
      %s49 = sphi 0, %s33
      %s53 = sphi 0, %s53
      %s55 = sphi 0, %s53
      %s56 = sphi 0, %s55
      %s70 = sphi 0, %s56
      %s74 = sphi 0, %s74
      %s76 = sphi 0, %s74
      %s77 = sphi 0, %s76
      %s91 = sphi 0, %s77
      %s95 = sphi 0, %s95
      %s97 = sphi 0, %s95
      %s98 = sphi 0, %s97
      %s112 = sphi 0, %s98
      %s116 = sphi 0, %s116
      %s118 = sphi 0, %s116
      %s119 = sphi 0, %s118
      %s133 = sphi 0, %s119
      %s137 = sphi 0, %s137
      %s139 = sphi 0, %s137
      %s140 = sphi 0, %s139
      %s154 = sphi 0, %s140
      %s158 = sphi 0, %s158
      %s160 = sphi 0, %s158
      %s161 = sphi 0, %s160
      %s175 = sphi 0, %s161
      %s181 = sphi 0, %s183
      %s184 = sphi 0, %s181
      %s185 = sphi 0, %s184
      %s201 = sphi 0, %s185
    $region4: #{tpu_custom_call.1} parent=1 // loop_header_branch
      %22 = sbr.rel (%p20) target = $region8
    $region5: #{tpu_custom_call.1} parent=1 // loop_body
      %s24 = ssub.s32 %s19, 1
      %s25 = ssub.s32 %s19, 2
      %s26 = sadd.s32 %s19, 1
      %s27 = ssub.s32 %s19, %s26
      %p28 = scmp.eq.s32.totalorder %s27, 0
      %s30 = sadd.s32 %s29, 1
      %s31 = scalar_select %p28, %s29, %s30
      %p34 = pneg %p28
      %p35 = scmp.eq.s32.totalorder %s19, 1
      %p36 = por %p34, %p35
      %p37 = scmp.ne.s32.totalorder %s29, %s32
      %p38 = scmp.eq.s32.totalorder %s19, 0
      %p39 = por %p37, %p38
      %p40 = scmp.ne.s32.totalorder %s29, %s32
      %p41 = scmp.eq.s32.totalorder %s24, 1
      %p42 = por %p40, %p41
      %p43 = scmp.ne.s32.totalorder %s32, %s33
      %p44 = scmp.eq.s32.totalorder %s24, 0
      %p45 = por %p43, %p44
      %p46 = scmp.ne.s32.totalorder %s32, %s33
      %p47 = scmp.eq.s32.totalorder %s25, 1
      %p48 = por %p46, %p47
      %p50 = scmp.ne.s32.totalorder %s33, %s49
      %p51 = scmp.eq.s32.totalorder %s25, 0
      %p52 = por %p50, %p51
      %s54 = sadd.s32 %s53, 1
      %p57 = scmp.eq.s32.totalorder %s19, 1
      %p58 = scmp.ne.s32.totalorder %s53, %s55
      %p59 = scmp.eq.s32.totalorder %s19, 0
      %p60 = por %p58, %p59
      %p61 = scmp.ne.s32.totalorder %s53, %s55
      %p62 = scmp.eq.s32.totalorder %s24, 1
      %p63 = por %p61, %p62
      %p64 = scmp.ne.s32.totalorder %s55, %s56
      %p65 = scmp.eq.s32.totalorder %s24, 0
      %p66 = por %p64, %p65
      %p67 = scmp.ne.s32.totalorder %s55, %s56
      %p68 = scmp.eq.s32.totalorder %s25, 1
      %p69 = por %p67, %p68
      %p71 = scmp.ne.s32.totalorder %s56, %s70
      %p72 = scmp.eq.s32.totalorder %s25, 0
      %p73 = por %p71, %p72
      %s75 = sadd.s32 %s74, 1
      %p78 = scmp.eq.s32.totalorder %s19, 1
      %p79 = scmp.ne.s32.totalorder %s74, %s76
      %p80 = scmp.eq.s32.totalorder %s19, 0
      %p81 = por %p79, %p80
      %p82 = scmp.ne.s32.totalorder %s74, %s76
      %p83 = scmp.eq.s32.totalorder %s24, 1
      %p84 = por %p82, %p83
      %p85 = scmp.ne.s32.totalorder %s76, %s77
      %p86 = scmp.eq.s32.totalorder %s24, 0
      %p87 = por %p85, %p86
      %p88 = scmp.ne.s32.totalorder %s76, %s77
      %p89 = scmp.eq.s32.totalorder %s25, 1
      %p90 = por %p88, %p89
      %p92 = scmp.ne.s32.totalorder %s77, %s91
      %p93 = scmp.eq.s32.totalorder %s25, 0
      %p94 = por %p92, %p93
      %s96 = sadd.s32 %s95, 1
      %p99 = scmp.eq.s32.totalorder %s19, 1
      %p100 = scmp.ne.s32.totalorder %s95, %s97
      %p101 = scmp.eq.s32.totalorder %s19, 0
      %p102 = por %p100, %p101
      %p103 = scmp.ne.s32.totalorder %s95, %s97
      %p104 = scmp.eq.s32.totalorder %s24, 1
      %p105 = por %p103, %p104
      %p106 = scmp.ne.s32.totalorder %s97, %s98
      %p107 = scmp.eq.s32.totalorder %s24, 0
      %p108 = por %p106, %p107
      %p109 = scmp.ne.s32.totalorder %s97, %s98
      %p110 = scmp.eq.s32.totalorder %s25, 1
      %p111 = por %p109, %p110
      %p113 = scmp.ne.s32.totalorder %s98, %s112
      %p114 = scmp.eq.s32.totalorder %s25, 0
      %p115 = por %p113, %p114
      %s117 = sadd.s32 %s116, 1
      %p120 = scmp.eq.s32.totalorder %s19, 1
      %p121 = scmp.ne.s32.totalorder %s116, %s118
      %p122 = scmp.eq.s32.totalorder %s19, 0
      %p123 = por %p121, %p122
      %p124 = scmp.ne.s32.totalorder %s116, %s118
      %p125 = scmp.eq.s32.totalorder %s24, 1
      %p126 = por %p124, %p125
      %p127 = scmp.ne.s32.totalorder %s118, %s119
      %p128 = scmp.eq.s32.totalorder %s24, 0
      %p129 = por %p127, %p128
      %p130 = scmp.ne.s32.totalorder %s118, %s119
      %p131 = scmp.eq.s32.totalorder %s25, 1
      %p132 = por %p130, %p131
      %p134 = scmp.ne.s32.totalorder %s119, %s133
      %p135 = scmp.eq.s32.totalorder %s25, 0
      %p136 = por %p134, %p135
      %s138 = sadd.s32 %s137, 1
      %p141 = scmp.eq.s32.totalorder %s19, 1
      %p142 = scmp.ne.s32.totalorder %s137, %s139
      %p143 = scmp.eq.s32.totalorder %s19, 0
      %p144 = por %p142, %p143
      %p145 = scmp.ne.s32.totalorder %s137, %s139
      %p146 = scmp.eq.s32.totalorder %s24, 1
      %p147 = por %p145, %p146
      %p148 = scmp.ne.s32.totalorder %s139, %s140
      %p149 = scmp.eq.s32.totalorder %s24, 0
      %p150 = por %p148, %p149
      %p151 = scmp.ne.s32.totalorder %s139, %s140
      %p152 = scmp.eq.s32.totalorder %s25, 1
      %p153 = por %p151, %p152
      %p155 = scmp.ne.s32.totalorder %s140, %s154
      %p156 = scmp.eq.s32.totalorder %s25, 0
      %p157 = por %p155, %p156
      %s159 = sadd.s32 %s158, 1
      %p162 = scmp.eq.s32.totalorder %s19, 1
      %p163 = scmp.ne.s32.totalorder %s158, %s160
      %p164 = scmp.eq.s32.totalorder %s19, 0
      %p165 = por %p163, %p164
      %p166 = scmp.ne.s32.totalorder %s158, %s160
      %p167 = scmp.eq.s32.totalorder %s24, 1
      %p168 = por %p166, %p167
      %p169 = scmp.ne.s32.totalorder %s160, %s161
      %p170 = scmp.eq.s32.totalorder %s24, 0
      %p171 = por %p169, %p170
      %p172 = scmp.ne.s32.totalorder %s160, %s161
      %p173 = scmp.eq.s32.totalorder %s25, 1
      %p174 = por %p172, %p173
      %p176 = scmp.ne.s32.totalorder %s161, %s175
      %p177 = scmp.eq.s32.totalorder %s25, 0
      %p178 = por %p176, %p177
      %s179 = ssub.s32 %s19, %s26
      %p180 = scmp.eq.s32.totalorder %s179, 0
      %s182 = sadd.s32 %s181, 1
      %s183 = scalar_select %p180, %s181, %s182
      %p186 = pneg %p180
      %p187 = scmp.eq.s32.totalorder %s19, 1
      %p188 = por %p186, %p187
      %p189 = scmp.ne.s32.totalorder %s181, %s184
      %p190 = scmp.eq.s32.totalorder %s19, 0
      %p191 = por %p189, %p190
      %p192 = scmp.ne.s32.totalorder %s181, %s184
      %p193 = scmp.eq.s32.totalorder %s24, 1
      %p194 = por %p192, %p193
      %p195 = scmp.ne.s32.totalorder %s184, %s185
      %p196 = scmp.eq.s32.totalorder %s24, 0
      %p197 = por %p195, %p196
      %p198 = scmp.ne.s32.totalorder %s184, %s185
      %p199 = scmp.eq.s32.totalorder %s25, 1
      %p200 = por %p198, %p199
      %p202 = scmp.ne.s32.totalorder %s185, %s201
      %p203 = scmp.eq.s32.totalorder %s25, 0
      %p204 = por %p202, %p203
      %p205 = scmp.le.s32.totalorder 1, %s19
      %p206 = scmp.lt.s32.totalorder %s19, 3
      %p207 = pnand %p205, %p206
      %p208 = pneg %p207
      // Predicated region
      $region9: #{tpu_custom_call.1} parent=5 // pred_check
        _
      $region10: #{tpu_custom_call.1} parent=5 // pred_check_branch
        %210 = sbr.rel (%p207) target = $region12
      $region11: #{tpu_custom_call.1} parent=5 // pred_region
        %s211 = ssub.s32 %s19, 1
        // Predicated region
        $region13: #{tpu_custom_call.1} parent=11 // pred_check
          %p212 = pneg %p66
        $region14: #{tpu_custom_call.1} parent=11 // pred_check_branch
          %214 = sbr.rel (%p212) target = $region16
        $region15: #{tpu_custom_call.1} parent=11 // pred_region
          _
        $region16: #{tpu_custom_call.1} parent=11 // pred_fallthru
          _
        // Predicated region
        $region17: #{tpu_custom_call.1} parent=11 // pred_check
          %p215 = pneg %p87
        $region18: #{tpu_custom_call.1} parent=11 // pred_check_branch
          %217 = sbr.rel (%p215) target = $region20
        $region19: #{tpu_custom_call.1} parent=11 // pred_region
          _
        $region20: #{tpu_custom_call.1} parent=11 // pred_fallthru
          _
        // Predicated region
        $region21: #{tpu_custom_call.1} parent=11 // pred_check
          %p218 = pneg %p108
        $region22: #{tpu_custom_call.1} parent=11 // pred_check_branch
          %220 = sbr.rel (%p218) target = $region24
        $region23: #{tpu_custom_call.1} parent=11 // pred_region
          _
        $region24: #{tpu_custom_call.1} parent=11 // pred_fallthru
          _
        // Predicated region
        $region25: #{tpu_custom_call.1} parent=11 // pred_check
          %p221 = pneg %p129
        $region26: #{tpu_custom_call.1} parent=11 // pred_check_branch
          %223 = sbr.rel (%p221) target = $region28
        $region27: #{tpu_custom_call.1} parent=11 // pred_region
          _
        $region28: #{tpu_custom_call.1} parent=11 // pred_fallthru
          _
        // Predicated region
        $region29: #{tpu_custom_call.1} parent=11 // pred_check
          %p224 = pneg %p150
        $region30: #{tpu_custom_call.1} parent=11 // pred_check_branch
          %226 = sbr.rel (%p224) target = $region32
        $region31: #{tpu_custom_call.1} parent=11 // pred_region
          _
        $region32: #{tpu_custom_call.1} parent=11 // pred_fallthru
          _
        // Predicated region
        $region33: #{tpu_custom_call.1} parent=11 // pred_check
          %p227 = pneg %p171
        $region34: #{tpu_custom_call.1} parent=11 // pred_check_branch
          %229 = sbr.rel (%p227) target = $region36
        $region35: #{tpu_custom_call.1} parent=11 // pred_region
          _
        $region36: #{tpu_custom_call.1} parent=11 // pred_fallthru
          _
      $region12: #{tpu_custom_call.1} parent=5 // pred_fallthru
        _
      %p230 = scmp.lt.s32.totalorder %s19, 2
      // Predicated region
      $region37: #{tpu_custom_call.1} parent=5 // pred_check
        %p231 = pneg %p230
      $region38: #{tpu_custom_call.1} parent=5 // pred_check_branch
        %233 = sbr.rel (%p231) target = $region40
      $region39: #{tpu_custom_call.1} parent=5 // pred_region
        // Predicated region
        $region41: #{tpu_custom_call.1} parent=39 // pred_check
          %p234 = pneg %p39
        $region42: #{tpu_custom_call.1} parent=39 // pred_check_branch
          %236 = sbr.rel (%p234) target = $region44
        $region43: #{tpu_custom_call.1} parent=39 // pred_region
          %s237 = sand.u32 %s29, 1
          %s238 = scalar_lea.sflag [#allocation5], %s237
          %s239 = sand.u32 %s29, 1
          %s240 = smul.addr %s239, 192
          %s241 = scalar_lea.vmem [#allocation4], %s240
          %s243 = ssub.s32 3072, 3072
          %244 = vsyncadd %s238, %s243
          %s245 = smul.addr %s19, 24
          %s246 = smul.addr %s245, 128
          %s247 = scalar_lea.hbm %s0, %s246
          %s248 = sshll.u32 %s241, 4
          %s249 = int_to_ptr.vmem [resolvable:$true] %s248
          %254 = dma.hbm_to_vmem [thread:$0]  %s247, 3072, %s249, %s238, 384, 384, 24
        $region44: #{tpu_custom_call.1} parent=39 // pred_fallthru
          _
      $region40: #{tpu_custom_call.1} parent=5 // pred_fallthru
        _
      %p255 = scmp.le.s32.totalorder 1, %s19
      %p256 = scmp.lt.s32.totalorder %s19, 3
      %p257 = pnand %p255, %p256
      %p258 = pneg %p257
      // Predicated region
      $region45: #{tpu_custom_call.1} parent=5 // pred_check
        _
      $region46: #{tpu_custom_call.1} parent=5 // pred_check_branch
        %260 = sbr.rel (%p257) target = $region48
      $region47: #{tpu_custom_call.1} parent=5 // pred_region
        %s261 = ssub.s32 %s19, 1
        %s262 = sand.u32 %s32, 1
        %s263 = scalar_lea.sflag [#allocation5], %s262
        %s264 = sand.u32 %s32, 1
        %s265 = smul.addr %s264, 192
        %s266 = scalar_lea.vmem [#allocation4], %s265
        // Predicated region
        $region49: #{tpu_custom_call.1} parent=47 // pred_check
          %p267 = pneg %p45
        $region50: #{tpu_custom_call.1} parent=47 // pred_check_branch
          %269 = sbr.rel (%p267) target = $region52
        $region51: #{tpu_custom_call.1} parent=47 // pred_region
          %270 = dma.done %s263, 3072
        $region52: #{tpu_custom_call.1} parent=47 // pred_fallthru
          _
        %s271 = sand.u32 %s32, 1
        %s272 = scalar_lea.sflag [#allocation5], %s271
        %s273 = sand.u32 %s32, 1
        %s274 = smul.addr %s273, 192
        %s275 = scalar_lea.vmem [#allocation4], %s274
        %p276 = pneg %p45
        %p277 = pneg %p42
        %p278 = pneg %p66
        %p279 = pneg %p63
        %p280 = pneg %p87
        %p281 = pneg %p84
        %p282 = pneg %p108
        %p283 = pneg %p105
        %p284 = pneg %p129
        %p285 = pneg %p126
        %p286 = pneg %p150
        %p287 = pneg %p147
        %p288 = pneg %p171
        %p289 = pneg %p168
        %p290 = pneg %p197
        %p291 = pneg %p194
        %s292 = sand.u32 %s184, 1
        %s293 = scalar_lea.sflag [#allocation6], %s292
        %s294 = sand.u32 %s184, 1
        %s295 = smul.addr %s294, 64
        %s296 = scalar_lea.vmem [#allocation7], %s295
        %v298 = vld [vmem:[%s5] ss:$8 sm:$0x3]
        %s299 = scalar_lea.vmem %s5, 1
        %v300 = vld [vmem:[%s299] ss:$8 sm:$0x3]
        %s301 = scalar_lea.vmem %s5, 2
        %v302 = vld [vmem:[%s301] ss:$8 sm:$0x3]
        %s303 = scalar_lea.vmem %s5, 3
        %v304 = vld [vmem:[%s303] ss:$8 sm:$0x3]
        %s305 = scalar_lea.vmem %s5, 5
        %v306 = vld [vmem:[%s305] ss:$8 sm:$0x3]
        %s307 = scalar_lea.vmem %s5, 6
        %v308 = vld [vmem:[%s307] ss:$8 sm:$0x3]
        %s309 = scalar_lea.vmem %s5, 7
        %v310 = vld [vmem:[%s309] ss:$8 sm:$0x3]
        %s311 = scalar_lea.vmem %s5, 16
        %v312 = vld [vmem:[%s311] ss:$8 sm:$0x3]
        %v313 = vld [vmem:[%s266] sm:$0xff]
        %v314 = vld [vmem:[%s266 + $0x8] sm:$0xff]
        %v315 = vld [vmem:[%s266 + $0x10] sm:$0xff]
        %v316 = vld [vmem:[%s1] sm:$0xff]
        %318 = vset.pattern.permute.xlu0 0
        %319 = vperm.xlu0 %318, %v316
        %v320 = vpop.permute.xlu0 %319
        %v322 = vmul.f32 %v313, %v320
        %v323 = vmul.f32 %v314, %v320
        %v324 = vmul.f32 %v315, %v320
        %v325 = vld [vmem:[%s2] sm:$0xff]
        %327 = vset.pattern.permute.xlu0 0
        %328 = vperm.xlu0 %327, %v325
        %v329 = vpop.permute.xlu0 %328
        %v331 = vadd.f32 %v322, %v329
        %v332 = vadd.f32 %v323, %v329
        %v333 = vadd.f32 %v324, %v329
        %v334 = vmax.f32 %v331, 0.0
        %v335 = vmax.f32 %v332, 0.0
        %v336 = vmax.f32 %v333, 0.0
        %v338 = vlaneseq
        %v339 = vshrl.u32 %v338, 7
        %v340 = vsub.s32 0, %v339
        %v341 = vrot.slane %v298, %v340
        %v342 = vlaneseq
        %v343 = vshrl.u32 %v342, 7
        %v344 = vsub.s32 1, %v343
        %v345 = vrot.slane %v298, %v344
        %v348 = vmul.f32 %v334, %v341
        %v349 = vmul.f32 %v335, %v345
        %v351 = vlaneseq
        %v352 = vshrl.u32 %v351, 7
        %v353 = vsub.s32 0, %v352
        %v354 = vrot.slane %v300, %v353
        %v355 = vlaneseq
        %v356 = vshrl.u32 %v355, 7
        %v357 = vsub.s32 1, %v356
        %v358 = vrot.slane %v300, %v357
        %359 = vrot.lane.b32.xlu0 %v354, 1
        %v360 = vpop.permute.xlu0 %359
        %361 = vrot.lane.b32.xlu0 %v358, 1
        %v362 = vpop.permute.xlu0 %361
        %vm363 = vcmask 7168
        %v364 = vsel %vm363, %v360, %v362
        %v368 = vmul.f32 %v334, %v360
        %v369 = vmul.f32 %v335, %v364
        %v370 = vmul.f32 %v336, %v362
        %v372 = vlaneseq
        %v373 = vshrl.u32 %v372, 7
        %v374 = vsub.s32 0, %v373
        %v375 = vrot.slane %v302, %v374
        %v376 = vlaneseq
        %v377 = vshrl.u32 %v376, 7
        %v378 = vsub.s32 1, %v377
        %v379 = vrot.slane %v302, %v378
        %380 = vrot.lane.b32.xlu0 %v375, 2
        %v381 = vpop.permute.xlu0 %380
        %382 = vrot.lane.b32.xlu0 %v379, 2
        %v383 = vpop.permute.xlu0 %382
        %vm384 = vcmask 15360
        %v385 = vsel %vm384, %v381, %v383
        %v389 = vmul.f32 %v334, %v381
        %v390 = vmul.f32 %v335, %v385
        %v391 = vmul.f32 %v336, %v383
        %v393 = vlaneseq
        %v394 = vshrl.u32 %v393, 7
        %v395 = vsub.s32 0, %v394
        %v396 = vrot.slane %v304, %v395
        %v397 = vlaneseq
        %v398 = vshrl.u32 %v397, 7
        %v399 = vsub.s32 1, %v398
        %v400 = vrot.slane %v304, %v399
        %401 = vrot.lane.b32.xlu0 %v396, 16
        %v402 = vpop.permute.xlu0 %401
        %403 = vrot.lane.b32.xlu0 %v400, 16
        %v404 = vpop.permute.xlu0 %403
        %vm405 = vcmask 130048
        %v406 = vsel %vm405, %v402, %v404
        %v410 = vmul.f32 %v334, %v402
        %v411 = vmul.f32 %v335, %v406
        %v412 = vmul.f32 %v336, %v404
        %v414 = vlaneseq
        %v415 = vshrl.u32 %v414, 7
        %v416 = vsub.s32 0, %v415
        %v417 = vrot.slane %v306, %v416
        %v418 = vlaneseq
        %v419 = vshrl.u32 %v418, 7
        %v420 = vsub.s32 1, %v419
        %v421 = vrot.slane %v306, %v420
        %422 = vrot.lane.b32.xlu0 %v417, 18
        %v423 = vpop.permute.xlu0 %422
        %424 = vrot.lane.b32.xlu0 %v421, 18
        %v425 = vpop.permute.xlu0 %424
        %vm426 = vcmask 146432
        %v427 = vsel %vm426, %v423, %v425
        %v431 = vmul.f32 %v334, %v423
        %v432 = vmul.f32 %v335, %v427
        %v433 = vmul.f32 %v336, %v425
        %v435 = vlaneseq
        %v436 = vshrl.u32 %v435, 7
        %v437 = vsub.s32 0, %v436
        %v438 = vrot.slane %v308, %v437
        %v439 = vlaneseq
        %v440 = vshrl.u32 %v439, 7
        %v441 = vsub.s32 1, %v440
        %v442 = vrot.slane %v308, %v441
        %443 = vrot.lane.b32.xlu0 %v438, 32
        %v444 = vpop.permute.xlu0 %443
        %445 = vrot.lane.b32.xlu0 %v442, 32
        %v446 = vpop.permute.xlu0 %445
        %vm447 = vcmask 261120
        %v448 = vsel %vm447, %v444, %v446
        %v452 = vmul.f32 %v334, %v444
        %v453 = vmul.f32 %v335, %v448
        %v454 = vmul.f32 %v336, %v446
        %v456 = vlaneseq
        %v457 = vshrl.u32 %v456, 7
        %v458 = vsub.s32 0, %v457
        %v459 = vrot.slane %v310, %v458
        %v460 = vlaneseq
        %v461 = vshrl.u32 %v460, 7
        %v462 = vsub.s32 1, %v461
        %v463 = vrot.slane %v310, %v462
        %464 = vrot.lane.b32.xlu0 %v459, 33
        %v465 = vpop.permute.xlu0 %464
        %466 = vrot.lane.b32.xlu0 %v463, 33
        %v467 = vpop.permute.xlu0 %466
        %vm468 = vcmask 269312
        %v469 = vsel %vm468, %v465, %v467
        %v473 = vmul.f32 %v334, %v465
        %v474 = vmul.f32 %v335, %v469
        %v475 = vmul.f32 %v336, %v467
        %v477 = vlaneseq
        %v478 = vshrl.u32 %v477, 7
        %v479 = vsub.s32 0, %v478
        %v480 = vrot.slane %v312, %v479
        %v481 = vlaneseq
        %v482 = vshrl.u32 %v481, 7
        %v483 = vsub.s32 1, %v482
        %v484 = vrot.slane %v312, %v483
        %485 = vrot.lane.b32.xlu0 %v480, 34
        %v486 = vpop.permute.xlu0 %485
        %487 = vrot.lane.b32.xlu0 %v484, 34
        %v488 = vpop.permute.xlu0 %487
        %vm489 = vcmask 277504
        %v490 = vsel %vm489, %v486, %v488
        %v494 = vmul.f32 %v334, %v486
        %v495 = vmul.f32 %v335, %v490
        %v496 = vmul.f32 %v336, %v488
        %500 = vrot.lane.b32.xlu0 %v368, 127
        %v501 = vpop.permute.xlu0 %500
        %502 = vrot.lane.b32.xlu0 %v369, 127
        %v503 = vpop.permute.xlu0 %502
        %504 = vrot.lane.b32.xlu0 %v370, 127
        %v505 = vpop.permute.xlu0 %504
        %vm506 = vcmask 1039360
        %v507 = vsel %vm506, %v501, %v503
        %v508 = vsel %vm506, %v503, %v505
        %514 = vrot.lane.b32.xlu0 %v389, 126
        %v515 = vpop.permute.xlu0 %514
        %516 = vrot.lane.b32.xlu0 %v390, 126
        %v517 = vpop.permute.xlu0 %516
        %518 = vrot.lane.b32.xlu0 %v391, 126
        %v519 = vpop.permute.xlu0 %518
        %vm520 = vcmask 1031168
        %v521 = vsel %vm520, %v515, %v517
        %v522 = vsel %vm520, %v517, %v519
        %528 = vrot.lane.b32.xlu0 %v410, 112
        %v529 = vpop.permute.xlu0 %528
        %530 = vrot.lane.b32.xlu0 %v411, 112
        %v531 = vpop.permute.xlu0 %530
        %532 = vrot.lane.b32.xlu0 %v412, 112
        %v533 = vpop.permute.xlu0 %532
        %vm534 = vcmask 916480
        %v535 = vsel %vm534, %v529, %v531
        %v536 = vsel %vm534, %v531, %v533
        %542 = vrot.lane.b32.xlu0 %v334, 111
        %v543 = vpop.permute.xlu0 %542
        %544 = vrot.lane.b32.xlu0 %v335, 111
        %v545 = vpop.permute.xlu0 %544
        %546 = vrot.lane.b32.xlu0 %v336, 111
        %v547 = vpop.permute.xlu0 %546
        %vm548 = vcmask 908288
        %v549 = vsel %vm548, %v543, %v545
        %v550 = vsel %vm548, %v545, %v547
        %556 = vrot.lane.b32.xlu0 %v431, 110
        %v557 = vpop.permute.xlu0 %556
        %558 = vrot.lane.b32.xlu0 %v432, 110
        %v559 = vpop.permute.xlu0 %558
        %560 = vrot.lane.b32.xlu0 %v433, 110
        %v561 = vpop.permute.xlu0 %560
        %vm562 = vcmask 900096
        %v563 = vsel %vm562, %v557, %v559
        %v564 = vsel %vm562, %v559, %v561
        %570 = vrot.lane.b32.xlu0 %v452, 96
        %v571 = vpop.permute.xlu0 %570
        %572 = vrot.lane.b32.xlu0 %v453, 96
        %v573 = vpop.permute.xlu0 %572
        %574 = vrot.lane.b32.xlu0 %v454, 96
        %v575 = vpop.permute.xlu0 %574
        %vm576 = vcmask 785408
        %v577 = vsel %vm576, %v571, %v573
        %v578 = vsel %vm576, %v573, %v575
        %584 = vrot.lane.b32.xlu0 %v473, 95
        %v585 = vpop.permute.xlu0 %584
        %586 = vrot.lane.b32.xlu0 %v474, 95
        %v587 = vpop.permute.xlu0 %586
        %588 = vrot.lane.b32.xlu0 %v475, 95
        %v589 = vpop.permute.xlu0 %588
        %vm590 = vcmask 777216
        %v591 = vsel %vm590, %v585, %v587
        %v592 = vsel %vm590, %v587, %v589
        %598 = vrot.lane.b32.xlu0 %v494, 94
        %v599 = vpop.permute.xlu0 %598
        %600 = vrot.lane.b32.xlu0 %v495, 94
        %v601 = vpop.permute.xlu0 %600
        %602 = vrot.lane.b32.xlu0 %v496, 94
        %v603 = vpop.permute.xlu0 %602
        %vm604 = vcmask 769024
        %v605 = vsel %vm604, %v599, %v601
        %v606 = vsel %vm604, %v601, %v603
        %v609 = vpack.c.bf16 %v507, %v348
        %v610 = vpack.c.bf16 %v508, %v349
        %v611 = vpack.c.bf16 %v535, %v521
        %v612 = vpack.c.bf16 %v536, %v522
        %v613 = vpack.c.bf16 %v563, %v549
        %v614 = vpack.c.bf16 %v564, %v550
        %v615 = vpack.c.bf16 %v591, %v577
        %v616 = vpack.c.bf16 %v592, %v578
        %v617 = vpack.c.bf16 0.0, %v605
        %v618 = vpack.c.bf16 0.0, %v606
        %v629 = vunpack.c.l.b16 %v609
        %v630 = vunpack.c.l.b16 %v610
        %v631 = vunpack.c.h.b16 %v609
        %v632 = vunpack.c.h.b16 %v610
        %v633 = vunpack.c.l.b16 %v611
        %v634 = vunpack.c.l.b16 %v612
        %v635 = vunpack.c.h.b16 %v611
        %v636 = vunpack.c.h.b16 %v612
        %v637 = vunpack.c.l.b16 %v613
        %v638 = vunpack.c.l.b16 %v614
        %v639 = vunpack.c.h.b16 %v613
        %v640 = vunpack.c.h.b16 %v614
        %v641 = vunpack.c.l.b16 %v615
        %v642 = vunpack.c.l.b16 %v616
        %v643 = vunpack.c.h.b16 %v615
        %v644 = vunpack.c.h.b16 %v616
        %v645 = vunpack.c.l.b16 %v617
        %v646 = vunpack.c.l.b16 %v618
        %v647 = vunpack.c.h.b16 %v617
        %v648 = vunpack.c.h.b16 %v618
        %v649 = vpack.c.b16 %v630, %v629
        %v650 = vpack.c.b16 %v632, %v631
        %v651 = vpack.c.b16 %v634, %v633
        %v652 = vpack.c.b16 %v636, %v635
        %v653 = vpack.c.b16 %v638, %v637
        %v654 = vpack.c.b16 %v640, %v639
        %v655 = vpack.c.b16 %v642, %v641
        %v656 = vpack.c.b16 %v644, %v643
        %v657 = vpack.c.b16 %v646, %v645
        %v658 = vpack.c.b16 %v648, %v647
        %669 = vst [vmem:[#allocation2] sm:$0xff] %v649
        %670 = vst [vmem:[#allocation2 + $0x8] sm:$0xff] %v650
        %671 = vst [vmem:[#allocation2 + $0x10] sm:$0xff] %v651
        %672 = vst [vmem:[#allocation2 + $0x18] sm:$0xff] %v652
        %673 = vst [vmem:[#allocation2 + $0x20] sm:$0xff] %v653
        %674 = vst [vmem:[#allocation2 + $0x28] sm:$0xff] %v654
        %675 = vst [vmem:[#allocation2 + $0x30] sm:$0xff] %v655
        %676 = vst [vmem:[#allocation2 + $0x38] sm:$0xff] %v656
        %677 = vst [vmem:[#allocation2 + $0x40] sm:$0xff] %v657
        %678 = vst [vmem:[#allocation2 + $0x48] sm:$0xff] %v658
        %s679 = scalar_lea.vmem %s266, 24 [#allocation4]
        %v680 = vld [vmem:[%s679] sm:$0xff]
        %v681 = vld [vmem:[%s679 + $0x8] sm:$0xff]
        %v682 = vld [vmem:[%s679 + $0x10] sm:$0xff]
        %v683 = vld [vmem:[%s1] sm:$0xff]
        %685 = vset.pattern.permute.xlu0 0
        %686 = vperm.xlu0 %685, %v683
        %v687 = vpop.permute.xlu0 %686
        %v689 = vmul.f32 %v680, %v687
        %v690 = vmul.f32 %v681, %v687
        %v691 = vmul.f32 %v682, %v687
        %v692 = vld [vmem:[%s2] sm:$0xff]
        %694 = vset.pattern.permute.xlu0 0
        %695 = vperm.xlu0 %694, %v692
        %v696 = vpop.permute.xlu0 %695
        %v698 = vadd.f32 %v689, %v696
        %v699 = vadd.f32 %v690, %v696
        %v700 = vadd.f32 %v691, %v696
        %v701 = vmax.f32 %v698, 0.0
        %v702 = vmax.f32 %v699, 0.0
        %v703 = vmax.f32 %v700, 0.0
        %v704 = vmul.f32 %v701, %v341
        %v705 = vmul.f32 %v702, %v345
        %v706 = vmul.f32 %v701, %v360
        %v707 = vmul.f32 %v702, %v364
        %v708 = vmul.f32 %v703, %v362
        %v709 = vmul.f32 %v701, %v381
        %v710 = vmul.f32 %v702, %v385
        %v711 = vmul.f32 %v703, %v383
        %v712 = vmul.f32 %v701, %v402
        %v713 = vmul.f32 %v702, %v406
        %v714 = vmul.f32 %v703, %v404
        %v715 = vmul.f32 %v701, %v423
        %v716 = vmul.f32 %v702, %v427
        %v717 = vmul.f32 %v703, %v425
        %v718 = vmul.f32 %v701, %v444
        %v719 = vmul.f32 %v702, %v448
        %v720 = vmul.f32 %v703, %v446
        %v721 = vmul.f32 %v701, %v465
        %v722 = vmul.f32 %v702, %v469
        %v723 = vmul.f32 %v703, %v467
        %v724 = vmul.f32 %v701, %v486
        %v725 = vmul.f32 %v702, %v490
        %v726 = vmul.f32 %v703, %v488
        %730 = vrot.lane.b32.xlu0 %v706, 127
        %v731 = vpop.permute.xlu0 %730
        %732 = vrot.lane.b32.xlu0 %v707, 127
        %v733 = vpop.permute.xlu0 %732
        %734 = vrot.lane.b32.xlu0 %v708, 127
        %v735 = vpop.permute.xlu0 %734
        %v736 = vsel %vm506, %v731, %v733
        %v737 = vsel %vm506, %v733, %v735
        %743 = vrot.lane.b32.xlu0 %v709, 126
        %v744 = vpop.permute.xlu0 %743
        %745 = vrot.lane.b32.xlu0 %v710, 126
        %v746 = vpop.permute.xlu0 %745
        %747 = vrot.lane.b32.xlu0 %v711, 126
        %v748 = vpop.permute.xlu0 %747
        %v749 = vsel %vm520, %v744, %v746
        %v750 = vsel %vm520, %v746, %v748
        %756 = vrot.lane.b32.xlu0 %v712, 112
        %v757 = vpop.permute.xlu0 %756
        %758 = vrot.lane.b32.xlu0 %v713, 112
        %v759 = vpop.permute.xlu0 %758
        %760 = vrot.lane.b32.xlu0 %v714, 112
        %v761 = vpop.permute.xlu0 %760
        %v762 = vsel %vm534, %v757, %v759
        %v763 = vsel %vm534, %v759, %v761
        %769 = vrot.lane.b32.xlu0 %v701, 111
        %v770 = vpop.permute.xlu0 %769
        %771 = vrot.lane.b32.xlu0 %v702, 111
        %v772 = vpop.permute.xlu0 %771
        %773 = vrot.lane.b32.xlu0 %v703, 111
        %v774 = vpop.permute.xlu0 %773
        %v775 = vsel %vm548, %v770, %v772
        %v776 = vsel %vm548, %v772, %v774
        %782 = vrot.lane.b32.xlu0 %v715, 110
        %v783 = vpop.permute.xlu0 %782
        %784 = vrot.lane.b32.xlu0 %v716, 110
        %v785 = vpop.permute.xlu0 %784
        %786 = vrot.lane.b32.xlu0 %v717, 110
        %v787 = vpop.permute.xlu0 %786
        %v788 = vsel %vm562, %v783, %v785
        %v789 = vsel %vm562, %v785, %v787
        %795 = vrot.lane.b32.xlu0 %v718, 96
        %v796 = vpop.permute.xlu0 %795
        %797 = vrot.lane.b32.xlu0 %v719, 96
        %v798 = vpop.permute.xlu0 %797
        %799 = vrot.lane.b32.xlu0 %v720, 96
        %v800 = vpop.permute.xlu0 %799
        %v801 = vsel %vm576, %v796, %v798
        %v802 = vsel %vm576, %v798, %v800
        %808 = vrot.lane.b32.xlu0 %v721, 95
        %v809 = vpop.permute.xlu0 %808
        %810 = vrot.lane.b32.xlu0 %v722, 95
        %v811 = vpop.permute.xlu0 %810
        %812 = vrot.lane.b32.xlu0 %v723, 95
        %v813 = vpop.permute.xlu0 %812
        %v814 = vsel %vm590, %v809, %v811
        %v815 = vsel %vm590, %v811, %v813
        %821 = vrot.lane.b32.xlu0 %v724, 94
        %v822 = vpop.permute.xlu0 %821
        %823 = vrot.lane.b32.xlu0 %v725, 94
        %v824 = vpop.permute.xlu0 %823
        %825 = vrot.lane.b32.xlu0 %v726, 94
        %v826 = vpop.permute.xlu0 %825
        %v827 = vsel %vm604, %v822, %v824
        %v828 = vsel %vm604, %v824, %v826
        %v831 = vpack.c.bf16 %v736, %v704
        %v832 = vpack.c.bf16 %v737, %v705
        %v833 = vpack.c.bf16 %v762, %v749
        %v834 = vpack.c.bf16 %v763, %v750
        %v835 = vpack.c.bf16 %v788, %v775
        %v836 = vpack.c.bf16 %v789, %v776
        %v837 = vpack.c.bf16 %v814, %v801
        %v838 = vpack.c.bf16 %v815, %v802
        %v839 = vpack.c.bf16 0.0, %v827
        %v840 = vpack.c.bf16 0.0, %v828
        %v851 = vunpack.c.l.b16 %v831
        %v852 = vunpack.c.l.b16 %v832
        %v853 = vunpack.c.h.b16 %v831
        %v854 = vunpack.c.h.b16 %v832
        %v855 = vunpack.c.l.b16 %v833
        %v856 = vunpack.c.l.b16 %v834
        %v857 = vunpack.c.h.b16 %v833
        %v858 = vunpack.c.h.b16 %v834
        %v859 = vunpack.c.l.b16 %v835
        %v860 = vunpack.c.l.b16 %v836
        %v861 = vunpack.c.h.b16 %v835
        %v862 = vunpack.c.h.b16 %v836
        %v863 = vunpack.c.l.b16 %v837
        %v864 = vunpack.c.l.b16 %v838
        %v865 = vunpack.c.h.b16 %v837
        %v866 = vunpack.c.h.b16 %v838
        %v867 = vunpack.c.l.b16 %v839
        %v868 = vunpack.c.l.b16 %v840
        %v869 = vunpack.c.h.b16 %v839
        %v870 = vunpack.c.h.b16 %v840
        %v871 = vpack.c.b16 %v852, %v851
        %v872 = vpack.c.b16 %v854, %v853
        %v873 = vpack.c.b16 %v856, %v855
        %v874 = vpack.c.b16 %v858, %v857
        %v875 = vpack.c.b16 %v860, %v859
        %v876 = vpack.c.b16 %v862, %v861
        %v877 = vpack.c.b16 %v864, %v863
        %v878 = vpack.c.b16 %v866, %v865
        %v879 = vpack.c.b16 %v868, %v867
        %v880 = vpack.c.b16 %v870, %v869
        %s891 = scalar_lea.vmem [#allocation2], 80
        %892 = vst [vmem:[%s891] sm:$0xff] %v871
        %893 = vst [vmem:[%s891 + $0x8] sm:$0xff] %v872
        %894 = vst [vmem:[%s891 + $0x10] sm:$0xff] %v873
        %895 = vst [vmem:[%s891 + $0x18] sm:$0xff] %v874
        %896 = vst [vmem:[%s891 + $0x20] sm:$0xff] %v875
        %897 = vst [vmem:[%s891 + $0x28] sm:$0xff] %v876
        %898 = vst [vmem:[%s891 + $0x30] sm:$0xff] %v877
        %899 = vst [vmem:[%s891 + $0x38] sm:$0xff] %v878
        %900 = vst [vmem:[%s891 + $0x40] sm:$0xff] %v879
        %901 = vst [vmem:[%s891 + $0x48] sm:$0xff] %v880
        %s902 = scalar_lea.vmem %s266, 48 [#allocation4]
        %v903 = vld [vmem:[%s902] sm:$0xff]
        %v904 = vld [vmem:[%s902 + $0x8] sm:$0xff]
        %v905 = vld [vmem:[%s902 + $0x10] sm:$0xff]
        %v906 = vld [vmem:[%s1] sm:$0xff]
        %908 = vset.pattern.permute.xlu0 0
        %909 = vperm.xlu0 %908, %v906
        %v910 = vpop.permute.xlu0 %909
        %v912 = vmul.f32 %v903, %v910
        %v913 = vmul.f32 %v904, %v910
        %v914 = vmul.f32 %v905, %v910
        %v915 = vld [vmem:[%s2] sm:$0xff]
        %917 = vset.pattern.permute.xlu0 0
        %918 = vperm.xlu0 %917, %v915
        %v919 = vpop.permute.xlu0 %918
        %v921 = vadd.f32 %v912, %v919
        %v922 = vadd.f32 %v913, %v919
        %v923 = vadd.f32 %v914, %v919
        %v924 = vmax.f32 %v921, 0.0
        %v925 = vmax.f32 %v922, 0.0
        %v926 = vmax.f32 %v923, 0.0
        %v927 = vmul.f32 %v924, %v341
        %v928 = vmul.f32 %v925, %v345
        %v929 = vmul.f32 %v924, %v360
        %v930 = vmul.f32 %v925, %v364
        %v931 = vmul.f32 %v926, %v362
        %v932 = vmul.f32 %v924, %v381
        %v933 = vmul.f32 %v925, %v385
        %v934 = vmul.f32 %v926, %v383
        %v935 = vmul.f32 %v924, %v402
        %v936 = vmul.f32 %v925, %v406
        %v937 = vmul.f32 %v926, %v404
        %v938 = vmul.f32 %v924, %v423
        %v939 = vmul.f32 %v925, %v427
        %v940 = vmul.f32 %v926, %v425
        %v941 = vmul.f32 %v924, %v444
        %v942 = vmul.f32 %v925, %v448
        %v943 = vmul.f32 %v926, %v446
        %v944 = vmul.f32 %v924, %v465
        %v945 = vmul.f32 %v925, %v469
        %v946 = vmul.f32 %v926, %v467
        %v947 = vmul.f32 %v924, %v486
        %v948 = vmul.f32 %v925, %v490
        %v949 = vmul.f32 %v926, %v488
        %953 = vrot.lane.b32.xlu0 %v929, 127
        %v954 = vpop.permute.xlu0 %953
        %955 = vrot.lane.b32.xlu0 %v930, 127
        %v956 = vpop.permute.xlu0 %955
        %957 = vrot.lane.b32.xlu0 %v931, 127
        %v958 = vpop.permute.xlu0 %957
        %v959 = vsel %vm506, %v954, %v956
        %v960 = vsel %vm506, %v956, %v958
        %966 = vrot.lane.b32.xlu0 %v932, 126
        %v967 = vpop.permute.xlu0 %966
        %968 = vrot.lane.b32.xlu0 %v933, 126
        %v969 = vpop.permute.xlu0 %968
        %970 = vrot.lane.b32.xlu0 %v934, 126
        %v971 = vpop.permute.xlu0 %970
        %v972 = vsel %vm520, %v967, %v969
        %v973 = vsel %vm520, %v969, %v971
        %979 = vrot.lane.b32.xlu0 %v935, 112
        %v980 = vpop.permute.xlu0 %979
        %981 = vrot.lane.b32.xlu0 %v936, 112
        %v982 = vpop.permute.xlu0 %981
        %983 = vrot.lane.b32.xlu0 %v937, 112
        %v984 = vpop.permute.xlu0 %983
        %v985 = vsel %vm534, %v980, %v982
        %v986 = vsel %vm534, %v982, %v984
        %992 = vrot.lane.b32.xlu0 %v924, 111
        %v993 = vpop.permute.xlu0 %992
        %994 = vrot.lane.b32.xlu0 %v925, 111
        %v995 = vpop.permute.xlu0 %994
        %996 = vrot.lane.b32.xlu0 %v926, 111
        %v997 = vpop.permute.xlu0 %996
        %v998 = vsel %vm548, %v993, %v995
        %v999 = vsel %vm548, %v995, %v997
        %1005 = vrot.lane.b32.xlu0 %v938, 110
        %v1006 = vpop.permute.xlu0 %1005
        %1007 = vrot.lane.b32.xlu0 %v939, 110
        %v1008 = vpop.permute.xlu0 %1007
        %1009 = vrot.lane.b32.xlu0 %v940, 110
        %v1010 = vpop.permute.xlu0 %1009
        %v1011 = vsel %vm562, %v1006, %v1008
        %v1012 = vsel %vm562, %v1008, %v1010
        %1018 = vrot.lane.b32.xlu0 %v941, 96
        %v1019 = vpop.permute.xlu0 %1018
        %1020 = vrot.lane.b32.xlu0 %v942, 96
        %v1021 = vpop.permute.xlu0 %1020
        %1022 = vrot.lane.b32.xlu0 %v943, 96
        %v1023 = vpop.permute.xlu0 %1022
        %v1024 = vsel %vm576, %v1019, %v1021
        %v1025 = vsel %vm576, %v1021, %v1023
        %1031 = vrot.lane.b32.xlu0 %v944, 95
        %v1032 = vpop.permute.xlu0 %1031
        %1033 = vrot.lane.b32.xlu0 %v945, 95
        %v1034 = vpop.permute.xlu0 %1033
        %1035 = vrot.lane.b32.xlu0 %v946, 95
        %v1036 = vpop.permute.xlu0 %1035
        %v1037 = vsel %vm590, %v1032, %v1034
        %v1038 = vsel %vm590, %v1034, %v1036
        %1044 = vrot.lane.b32.xlu0 %v947, 94
        %v1045 = vpop.permute.xlu0 %1044
        %1046 = vrot.lane.b32.xlu0 %v948, 94
        %v1047 = vpop.permute.xlu0 %1046
        %1048 = vrot.lane.b32.xlu0 %v949, 94
        %v1049 = vpop.permute.xlu0 %1048
        %v1050 = vsel %vm604, %v1045, %v1047
        %v1051 = vsel %vm604, %v1047, %v1049
        %v1054 = vpack.c.bf16 %v959, %v927
        %v1055 = vpack.c.bf16 %v960, %v928
        %v1056 = vpack.c.bf16 %v985, %v972
        %v1057 = vpack.c.bf16 %v986, %v973
        %v1058 = vpack.c.bf16 %v1011, %v998
        %v1059 = vpack.c.bf16 %v1012, %v999
        %v1060 = vpack.c.bf16 %v1037, %v1024
        %v1061 = vpack.c.bf16 %v1038, %v1025
        %v1062 = vpack.c.bf16 0.0, %v1050
        %v1063 = vpack.c.bf16 0.0, %v1051
        %v1074 = vunpack.c.l.b16 %v1054
        %v1075 = vunpack.c.l.b16 %v1055
        %v1076 = vunpack.c.h.b16 %v1054
        %v1077 = vunpack.c.h.b16 %v1055
        %v1078 = vunpack.c.l.b16 %v1056
        %v1079 = vunpack.c.l.b16 %v1057
        %v1080 = vunpack.c.h.b16 %v1056
        %v1081 = vunpack.c.h.b16 %v1057
        %v1082 = vunpack.c.l.b16 %v1058
        %v1083 = vunpack.c.l.b16 %v1059
        %v1084 = vunpack.c.h.b16 %v1058
        %v1085 = vunpack.c.h.b16 %v1059
        %v1086 = vunpack.c.l.b16 %v1060
        %v1087 = vunpack.c.l.b16 %v1061
        %v1088 = vunpack.c.h.b16 %v1060
        %v1089 = vunpack.c.h.b16 %v1061
        %v1090 = vunpack.c.l.b16 %v1062
        %v1091 = vunpack.c.l.b16 %v1063
        %v1092 = vunpack.c.h.b16 %v1062
        %v1093 = vunpack.c.h.b16 %v1063
        %v1094 = vpack.c.b16 %v1075, %v1074
        %v1095 = vpack.c.b16 %v1077, %v1076
        %v1096 = vpack.c.b16 %v1079, %v1078
        %v1097 = vpack.c.b16 %v1081, %v1080
        %v1098 = vpack.c.b16 %v1083, %v1082
        %v1099 = vpack.c.b16 %v1085, %v1084
        %v1100 = vpack.c.b16 %v1087, %v1086
        %v1101 = vpack.c.b16 %v1089, %v1088
        %v1102 = vpack.c.b16 %v1091, %v1090
        %v1103 = vpack.c.b16 %v1093, %v1092
        %s1114 = scalar_lea.vmem [#allocation2], 160
        %1115 = vst [vmem:[%s1114] sm:$0xff] %v1094
        %1116 = vst [vmem:[%s1114 + $0x8] sm:$0xff] %v1095
        %1117 = vst [vmem:[%s1114 + $0x10] sm:$0xff] %v1096
        %1118 = vst [vmem:[%s1114 + $0x18] sm:$0xff] %v1097
        %1119 = vst [vmem:[%s1114 + $0x20] sm:$0xff] %v1098
        %1120 = vst [vmem:[%s1114 + $0x28] sm:$0xff] %v1099
        %1121 = vst [vmem:[%s1114 + $0x30] sm:$0xff] %v1100
        %1122 = vst [vmem:[%s1114 + $0x38] sm:$0xff] %v1101
        %1123 = vst [vmem:[%s1114 + $0x40] sm:$0xff] %v1102
        %1124 = vst [vmem:[%s1114 + $0x48] sm:$0xff] %v1103
        %s1125 = scalar_lea.vmem %s266, 72 [#allocation4]
        %v1126 = vld [vmem:[%s1125] sm:$0xff]
        %v1127 = vld [vmem:[%s1125 + $0x8] sm:$0xff]
        %v1128 = vld [vmem:[%s1125 + $0x10] sm:$0xff]
        %v1129 = vld [vmem:[%s1] sm:$0xff]
        %1131 = vset.pattern.permute.xlu0 0
        %1132 = vperm.xlu0 %1131, %v1129
        %v1133 = vpop.permute.xlu0 %1132
        %v1135 = vmul.f32 %v1126, %v1133
        %v1136 = vmul.f32 %v1127, %v1133
        %v1137 = vmul.f32 %v1128, %v1133
        %v1138 = vld [vmem:[%s2] sm:$0xff]
        %1140 = vset.pattern.permute.xlu0 0
        %1141 = vperm.xlu0 %1140, %v1138
        %v1142 = vpop.permute.xlu0 %1141
        %v1144 = vadd.f32 %v1135, %v1142
        %v1145 = vadd.f32 %v1136, %v1142
        %v1146 = vadd.f32 %v1137, %v1142
        %v1147 = vmax.f32 %v1144, 0.0
        %v1148 = vmax.f32 %v1145, 0.0
        %v1149 = vmax.f32 %v1146, 0.0
        %v1150 = vmul.f32 %v1147, %v341
        %v1151 = vmul.f32 %v1148, %v345
        %v1152 = vmul.f32 %v1147, %v360
        %v1153 = vmul.f32 %v1148, %v364
        %v1154 = vmul.f32 %v1149, %v362
        %v1155 = vmul.f32 %v1147, %v381
        %v1156 = vmul.f32 %v1148, %v385
        %v1157 = vmul.f32 %v1149, %v383
        %v1158 = vmul.f32 %v1147, %v402
        %v1159 = vmul.f32 %v1148, %v406
        %v1160 = vmul.f32 %v1149, %v404
        %v1161 = vmul.f32 %v1147, %v423
        %v1162 = vmul.f32 %v1148, %v427
        %v1163 = vmul.f32 %v1149, %v425
        %v1164 = vmul.f32 %v1147, %v444
        %v1165 = vmul.f32 %v1148, %v448
        %v1166 = vmul.f32 %v1149, %v446
        %v1167 = vmul.f32 %v1147, %v465
        %v1168 = vmul.f32 %v1148, %v469
        %v1169 = vmul.f32 %v1149, %v467
        %v1170 = vmul.f32 %v1147, %v486
        %v1171 = vmul.f32 %v1148, %v490
        %v1172 = vmul.f32 %v1149, %v488
        %1176 = vrot.lane.b32.xlu0 %v1152, 127
        %v1177 = vpop.permute.xlu0 %1176
        %1178 = vrot.lane.b32.xlu0 %v1153, 127
        %v1179 = vpop.permute.xlu0 %1178
        %1180 = vrot.lane.b32.xlu0 %v1154, 127
        %v1181 = vpop.permute.xlu0 %1180
        %v1182 = vsel %vm506, %v1177, %v1179
        %v1183 = vsel %vm506, %v1179, %v1181
        %1189 = vrot.lane.b32.xlu0 %v1155, 126
        %v1190 = vpop.permute.xlu0 %1189
        %1191 = vrot.lane.b32.xlu0 %v1156, 126
        %v1192 = vpop.permute.xlu0 %1191
        %1193 = vrot.lane.b32.xlu0 %v1157, 126
        %v1194 = vpop.permute.xlu0 %1193
        %v1195 = vsel %vm520, %v1190, %v1192
        %v1196 = vsel %vm520, %v1192, %v1194
        %1202 = vrot.lane.b32.xlu0 %v1158, 112
        %v1203 = vpop.permute.xlu0 %1202
        %1204 = vrot.lane.b32.xlu0 %v1159, 112
        %v1205 = vpop.permute.xlu0 %1204
        %1206 = vrot.lane.b32.xlu0 %v1160, 112
        %v1207 = vpop.permute.xlu0 %1206
        %v1208 = vsel %vm534, %v1203, %v1205
        %v1209 = vsel %vm534, %v1205, %v1207
        %1215 = vrot.lane.b32.xlu0 %v1147, 111
        %v1216 = vpop.permute.xlu0 %1215
        %1217 = vrot.lane.b32.xlu0 %v1148, 111
        %v1218 = vpop.permute.xlu0 %1217
        %1219 = vrot.lane.b32.xlu0 %v1149, 111
        %v1220 = vpop.permute.xlu0 %1219
        %v1221 = vsel %vm548, %v1216, %v1218
        %v1222 = vsel %vm548, %v1218, %v1220
        %1228 = vrot.lane.b32.xlu0 %v1161, 110
        %v1229 = vpop.permute.xlu0 %1228
        %1230 = vrot.lane.b32.xlu0 %v1162, 110
        %v1231 = vpop.permute.xlu0 %1230
        %1232 = vrot.lane.b32.xlu0 %v1163, 110
        %v1233 = vpop.permute.xlu0 %1232
        %v1234 = vsel %vm562, %v1229, %v1231
        %v1235 = vsel %vm562, %v1231, %v1233
        %1241 = vrot.lane.b32.xlu0 %v1164, 96
        %v1242 = vpop.permute.xlu0 %1241
        %1243 = vrot.lane.b32.xlu0 %v1165, 96
        %v1244 = vpop.permute.xlu0 %1243
        %1245 = vrot.lane.b32.xlu0 %v1166, 96
        %v1246 = vpop.permute.xlu0 %1245
        %v1247 = vsel %vm576, %v1242, %v1244
        %v1248 = vsel %vm576, %v1244, %v1246
        %1254 = vrot.lane.b32.xlu0 %v1167, 95
        %v1255 = vpop.permute.xlu0 %1254
        %1256 = vrot.lane.b32.xlu0 %v1168, 95
        %v1257 = vpop.permute.xlu0 %1256
        %1258 = vrot.lane.b32.xlu0 %v1169, 95
        %v1259 = vpop.permute.xlu0 %1258
        %v1260 = vsel %vm590, %v1255, %v1257
        %v1261 = vsel %vm590, %v1257, %v1259
        %1267 = vrot.lane.b32.xlu0 %v1170, 94
        %v1268 = vpop.permute.xlu0 %1267
        %1269 = vrot.lane.b32.xlu0 %v1171, 94
        %v1270 = vpop.permute.xlu0 %1269
        %1271 = vrot.lane.b32.xlu0 %v1172, 94
        %v1272 = vpop.permute.xlu0 %1271
        %v1273 = vsel %vm604, %v1268, %v1270
        %v1274 = vsel %vm604, %v1270, %v1272
        %v1277 = vpack.c.bf16 %v1182, %v1150
        %v1278 = vpack.c.bf16 %v1183, %v1151
        %v1279 = vpack.c.bf16 %v1208, %v1195
        %v1280 = vpack.c.bf16 %v1209, %v1196
        %v1281 = vpack.c.bf16 %v1234, %v1221
        %v1282 = vpack.c.bf16 %v1235, %v1222
        %v1283 = vpack.c.bf16 %v1260, %v1247
        %v1284 = vpack.c.bf16 %v1261, %v1248
        %v1285 = vpack.c.bf16 0.0, %v1273
        %v1286 = vpack.c.bf16 0.0, %v1274
        %v1297 = vunpack.c.l.b16 %v1277
        %v1298 = vunpack.c.l.b16 %v1278
        %v1299 = vunpack.c.h.b16 %v1277
        %v1300 = vunpack.c.h.b16 %v1278
        %v1301 = vunpack.c.l.b16 %v1279
        %v1302 = vunpack.c.l.b16 %v1280
        %v1303 = vunpack.c.h.b16 %v1279
        %v1304 = vunpack.c.h.b16 %v1280
        %v1305 = vunpack.c.l.b16 %v1281
        %v1306 = vunpack.c.l.b16 %v1282
        %v1307 = vunpack.c.h.b16 %v1281
        %v1308 = vunpack.c.h.b16 %v1282
        %v1309 = vunpack.c.l.b16 %v1283
        %v1310 = vunpack.c.l.b16 %v1284
        %v1311 = vunpack.c.h.b16 %v1283
        %v1312 = vunpack.c.h.b16 %v1284
        %v1313 = vunpack.c.l.b16 %v1285
        %v1314 = vunpack.c.l.b16 %v1286
        %v1315 = vunpack.c.h.b16 %v1285
        %v1316 = vunpack.c.h.b16 %v1286
        %v1317 = vpack.c.b16 %v1298, %v1297
        %v1318 = vpack.c.b16 %v1300, %v1299
        %v1319 = vpack.c.b16 %v1302, %v1301
        %v1320 = vpack.c.b16 %v1304, %v1303
        %v1321 = vpack.c.b16 %v1306, %v1305
        %v1322 = vpack.c.b16 %v1308, %v1307
        %v1323 = vpack.c.b16 %v1310, %v1309
        %v1324 = vpack.c.b16 %v1312, %v1311
        %v1325 = vpack.c.b16 %v1314, %v1313
        %v1326 = vpack.c.b16 %v1316, %v1315
        %s1337 = scalar_lea.vmem [#allocation2], 240
        %1338 = vst [vmem:[%s1337] sm:$0xff] %v1317
        %1339 = vst [vmem:[%s1337 + $0x8] sm:$0xff] %v1318
        %1340 = vst [vmem:[%s1337 + $0x10] sm:$0xff] %v1319
        %1341 = vst [vmem:[%s1337 + $0x18] sm:$0xff] %v1320
        %1342 = vst [vmem:[%s1337 + $0x20] sm:$0xff] %v1321
        %1343 = vst [vmem:[%s1337 + $0x28] sm:$0xff] %v1322
        %1344 = vst [vmem:[%s1337 + $0x30] sm:$0xff] %v1323
        %1345 = vst [vmem:[%s1337 + $0x38] sm:$0xff] %v1324
        %1346 = vst [vmem:[%s1337 + $0x40] sm:$0xff] %v1325
        %1347 = vst [vmem:[%s1337 + $0x48] sm:$0xff] %v1326
        %s1348 = scalar_lea.vmem %s266, 96 [#allocation4]
        %v1349 = vld [vmem:[%s1348] sm:$0xff]
        %v1350 = vld [vmem:[%s1348 + $0x8] sm:$0xff]
        %v1351 = vld [vmem:[%s1348 + $0x10] sm:$0xff]
        %v1352 = vld [vmem:[%s1] sm:$0xff]
        %1354 = vset.pattern.permute.xlu0 0
        %1355 = vperm.xlu0 %1354, %v1352
        %v1356 = vpop.permute.xlu0 %1355
        %v1358 = vmul.f32 %v1349, %v1356
        %v1359 = vmul.f32 %v1350, %v1356
        %v1360 = vmul.f32 %v1351, %v1356
        %v1361 = vld [vmem:[%s2] sm:$0xff]
        %1363 = vset.pattern.permute.xlu0 0
        %1364 = vperm.xlu0 %1363, %v1361
        %v1365 = vpop.permute.xlu0 %1364
        %v1367 = vadd.f32 %v1358, %v1365
        %v1368 = vadd.f32 %v1359, %v1365
        %v1369 = vadd.f32 %v1360, %v1365
        %v1370 = vmax.f32 %v1367, 0.0
        %v1371 = vmax.f32 %v1368, 0.0
        %v1372 = vmax.f32 %v1369, 0.0
        %v1373 = vmul.f32 %v1370, %v341
        %v1374 = vmul.f32 %v1371, %v345
        %v1375 = vmul.f32 %v1370, %v360
        %v1376 = vmul.f32 %v1371, %v364
        %v1377 = vmul.f32 %v1372, %v362
        %v1378 = vmul.f32 %v1370, %v381
        %v1379 = vmul.f32 %v1371, %v385
        %v1380 = vmul.f32 %v1372, %v383
        %v1381 = vmul.f32 %v1370, %v402
        %v1382 = vmul.f32 %v1371, %v406
        %v1383 = vmul.f32 %v1372, %v404
        %v1384 = vmul.f32 %v1370, %v423
        %v1385 = vmul.f32 %v1371, %v427
        %v1386 = vmul.f32 %v1372, %v425
        %v1387 = vmul.f32 %v1370, %v444
        %v1388 = vmul.f32 %v1371, %v448
        %v1389 = vmul.f32 %v1372, %v446
        %v1390 = vmul.f32 %v1370, %v465
        %v1391 = vmul.f32 %v1371, %v469
        %v1392 = vmul.f32 %v1372, %v467
        %v1393 = vmul.f32 %v1370, %v486
        %v1394 = vmul.f32 %v1371, %v490
        %v1395 = vmul.f32 %v1372, %v488
        %1399 = vrot.lane.b32.xlu0 %v1375, 127
        %v1400 = vpop.permute.xlu0 %1399
        %1401 = vrot.lane.b32.xlu0 %v1376, 127
        %v1402 = vpop.permute.xlu0 %1401
        %1403 = vrot.lane.b32.xlu0 %v1377, 127
        %v1404 = vpop.permute.xlu0 %1403
        %v1405 = vsel %vm506, %v1400, %v1402
        %v1406 = vsel %vm506, %v1402, %v1404
        %1412 = vrot.lane.b32.xlu0 %v1378, 126
        %v1413 = vpop.permute.xlu0 %1412
        %1414 = vrot.lane.b32.xlu0 %v1379, 126
        %v1415 = vpop.permute.xlu0 %1414
        %1416 = vrot.lane.b32.xlu0 %v1380, 126
        %v1417 = vpop.permute.xlu0 %1416
        %v1418 = vsel %vm520, %v1413, %v1415
        %v1419 = vsel %vm520, %v1415, %v1417
        %1425 = vrot.lane.b32.xlu0 %v1381, 112
        %v1426 = vpop.permute.xlu0 %1425
        %1427 = vrot.lane.b32.xlu0 %v1382, 112
        %v1428 = vpop.permute.xlu0 %1427
        %1429 = vrot.lane.b32.xlu0 %v1383, 112
        %v1430 = vpop.permute.xlu0 %1429
        %v1431 = vsel %vm534, %v1426, %v1428
        %v1432 = vsel %vm534, %v1428, %v1430
        %1438 = vrot.lane.b32.xlu0 %v1370, 111
        %v1439 = vpop.permute.xlu0 %1438
        %1440 = vrot.lane.b32.xlu0 %v1371, 111
        %v1441 = vpop.permute.xlu0 %1440
        %1442 = vrot.lane.b32.xlu0 %v1372, 111
        %v1443 = vpop.permute.xlu0 %1442
        %v1444 = vsel %vm548, %v1439, %v1441
        %v1445 = vsel %vm548, %v1441, %v1443
        %1451 = vrot.lane.b32.xlu0 %v1384, 110
        %v1452 = vpop.permute.xlu0 %1451
        %1453 = vrot.lane.b32.xlu0 %v1385, 110
        %v1454 = vpop.permute.xlu0 %1453
        %1455 = vrot.lane.b32.xlu0 %v1386, 110
        %v1456 = vpop.permute.xlu0 %1455
        %v1457 = vsel %vm562, %v1452, %v1454
        %v1458 = vsel %vm562, %v1454, %v1456
        %1464 = vrot.lane.b32.xlu0 %v1387, 96
        %v1465 = vpop.permute.xlu0 %1464
        %1466 = vrot.lane.b32.xlu0 %v1388, 96
        %v1467 = vpop.permute.xlu0 %1466
        %1468 = vrot.lane.b32.xlu0 %v1389, 96
        %v1469 = vpop.permute.xlu0 %1468
        %v1470 = vsel %vm576, %v1465, %v1467
        %v1471 = vsel %vm576, %v1467, %v1469
        %1477 = vrot.lane.b32.xlu0 %v1390, 95
        %v1478 = vpop.permute.xlu0 %1477
        %1479 = vrot.lane.b32.xlu0 %v1391, 95
        %v1480 = vpop.permute.xlu0 %1479
        %1481 = vrot.lane.b32.xlu0 %v1392, 95
        %v1482 = vpop.permute.xlu0 %1481
        %v1483 = vsel %vm590, %v1478, %v1480
        %v1484 = vsel %vm590, %v1480, %v1482
        %1490 = vrot.lane.b32.xlu0 %v1393, 94
        %v1491 = vpop.permute.xlu0 %1490
        %1492 = vrot.lane.b32.xlu0 %v1394, 94
        %v1493 = vpop.permute.xlu0 %1492
        %1494 = vrot.lane.b32.xlu0 %v1395, 94
        %v1495 = vpop.permute.xlu0 %1494
        %v1496 = vsel %vm604, %v1491, %v1493
        %v1497 = vsel %vm604, %v1493, %v1495
        %v1500 = vpack.c.bf16 %v1405, %v1373
        %v1501 = vpack.c.bf16 %v1406, %v1374
        %v1502 = vpack.c.bf16 %v1431, %v1418
        %v1503 = vpack.c.bf16 %v1432, %v1419
        %v1504 = vpack.c.bf16 %v1457, %v1444
        %v1505 = vpack.c.bf16 %v1458, %v1445
        %v1506 = vpack.c.bf16 %v1483, %v1470
        %v1507 = vpack.c.bf16 %v1484, %v1471
        %v1508 = vpack.c.bf16 0.0, %v1496
        %v1509 = vpack.c.bf16 0.0, %v1497
        %v1520 = vunpack.c.l.b16 %v1500
        %v1521 = vunpack.c.l.b16 %v1501
        %v1522 = vunpack.c.h.b16 %v1500
        %v1523 = vunpack.c.h.b16 %v1501
        %v1524 = vunpack.c.l.b16 %v1502
        %v1525 = vunpack.c.l.b16 %v1503
        %v1526 = vunpack.c.h.b16 %v1502
        %v1527 = vunpack.c.h.b16 %v1503
        %v1528 = vunpack.c.l.b16 %v1504
        %v1529 = vunpack.c.l.b16 %v1505
        %v1530 = vunpack.c.h.b16 %v1504
        %v1531 = vunpack.c.h.b16 %v1505
        %v1532 = vunpack.c.l.b16 %v1506
        %v1533 = vunpack.c.l.b16 %v1507
        %v1534 = vunpack.c.h.b16 %v1506
        %v1535 = vunpack.c.h.b16 %v1507
        %v1536 = vunpack.c.l.b16 %v1508
        %v1537 = vunpack.c.l.b16 %v1509
        %v1538 = vunpack.c.h.b16 %v1508
        %v1539 = vunpack.c.h.b16 %v1509
        %v1540 = vpack.c.b16 %v1521, %v1520
        %v1541 = vpack.c.b16 %v1523, %v1522
        %v1542 = vpack.c.b16 %v1525, %v1524
        %v1543 = vpack.c.b16 %v1527, %v1526
        %v1544 = vpack.c.b16 %v1529, %v1528
        %v1545 = vpack.c.b16 %v1531, %v1530
        %v1546 = vpack.c.b16 %v1533, %v1532
        %v1547 = vpack.c.b16 %v1535, %v1534
        %v1548 = vpack.c.b16 %v1537, %v1536
        %v1549 = vpack.c.b16 %v1539, %v1538
        %s1560 = scalar_lea.vmem [#allocation2], 320
        %1561 = vst [vmem:[%s1560] sm:$0xff] %v1540
        %1562 = vst [vmem:[%s1560 + $0x8] sm:$0xff] %v1541
        %1563 = vst [vmem:[%s1560 + $0x10] sm:$0xff] %v1542
        %1564 = vst [vmem:[%s1560 + $0x18] sm:$0xff] %v1543
        %1565 = vst [vmem:[%s1560 + $0x20] sm:$0xff] %v1544
        %1566 = vst [vmem:[%s1560 + $0x28] sm:$0xff] %v1545
        %1567 = vst [vmem:[%s1560 + $0x30] sm:$0xff] %v1546
        %1568 = vst [vmem:[%s1560 + $0x38] sm:$0xff] %v1547
        %1569 = vst [vmem:[%s1560 + $0x40] sm:$0xff] %v1548
        %1570 = vst [vmem:[%s1560 + $0x48] sm:$0xff] %v1549
        %s1571 = scalar_lea.vmem %s266, 120 [#allocation4]
        %v1572 = vld [vmem:[%s1571] sm:$0xff]
        %v1573 = vld [vmem:[%s1571 + $0x8] sm:$0xff]
        %v1574 = vld [vmem:[%s1571 + $0x10] sm:$0xff]
        %v1575 = vld [vmem:[%s1] sm:$0xff]
        %1577 = vset.pattern.permute.xlu0 0
        %1578 = vperm.xlu0 %1577, %v1575
        %v1579 = vpop.permute.xlu0 %1578
        %v1581 = vmul.f32 %v1572, %v1579
        %v1582 = vmul.f32 %v1573, %v1579
        %v1583 = vmul.f32 %v1574, %v1579
        %v1584 = vld [vmem:[%s2] sm:$0xff]
        %1586 = vset.pattern.permute.xlu0 0
        %1587 = vperm.xlu0 %1586, %v1584
        %v1588 = vpop.permute.xlu0 %1587
        %v1590 = vadd.f32 %v1581, %v1588
        %v1591 = vadd.f32 %v1582, %v1588
        %v1592 = vadd.f32 %v1583, %v1588
        %v1593 = vmax.f32 %v1590, 0.0
        %v1594 = vmax.f32 %v1591, 0.0
        %v1595 = vmax.f32 %v1592, 0.0
        %v1596 = vmul.f32 %v1593, %v341
        %v1597 = vmul.f32 %v1594, %v345
        %v1598 = vmul.f32 %v1593, %v360
        %v1599 = vmul.f32 %v1594, %v364
        %v1600 = vmul.f32 %v1595, %v362
        %v1601 = vmul.f32 %v1593, %v381
        %v1602 = vmul.f32 %v1594, %v385
        %v1603 = vmul.f32 %v1595, %v383
        %v1604 = vmul.f32 %v1593, %v402
        %v1605 = vmul.f32 %v1594, %v406
        %v1606 = vmul.f32 %v1595, %v404
        %v1607 = vmul.f32 %v1593, %v423
        %v1608 = vmul.f32 %v1594, %v427
        %v1609 = vmul.f32 %v1595, %v425
        %v1610 = vmul.f32 %v1593, %v444
        %v1611 = vmul.f32 %v1594, %v448
        %v1612 = vmul.f32 %v1595, %v446
        %v1613 = vmul.f32 %v1593, %v465
        %v1614 = vmul.f32 %v1594, %v469
        %v1615 = vmul.f32 %v1595, %v467
        %v1616 = vmul.f32 %v1593, %v486
        %v1617 = vmul.f32 %v1594, %v490
        %v1618 = vmul.f32 %v1595, %v488
        %1622 = vrot.lane.b32.xlu0 %v1598, 127
        %v1623 = vpop.permute.xlu0 %1622
        %1624 = vrot.lane.b32.xlu0 %v1599, 127
        %v1625 = vpop.permute.xlu0 %1624
        %1626 = vrot.lane.b32.xlu0 %v1600, 127
        %v1627 = vpop.permute.xlu0 %1626
        %v1628 = vsel %vm506, %v1623, %v1625
        %v1629 = vsel %vm506, %v1625, %v1627
        %1635 = vrot.lane.b32.xlu0 %v1601, 126
        %v1636 = vpop.permute.xlu0 %1635
        %1637 = vrot.lane.b32.xlu0 %v1602, 126
        %v1638 = vpop.permute.xlu0 %1637
        %1639 = vrot.lane.b32.xlu0 %v1603, 126
        %v1640 = vpop.permute.xlu0 %1639
        %v1641 = vsel %vm520, %v1636, %v1638
        %v1642 = vsel %vm520, %v1638, %v1640
        %1648 = vrot.lane.b32.xlu0 %v1604, 112
        %v1649 = vpop.permute.xlu0 %1648
        %1650 = vrot.lane.b32.xlu0 %v1605, 112
        %v1651 = vpop.permute.xlu0 %1650
        %1652 = vrot.lane.b32.xlu0 %v1606, 112
        %v1653 = vpop.permute.xlu0 %1652
        %v1654 = vsel %vm534, %v1649, %v1651
        %v1655 = vsel %vm534, %v1651, %v1653
        %1661 = vrot.lane.b32.xlu0 %v1593, 111
        %v1662 = vpop.permute.xlu0 %1661
        %1663 = vrot.lane.b32.xlu0 %v1594, 111
        %v1664 = vpop.permute.xlu0 %1663
        %1665 = vrot.lane.b32.xlu0 %v1595, 111
        %v1666 = vpop.permute.xlu0 %1665
        %v1667 = vsel %vm548, %v1662, %v1664
        %v1668 = vsel %vm548, %v1664, %v1666
        %1674 = vrot.lane.b32.xlu0 %v1607, 110
        %v1675 = vpop.permute.xlu0 %1674
        %1676 = vrot.lane.b32.xlu0 %v1608, 110
        %v1677 = vpop.permute.xlu0 %1676
        %1678 = vrot.lane.b32.xlu0 %v1609, 110
        %v1679 = vpop.permute.xlu0 %1678
        %v1680 = vsel %vm562, %v1675, %v1677
        %v1681 = vsel %vm562, %v1677, %v1679
        %1687 = vrot.lane.b32.xlu0 %v1610, 96
        %v1688 = vpop.permute.xlu0 %1687
        %1689 = vrot.lane.b32.xlu0 %v1611, 96
        %v1690 = vpop.permute.xlu0 %1689
        %1691 = vrot.lane.b32.xlu0 %v1612, 96
        %v1692 = vpop.permute.xlu0 %1691
        %v1693 = vsel %vm576, %v1688, %v1690
        %v1694 = vsel %vm576, %v1690, %v1692
        %1700 = vrot.lane.b32.xlu0 %v1613, 95
        %v1701 = vpop.permute.xlu0 %1700
        %1702 = vrot.lane.b32.xlu0 %v1614, 95
        %v1703 = vpop.permute.xlu0 %1702
        %1704 = vrot.lane.b32.xlu0 %v1615, 95
        %v1705 = vpop.permute.xlu0 %1704
        %v1706 = vsel %vm590, %v1701, %v1703
        %v1707 = vsel %vm590, %v1703, %v1705
        %1713 = vrot.lane.b32.xlu0 %v1616, 94
        %v1714 = vpop.permute.xlu0 %1713
        %1715 = vrot.lane.b32.xlu0 %v1617, 94
        %v1716 = vpop.permute.xlu0 %1715
        %1717 = vrot.lane.b32.xlu0 %v1618, 94
        %v1718 = vpop.permute.xlu0 %1717
        %v1719 = vsel %vm604, %v1714, %v1716
        %v1720 = vsel %vm604, %v1716, %v1718
        %v1723 = vpack.c.bf16 %v1628, %v1596
        %v1724 = vpack.c.bf16 %v1629, %v1597
        %v1725 = vpack.c.bf16 %v1654, %v1641
        %v1726 = vpack.c.bf16 %v1655, %v1642
        %v1727 = vpack.c.bf16 %v1680, %v1667
        %v1728 = vpack.c.bf16 %v1681, %v1668
        %v1729 = vpack.c.bf16 %v1706, %v1693
        %v1730 = vpack.c.bf16 %v1707, %v1694
        %v1731 = vpack.c.bf16 0.0, %v1719
        %v1732 = vpack.c.bf16 0.0, %v1720
        %v1743 = vunpack.c.l.b16 %v1723
        %v1744 = vunpack.c.l.b16 %v1724
        %v1745 = vunpack.c.h.b16 %v1723
        %v1746 = vunpack.c.h.b16 %v1724
        %v1747 = vunpack.c.l.b16 %v1725
        %v1748 = vunpack.c.l.b16 %v1726
        %v1749 = vunpack.c.h.b16 %v1725
        %v1750 = vunpack.c.h.b16 %v1726
        %v1751 = vunpack.c.l.b16 %v1727
        %v1752 = vunpack.c.l.b16 %v1728
        %v1753 = vunpack.c.h.b16 %v1727
        %v1754 = vunpack.c.h.b16 %v1728
        %v1755 = vunpack.c.l.b16 %v1729
        %v1756 = vunpack.c.l.b16 %v1730
        %v1757 = vunpack.c.h.b16 %v1729
        %v1758 = vunpack.c.h.b16 %v1730
        %v1759 = vunpack.c.l.b16 %v1731
        %v1760 = vunpack.c.l.b16 %v1732
        %v1761 = vunpack.c.h.b16 %v1731
        %v1762 = vunpack.c.h.b16 %v1732
        %v1763 = vpack.c.b16 %v1744, %v1743
        %v1764 = vpack.c.b16 %v1746, %v1745
        %v1765 = vpack.c.b16 %v1748, %v1747
        %v1766 = vpack.c.b16 %v1750, %v1749
        %v1767 = vpack.c.b16 %v1752, %v1751
        %v1768 = vpack.c.b16 %v1754, %v1753
        %v1769 = vpack.c.b16 %v1756, %v1755
        %v1770 = vpack.c.b16 %v1758, %v1757
        %v1771 = vpack.c.b16 %v1760, %v1759
        %v1772 = vpack.c.b16 %v1762, %v1761
        %s1783 = scalar_lea.vmem [#allocation2], 400
        %1784 = vst [vmem:[%s1783] sm:$0xff] %v1763
        %1785 = vst [vmem:[%s1783 + $0x8] sm:$0xff] %v1764
        %1786 = vst [vmem:[%s1783 + $0x10] sm:$0xff] %v1765
        %1787 = vst [vmem:[%s1783 + $0x18] sm:$0xff] %v1766
        %1788 = vst [vmem:[%s1783 + $0x20] sm:$0xff] %v1767
        %1789 = vst [vmem:[%s1783 + $0x28] sm:$0xff] %v1768
        %1790 = vst [vmem:[%s1783 + $0x30] sm:$0xff] %v1769
        %1791 = vst [vmem:[%s1783 + $0x38] sm:$0xff] %v1770
        %1792 = vst [vmem:[%s1783 + $0x40] sm:$0xff] %v1771
        %1793 = vst [vmem:[%s1783 + $0x48] sm:$0xff] %v1772
        %s1794 = scalar_lea.vmem %s266, 144 [#allocation4]
        %v1795 = vld [vmem:[%s1794] sm:$0xff]
        %v1796 = vld [vmem:[%s1794 + $0x8] sm:$0xff]
        %v1797 = vld [vmem:[%s1794 + $0x10] sm:$0xff]
        %v1798 = vld [vmem:[%s1] sm:$0xff]
        %1800 = vset.pattern.permute.xlu0 0
        %1801 = vperm.xlu0 %1800, %v1798
        %v1802 = vpop.permute.xlu0 %1801
        %v1804 = vmul.f32 %v1795, %v1802
        %v1805 = vmul.f32 %v1796, %v1802
        %v1806 = vmul.f32 %v1797, %v1802
        %v1807 = vld [vmem:[%s2] sm:$0xff]
        %1809 = vset.pattern.permute.xlu0 0
        %1810 = vperm.xlu0 %1809, %v1807
        %v1811 = vpop.permute.xlu0 %1810
        %v1813 = vadd.f32 %v1804, %v1811
        %v1814 = vadd.f32 %v1805, %v1811
        %v1815 = vadd.f32 %v1806, %v1811
        %v1816 = vmax.f32 %v1813, 0.0
        %v1817 = vmax.f32 %v1814, 0.0
        %v1818 = vmax.f32 %v1815, 0.0
        %v1819 = vmul.f32 %v1816, %v341
        %v1820 = vmul.f32 %v1817, %v345
        %v1821 = vmul.f32 %v1816, %v360
        %v1822 = vmul.f32 %v1817, %v364
        %v1823 = vmul.f32 %v1818, %v362
        %v1824 = vmul.f32 %v1816, %v381
        %v1825 = vmul.f32 %v1817, %v385
        %v1826 = vmul.f32 %v1818, %v383
        %v1827 = vmul.f32 %v1816, %v402
        %v1828 = vmul.f32 %v1817, %v406
        %v1829 = vmul.f32 %v1818, %v404
        %v1830 = vmul.f32 %v1816, %v423
        %v1831 = vmul.f32 %v1817, %v427
        %v1832 = vmul.f32 %v1818, %v425
        %v1833 = vmul.f32 %v1816, %v444
        %v1834 = vmul.f32 %v1817, %v448
        %v1835 = vmul.f32 %v1818, %v446
        %v1836 = vmul.f32 %v1816, %v465
        %v1837 = vmul.f32 %v1817, %v469
        %v1838 = vmul.f32 %v1818, %v467
        %v1839 = vmul.f32 %v1816, %v486
        %v1840 = vmul.f32 %v1817, %v490
        %v1841 = vmul.f32 %v1818, %v488
        %1845 = vrot.lane.b32.xlu0 %v1821, 127
        %v1846 = vpop.permute.xlu0 %1845
        %1847 = vrot.lane.b32.xlu0 %v1822, 127
        %v1848 = vpop.permute.xlu0 %1847
        %1849 = vrot.lane.b32.xlu0 %v1823, 127
        %v1850 = vpop.permute.xlu0 %1849
        %v1851 = vsel %vm506, %v1846, %v1848
        %v1852 = vsel %vm506, %v1848, %v1850
        %1858 = vrot.lane.b32.xlu0 %v1824, 126
        %v1859 = vpop.permute.xlu0 %1858
        %1860 = vrot.lane.b32.xlu0 %v1825, 126
        %v1861 = vpop.permute.xlu0 %1860
        %1862 = vrot.lane.b32.xlu0 %v1826, 126
        %v1863 = vpop.permute.xlu0 %1862
        %v1864 = vsel %vm520, %v1859, %v1861
        %v1865 = vsel %vm520, %v1861, %v1863
        %1871 = vrot.lane.b32.xlu0 %v1827, 112
        %v1872 = vpop.permute.xlu0 %1871
        %1873 = vrot.lane.b32.xlu0 %v1828, 112
        %v1874 = vpop.permute.xlu0 %1873
        %1875 = vrot.lane.b32.xlu0 %v1829, 112
        %v1876 = vpop.permute.xlu0 %1875
        %v1877 = vsel %vm534, %v1872, %v1874
        %v1878 = vsel %vm534, %v1874, %v1876
        %1884 = vrot.lane.b32.xlu0 %v1816, 111
        %v1885 = vpop.permute.xlu0 %1884
        %1886 = vrot.lane.b32.xlu0 %v1817, 111
        %v1887 = vpop.permute.xlu0 %1886
        %1888 = vrot.lane.b32.xlu0 %v1818, 111
        %v1889 = vpop.permute.xlu0 %1888
        %v1890 = vsel %vm548, %v1885, %v1887
        %v1891 = vsel %vm548, %v1887, %v1889
        %1897 = vrot.lane.b32.xlu0 %v1830, 110
        %v1898 = vpop.permute.xlu0 %1897
        %1899 = vrot.lane.b32.xlu0 %v1831, 110
        %v1900 = vpop.permute.xlu0 %1899
        %1901 = vrot.lane.b32.xlu0 %v1832, 110
        %v1902 = vpop.permute.xlu0 %1901
        %v1903 = vsel %vm562, %v1898, %v1900
        %v1904 = vsel %vm562, %v1900, %v1902
        %1910 = vrot.lane.b32.xlu0 %v1833, 96
        %v1911 = vpop.permute.xlu0 %1910
        %1912 = vrot.lane.b32.xlu0 %v1834, 96
        %v1913 = vpop.permute.xlu0 %1912
        %1914 = vrot.lane.b32.xlu0 %v1835, 96
        %v1915 = vpop.permute.xlu0 %1914
        %v1916 = vsel %vm576, %v1911, %v1913
        %v1917 = vsel %vm576, %v1913, %v1915
        %1923 = vrot.lane.b32.xlu0 %v1836, 95
        %v1924 = vpop.permute.xlu0 %1923
        %1925 = vrot.lane.b32.xlu0 %v1837, 95
        %v1926 = vpop.permute.xlu0 %1925
        %1927 = vrot.lane.b32.xlu0 %v1838, 95
        %v1928 = vpop.permute.xlu0 %1927
        %v1929 = vsel %vm590, %v1924, %v1926
        %v1930 = vsel %vm590, %v1926, %v1928
        %1936 = vrot.lane.b32.xlu0 %v1839, 94
        %v1937 = vpop.permute.xlu0 %1936
        %1938 = vrot.lane.b32.xlu0 %v1840, 94
        %v1939 = vpop.permute.xlu0 %1938
        %1940 = vrot.lane.b32.xlu0 %v1841, 94
        %v1941 = vpop.permute.xlu0 %1940
        %v1942 = vsel %vm604, %v1937, %v1939
        %v1943 = vsel %vm604, %v1939, %v1941
        %v1946 = vpack.c.bf16 %v1851, %v1819
        %v1947 = vpack.c.bf16 %v1852, %v1820
        %v1948 = vpack.c.bf16 %v1877, %v1864
        %v1949 = vpack.c.bf16 %v1878, %v1865
        %v1950 = vpack.c.bf16 %v1903, %v1890
        %v1951 = vpack.c.bf16 %v1904, %v1891
        %v1952 = vpack.c.bf16 %v1929, %v1916
        %v1953 = vpack.c.bf16 %v1930, %v1917
        %v1954 = vpack.c.bf16 0.0, %v1942
        %v1955 = vpack.c.bf16 0.0, %v1943
        %v1966 = vunpack.c.l.b16 %v1946
        %v1967 = vunpack.c.l.b16 %v1947
        %v1968 = vunpack.c.h.b16 %v1946
        %v1969 = vunpack.c.h.b16 %v1947
        %v1970 = vunpack.c.l.b16 %v1948
        %v1971 = vunpack.c.l.b16 %v1949
        %v1972 = vunpack.c.h.b16 %v1948
        %v1973 = vunpack.c.h.b16 %v1949
        %v1974 = vunpack.c.l.b16 %v1950
        %v1975 = vunpack.c.l.b16 %v1951
        %v1976 = vunpack.c.h.b16 %v1950
        %v1977 = vunpack.c.h.b16 %v1951
        %v1978 = vunpack.c.l.b16 %v1952
        %v1979 = vunpack.c.l.b16 %v1953
        %v1980 = vunpack.c.h.b16 %v1952
        %v1981 = vunpack.c.h.b16 %v1953
        %v1982 = vunpack.c.l.b16 %v1954
        %v1983 = vunpack.c.l.b16 %v1955
        %v1984 = vunpack.c.h.b16 %v1954
        %v1985 = vunpack.c.h.b16 %v1955
        %v1986 = vpack.c.b16 %v1967, %v1966
        %v1987 = vpack.c.b16 %v1969, %v1968
        %v1988 = vpack.c.b16 %v1971, %v1970
        %v1989 = vpack.c.b16 %v1973, %v1972
        %v1990 = vpack.c.b16 %v1975, %v1974
        %v1991 = vpack.c.b16 %v1977, %v1976
        %v1992 = vpack.c.b16 %v1979, %v1978
        %v1993 = vpack.c.b16 %v1981, %v1980
        %v1994 = vpack.c.b16 %v1983, %v1982
        %v1995 = vpack.c.b16 %v1985, %v1984
        %s2006 = scalar_lea.vmem [#allocation2], 480
        %2007 = vst [vmem:[%s2006] sm:$0xff] %v1986
        %2008 = vst [vmem:[%s2006 + $0x8] sm:$0xff] %v1987
        %2009 = vst [vmem:[%s2006 + $0x10] sm:$0xff] %v1988
        %2010 = vst [vmem:[%s2006 + $0x18] sm:$0xff] %v1989
        %2011 = vst [vmem:[%s2006 + $0x20] sm:$0xff] %v1990
        %2012 = vst [vmem:[%s2006 + $0x28] sm:$0xff] %v1991
        %2013 = vst [vmem:[%s2006 + $0x30] sm:$0xff] %v1992
        %2014 = vst [vmem:[%s2006 + $0x38] sm:$0xff] %v1993
        %2015 = vst [vmem:[%s2006 + $0x40] sm:$0xff] %v1994
        %2016 = vst [vmem:[%s2006 + $0x48] sm:$0xff] %v1995
        %s2017 = scalar_lea.vmem %s266, 168 [#allocation4]
        %v2018 = vld [vmem:[%s2017] sm:$0xff]
        %v2019 = vld [vmem:[%s2017 + $0x8] sm:$0xff]
        %v2020 = vld [vmem:[%s2017 + $0x10] sm:$0xff]
        %v2021 = vld [vmem:[%s1] sm:$0xff]
        %2023 = vset.pattern.permute.xlu0 0
        %2024 = vperm.xlu0 %2023, %v2021
        %v2025 = vpop.permute.xlu0 %2024
        %v2027 = vmul.f32 %v2018, %v2025
        %v2028 = vmul.f32 %v2019, %v2025
        %v2029 = vmul.f32 %v2020, %v2025
        %v2030 = vld [vmem:[%s2] sm:$0xff]
        %2032 = vset.pattern.permute.xlu0 0
        %2033 = vperm.xlu0 %2032, %v2030
        %v2034 = vpop.permute.xlu0 %2033
        %v2036 = vadd.f32 %v2027, %v2034
        %v2037 = vadd.f32 %v2028, %v2034
        %v2038 = vadd.f32 %v2029, %v2034
        %v2039 = vmax.f32 %v2036, 0.0
        %v2040 = vmax.f32 %v2037, 0.0
        %v2041 = vmax.f32 %v2038, 0.0
        %v2042 = vmul.f32 %v2039, %v341
        %v2043 = vmul.f32 %v2040, %v345
        %v2044 = vmul.f32 %v2039, %v360
        %v2045 = vmul.f32 %v2040, %v364
        %v2046 = vmul.f32 %v2041, %v362
        %v2047 = vmul.f32 %v2039, %v381
        %v2048 = vmul.f32 %v2040, %v385
        %v2049 = vmul.f32 %v2041, %v383
        %v2050 = vmul.f32 %v2039, %v402
        %v2051 = vmul.f32 %v2040, %v406
        %v2052 = vmul.f32 %v2041, %v404
        %v2053 = vmul.f32 %v2039, %v423
        %v2054 = vmul.f32 %v2040, %v427
        %v2055 = vmul.f32 %v2041, %v425
        %v2056 = vmul.f32 %v2039, %v444
        %v2057 = vmul.f32 %v2040, %v448
        %v2058 = vmul.f32 %v2041, %v446
        %v2059 = vmul.f32 %v2039, %v465
        %v2060 = vmul.f32 %v2040, %v469
        %v2061 = vmul.f32 %v2041, %v467
        %v2062 = vmul.f32 %v2039, %v486
        %v2063 = vmul.f32 %v2040, %v490
        %v2064 = vmul.f32 %v2041, %v488
        %2068 = vrot.lane.b32.xlu0 %v2044, 127
        %v2069 = vpop.permute.xlu0 %2068
        %2070 = vrot.lane.b32.xlu0 %v2045, 127
        %v2071 = vpop.permute.xlu0 %2070
        %2072 = vrot.lane.b32.xlu0 %v2046, 127
        %v2073 = vpop.permute.xlu0 %2072
        %v2074 = vsel %vm506, %v2069, %v2071
        %v2075 = vsel %vm506, %v2071, %v2073
        %2081 = vrot.lane.b32.xlu0 %v2047, 126
        %v2082 = vpop.permute.xlu0 %2081
        %2083 = vrot.lane.b32.xlu0 %v2048, 126
        %v2084 = vpop.permute.xlu0 %2083
        %2085 = vrot.lane.b32.xlu0 %v2049, 126
        %v2086 = vpop.permute.xlu0 %2085
        %v2087 = vsel %vm520, %v2082, %v2084
        %v2088 = vsel %vm520, %v2084, %v2086
        %2094 = vrot.lane.b32.xlu0 %v2050, 112
        %v2095 = vpop.permute.xlu0 %2094
        %2096 = vrot.lane.b32.xlu0 %v2051, 112
        %v2097 = vpop.permute.xlu0 %2096
        %2098 = vrot.lane.b32.xlu0 %v2052, 112
        %v2099 = vpop.permute.xlu0 %2098
        %v2100 = vsel %vm534, %v2095, %v2097
        %v2101 = vsel %vm534, %v2097, %v2099
        %2107 = vrot.lane.b32.xlu0 %v2039, 111
        %v2108 = vpop.permute.xlu0 %2107
        %2109 = vrot.lane.b32.xlu0 %v2040, 111
        %v2110 = vpop.permute.xlu0 %2109
        %2111 = vrot.lane.b32.xlu0 %v2041, 111
        %v2112 = vpop.permute.xlu0 %2111
        %v2113 = vsel %vm548, %v2108, %v2110
        %v2114 = vsel %vm548, %v2110, %v2112
        %2120 = vrot.lane.b32.xlu0 %v2053, 110
        %v2121 = vpop.permute.xlu0 %2120
        %2122 = vrot.lane.b32.xlu0 %v2054, 110
        %v2123 = vpop.permute.xlu0 %2122
        %2124 = vrot.lane.b32.xlu0 %v2055, 110
        %v2125 = vpop.permute.xlu0 %2124
        %v2126 = vsel %vm562, %v2121, %v2123
        %v2127 = vsel %vm562, %v2123, %v2125
        %2133 = vrot.lane.b32.xlu0 %v2056, 96
        %v2134 = vpop.permute.xlu0 %2133
        %2135 = vrot.lane.b32.xlu0 %v2057, 96
        %v2136 = vpop.permute.xlu0 %2135
        %2137 = vrot.lane.b32.xlu0 %v2058, 96
        %v2138 = vpop.permute.xlu0 %2137
        %v2139 = vsel %vm576, %v2134, %v2136
        %v2140 = vsel %vm576, %v2136, %v2138
        %2146 = vrot.lane.b32.xlu0 %v2059, 95
        %v2147 = vpop.permute.xlu0 %2146
        %2148 = vrot.lane.b32.xlu0 %v2060, 95
        %v2149 = vpop.permute.xlu0 %2148
        %2150 = vrot.lane.b32.xlu0 %v2061, 95
        %v2151 = vpop.permute.xlu0 %2150
        %v2152 = vsel %vm590, %v2147, %v2149
        %v2153 = vsel %vm590, %v2149, %v2151
        %2159 = vrot.lane.b32.xlu0 %v2062, 94
        %v2160 = vpop.permute.xlu0 %2159
        %2161 = vrot.lane.b32.xlu0 %v2063, 94
        %v2162 = vpop.permute.xlu0 %2161
        %2163 = vrot.lane.b32.xlu0 %v2064, 94
        %v2164 = vpop.permute.xlu0 %2163
        %v2165 = vsel %vm604, %v2160, %v2162
        %v2166 = vsel %vm604, %v2162, %v2164
        %v2169 = vpack.c.bf16 %v2074, %v2042
        %v2170 = vpack.c.bf16 %v2075, %v2043
        %v2171 = vpack.c.bf16 %v2100, %v2087
        %v2172 = vpack.c.bf16 %v2101, %v2088
        %v2173 = vpack.c.bf16 %v2126, %v2113
        %v2174 = vpack.c.bf16 %v2127, %v2114
        %v2175 = vpack.c.bf16 %v2152, %v2139
        %v2176 = vpack.c.bf16 %v2153, %v2140
        %v2177 = vpack.c.bf16 0.0, %v2165
        %v2178 = vpack.c.bf16 0.0, %v2166
        %v2189 = vunpack.c.l.b16 %v2169
        %v2190 = vunpack.c.l.b16 %v2170
        %v2191 = vunpack.c.h.b16 %v2169
        %v2192 = vunpack.c.h.b16 %v2170
        %v2193 = vunpack.c.l.b16 %v2171
        %v2194 = vunpack.c.l.b16 %v2172
        %v2195 = vunpack.c.h.b16 %v2171
        %v2196 = vunpack.c.h.b16 %v2172
        %v2197 = vunpack.c.l.b16 %v2173
        %v2198 = vunpack.c.l.b16 %v2174
        %v2199 = vunpack.c.h.b16 %v2173
        %v2200 = vunpack.c.h.b16 %v2174
        %v2201 = vunpack.c.l.b16 %v2175
        %v2202 = vunpack.c.l.b16 %v2176
        %v2203 = vunpack.c.h.b16 %v2175
        %v2204 = vunpack.c.h.b16 %v2176
        %v2205 = vunpack.c.l.b16 %v2177
        %v2206 = vunpack.c.l.b16 %v2178
        %v2207 = vunpack.c.h.b16 %v2177
        %v2208 = vunpack.c.h.b16 %v2178
        %v2209 = vpack.c.b16 %v2190, %v2189
        %v2210 = vpack.c.b16 %v2192, %v2191
        %v2211 = vpack.c.b16 %v2194, %v2193
        %v2212 = vpack.c.b16 %v2196, %v2195
        %v2213 = vpack.c.b16 %v2198, %v2197
        %v2214 = vpack.c.b16 %v2200, %v2199
        %v2215 = vpack.c.b16 %v2202, %v2201
        %v2216 = vpack.c.b16 %v2204, %v2203
        %v2217 = vpack.c.b16 %v2206, %v2205
        %v2218 = vpack.c.b16 %v2208, %v2207
        %s2229 = scalar_lea.vmem [#allocation2], 560
        %2230 = vst [vmem:[%s2229] sm:$0xff] %v2209
        %2231 = vst [vmem:[%s2229 + $0x8] sm:$0xff] %v2210
        %2232 = vst [vmem:[%s2229 + $0x10] sm:$0xff] %v2211
        %2233 = vst [vmem:[%s2229 + $0x18] sm:$0xff] %v2212
        %2234 = vst [vmem:[%s2229 + $0x20] sm:$0xff] %v2213
        %2235 = vst [vmem:[%s2229 + $0x28] sm:$0xff] %v2214
        %2236 = vst [vmem:[%s2229 + $0x30] sm:$0xff] %v2215
        %2237 = vst [vmem:[%s2229 + $0x38] sm:$0xff] %v2216
        %2238 = vst [vmem:[%s2229 + $0x40] sm:$0xff] %v2217
        %2239 = vst [vmem:[%s2229 + $0x48] sm:$0xff] %v2218
        %v2240 = vld [vmem:[%s3] sm:$0xf]
        %v2241 = vld [vmem:[%s3 + $0x4] sm:$0xf]
        %v2242 = vld [vmem:[%s3 + $0x8] sm:$0xf]
        %v2243 = vld [vmem:[%s3 + $0xc] sm:$0xf]
        %v2244 = vld [vmem:[#allocation2] sm:$0xff]
        %v2245 = vld [vmem:[#allocation2 + $0x8] sm:$0xff]
        %v2246 = vld [vmem:[#allocation2 + $0x10] sm:$0xff]
        %v2247 = vld [vmem:[#allocation2 + $0x18] sm:$0xff]
        %v2248 = vld [vmem:[#allocation2 + $0x20] sm:$0xff]
        %v2249 = vld [vmem:[#allocation2 + $0x28] sm:$0xff]
        %v2250 = vld [vmem:[#allocation2 + $0x30] sm:$0xff]
        %v2251 = vld [vmem:[#allocation2 + $0x38] sm:$0xff]
        %v2252 = vld [vmem:[#allocation2 + $0x40] sm:$0xff]
        %v2253 = vld [vmem:[#allocation2 + $0x48] sm:$0xff]
        %v2258 = vunpack.c.l.b16 %v2240
        %v2259 = vunpack.c.l.b16 %v2241
        %v2260 = vunpack.c.l.b16 %v2242
        %v2261 = vunpack.c.l.b16 %v2243
        %v2262 = vpack.c.b16 %v2259, %v2258
        %v2263 = vpack.c.b16 %v2261, %v2260
        %v2274 = vunpack.c.l.b16 %v2244
        %v2275 = vunpack.c.h.b16 %v2244
        %v2276 = vunpack.c.l.b16 %v2245
        %v2277 = vunpack.c.h.b16 %v2245
        %v2278 = vunpack.c.l.b16 %v2246
        %v2279 = vunpack.c.h.b16 %v2246
        %v2280 = vunpack.c.l.b16 %v2247
        %v2281 = vunpack.c.h.b16 %v2247
        %v2282 = vunpack.c.l.b16 %v2248
        %v2283 = vunpack.c.h.b16 %v2248
        %v2284 = vunpack.c.l.b16 %v2249
        %v2285 = vunpack.c.h.b16 %v2249
        %v2286 = vunpack.c.l.b16 %v2250
        %v2287 = vunpack.c.h.b16 %v2250
        %v2288 = vunpack.c.l.b16 %v2251
        %v2289 = vunpack.c.h.b16 %v2251
        %v2290 = vunpack.c.l.b16 %v2252
        %v2291 = vunpack.c.h.b16 %v2252
        %v2292 = vunpack.c.l.b16 %v2253
        %v2293 = vunpack.c.h.b16 %v2253
        %v2294 = vpack.c.b16 %v2276, %v2274
        %v2295 = vpack.c.b16 %v2277, %v2275
        %v2296 = vpack.c.b16 %v2280, %v2278
        %v2297 = vpack.c.b16 %v2281, %v2279
        %v2298 = vpack.c.b16 %v2284, %v2282
        %v2299 = vpack.c.b16 %v2285, %v2283
        %v2300 = vpack.c.b16 %v2288, %v2286
        %v2301 = vpack.c.b16 %v2289, %v2287
        %v2302 = vpack.c.b16 %v2292, %v2290
        %v2303 = vpack.c.b16 %v2293, %v2291
        %vm2314 = vcmask 654336
        %v2316 = vsel %vm2314, %v2262, 0
        %v2319 = vsel %vm2314, %v2263, 0
        %2321 = vmatprep.subr.bf16.mxu0 0
        %2322 = vmatpush1.bf16.msra.mxu0 0
        %2323 = vmatprep.subr.bf16.mxu0 0
        %2324 = vmatpush1.bf16.msra.mxu0 0
        %2325 = vmatprep.subr.bf16.mxu0 0
        %2326 = vmatpush1.bf16.msra.mxu0 0
        %2327 = vmatprep.subr.bf16.mxu0 %v2303
        %2328 = vmatpush1.bf16.msra.mxu0 %v2302
        %2329 = vmatprep.subr.bf16.mxu0 %v2301
        %2330 = vmatpush1.bf16.msra.mxu0 %v2300
        %2331 = vmatprep.subr.bf16.mxu0 %v2299
        %2332 = vmatpush1.bf16.msra.mxu0 %v2298
        %2333 = vmatprep.subr.bf16.mxu0 %v2297
        %2334 = vmatpush1.bf16.msra.mxu0 %v2296
        %2335 = vmatprep.subr.bf16.mxu0 %v2295
        %2336 = vmatpush1.bf16.msra.mxu0 %v2294
        %2337 = vmatprep.subr.bf16.mxu0 0
        %2338 = vmatpush2.bf16.msra.mxu0 0
        %2339 = vmatprep.subr.bf16.mxu0 0
        %2340 = vmatpush2.bf16.msra.mxu0 0
        %2341 = vmatprep.subr.bf16.mxu0 0
        %2342 = vmatpush2.bf16.msra.mxu0 0
        %2343 = vmatprep.subr.bf16.mxu0 0
        %2344 = vmatpush2.bf16.msra.mxu0 0
        %2345 = vmatprep.subr.bf16.mxu0 0
        %2346 = vmatpush2.bf16.msra.mxu0 0
        %2347 = vmatprep.subr.bf16.mxu0 0
        %2348 = vmatpush2.bf16.msra.mxu0 0
        %2349 = vmatprep.subr.bf16.mxu0 0
        %2350 = vmatpush2.bf16.msra.mxu0 0
        %2351 = vmatprep.subr.bf16.mxu0 0
        %2352 = vmatpush2.bf16.msra.mxu0 0
        %2353 = vmatprep.mubr.bf16.mxu0 0
        %2354 = vmatmul.mubr.bf16.gmra.mxu0 %v2316
        %v2355 = vpop.f32.mrf.mxu0
        %v2356 = vadd.f32 0.0, %v2355
        %v2357 = vpop.f32.mrf.mxu0
        %v2358 = vadd.f32 0.0, %v2357
        %v2359 = vpop.f32.mrf.mxu0
        %v2360 = vadd.f32 0.0, %v2359
        %v2361 = vpop.f32.mrf.mxu0
        %v2362 = vadd.f32 0.0, %v2361
        %2363 = vmatprep.mubr.bf16.mxu0 0
        %2364 = vmatmul.mubr.bf16.gmra.mxu0 %v2319
        %v2365 = vpop.f32.mrf.mxu0
        %v2366 = vadd.f32 0.0, %v2365
        %v2367 = vpop.f32.mrf.mxu0
        %v2368 = vadd.f32 0.0, %v2367
        %v2369 = vpop.f32.mrf.mxu0
        %v2370 = vpop.f32.mrf.mxu0
        %2371 = vdwg.mxu0
        %2372 = vst [vmem:[#allocation3] sm:$0xff] %v2356
        %2373 = vst [vmem:[#allocation3 + $0x8] sm:$0xff] %v2358
        %2374 = vst [vmem:[#allocation3 + $0x40] sm:$0xff] %v2360
        %2375 = vst [vmem:[#allocation3 + $0x48] sm:$0xff] %v2362
        %2376 = vst [vmem:[#allocation3 + $0x70] sm:$0xff] %v2366
        %2377 = vst [vmem:[#allocation3 + $0x78] sm:$0xff] %v2368
        %s2378 = scalar_lea.vmem %s3, 16
        %v2379 = vld [vmem:[%s2378] sm:$0xf]
        %v2380 = vld [vmem:[%s2378 + $0x4] sm:$0xf]
        %v2381 = vld [vmem:[%s2378 + $0x8] sm:$0xf]
        %v2382 = vld [vmem:[%s2378 + $0xc] sm:$0xf]
        %v2383 = vld [vmem:[%s891] sm:$0xff]
        %v2384 = vld [vmem:[%s891 + $0x8] sm:$0xff]
        %v2385 = vld [vmem:[%s891 + $0x10] sm:$0xff]
        %v2386 = vld [vmem:[%s891 + $0x18] sm:$0xff]
        %v2387 = vld [vmem:[%s891 + $0x20] sm:$0xff]
        %v2388 = vld [vmem:[%s891 + $0x28] sm:$0xff]
        %v2389 = vld [vmem:[%s891 + $0x30] sm:$0xff]
        %v2390 = vld [vmem:[%s891 + $0x38] sm:$0xff]
        %v2391 = vld [vmem:[%s891 + $0x40] sm:$0xff]
        %v2392 = vld [vmem:[%s891 + $0x48] sm:$0xff]
        %v2397 = vunpack.c.l.b16 %v2379
        %v2398 = vunpack.c.l.b16 %v2380
        %v2399 = vunpack.c.l.b16 %v2381
        %v2400 = vunpack.c.l.b16 %v2382
        %v2401 = vpack.c.b16 %v2398, %v2397
        %v2402 = vpack.c.b16 %v2400, %v2399
        %v2413 = vunpack.c.l.b16 %v2383
        %v2414 = vunpack.c.h.b16 %v2383
        %v2415 = vunpack.c.l.b16 %v2384
        %v2416 = vunpack.c.h.b16 %v2384
        %v2417 = vunpack.c.l.b16 %v2385
        %v2418 = vunpack.c.h.b16 %v2385
        %v2419 = vunpack.c.l.b16 %v2386
        %v2420 = vunpack.c.h.b16 %v2386
        %v2421 = vunpack.c.l.b16 %v2387
        %v2422 = vunpack.c.h.b16 %v2387
        %v2423 = vunpack.c.l.b16 %v2388
        %v2424 = vunpack.c.h.b16 %v2388
        %v2425 = vunpack.c.l.b16 %v2389
        %v2426 = vunpack.c.h.b16 %v2389
        %v2427 = vunpack.c.l.b16 %v2390
        %v2428 = vunpack.c.h.b16 %v2390
        %v2429 = vunpack.c.l.b16 %v2391
        %v2430 = vunpack.c.h.b16 %v2391
        %v2431 = vunpack.c.l.b16 %v2392
        %v2432 = vunpack.c.h.b16 %v2392
        %v2433 = vpack.c.b16 %v2415, %v2413
        %v2434 = vpack.c.b16 %v2416, %v2414
        %v2435 = vpack.c.b16 %v2419, %v2417
        %v2436 = vpack.c.b16 %v2420, %v2418
        %v2437 = vpack.c.b16 %v2423, %v2421
        %v2438 = vpack.c.b16 %v2424, %v2422
        %v2439 = vpack.c.b16 %v2427, %v2425
        %v2440 = vpack.c.b16 %v2428, %v2426
        %v2441 = vpack.c.b16 %v2431, %v2429
        %v2442 = vpack.c.b16 %v2432, %v2430
        %v2454 = vsel %vm2314, %v2401, 0
        %v2457 = vsel %vm2314, %v2402, 0
        %2459 = vmatprep.subr.bf16.mxu0 0
        %2460 = vmatpush1.bf16.msra.mxu0 0
        %2461 = vmatprep.subr.bf16.mxu0 0
        %2462 = vmatpush1.bf16.msra.mxu0 0
        %2463 = vmatprep.subr.bf16.mxu0 0
        %2464 = vmatpush1.bf16.msra.mxu0 0
        %2465 = vmatprep.subr.bf16.mxu0 %v2442
        %2466 = vmatpush1.bf16.msra.mxu0 %v2441
        %2467 = vmatprep.subr.bf16.mxu0 %v2440
        %2468 = vmatpush1.bf16.msra.mxu0 %v2439
        %2469 = vmatprep.subr.bf16.mxu0 %v2438
        %2470 = vmatpush1.bf16.msra.mxu0 %v2437
        %2471 = vmatprep.subr.bf16.mxu0 %v2436
        %2472 = vmatpush1.bf16.msra.mxu0 %v2435
        %2473 = vmatprep.subr.bf16.mxu0 %v2434
        %2474 = vmatpush1.bf16.msra.mxu0 %v2433
        %2475 = vmatprep.subr.bf16.mxu0 0
        %2476 = vmatpush2.bf16.msra.mxu0 0
        %2477 = vmatprep.subr.bf16.mxu0 0
        %2478 = vmatpush2.bf16.msra.mxu0 0
        %2479 = vmatprep.subr.bf16.mxu0 0
        %2480 = vmatpush2.bf16.msra.mxu0 0
        %2481 = vmatprep.subr.bf16.mxu0 0
        %2482 = vmatpush2.bf16.msra.mxu0 0
        %2483 = vmatprep.subr.bf16.mxu0 0
        %2484 = vmatpush2.bf16.msra.mxu0 0
        %2485 = vmatprep.subr.bf16.mxu0 0
        %2486 = vmatpush2.bf16.msra.mxu0 0
        %2487 = vmatprep.subr.bf16.mxu0 0
        %2488 = vmatpush2.bf16.msra.mxu0 0
        %2489 = vmatprep.subr.bf16.mxu0 0
        %2490 = vmatpush2.bf16.msra.mxu0 0
        %2491 = vmatprep.mubr.bf16.mxu0 0
        %2492 = vmatmul.mubr.bf16.gmra.mxu0 %v2454
        %v2493 = vpop.f32.mrf.mxu0
        %v2494 = vadd.f32 0.0, %v2493
        %v2495 = vpop.f32.mrf.mxu0
        %v2496 = vadd.f32 0.0, %v2495
        %v2497 = vpop.f32.mrf.mxu0
        %v2498 = vadd.f32 0.0, %v2497
        %v2499 = vpop.f32.mrf.mxu0
        %v2500 = vadd.f32 0.0, %v2499
        %2501 = vmatprep.mubr.bf16.mxu0 0
        %2502 = vmatmul.mubr.bf16.gmra.mxu0 %v2457
        %v2503 = vpop.f32.mrf.mxu0
        %v2504 = vadd.f32 0.0, %v2503
        %v2505 = vpop.f32.mrf.mxu0
        %v2506 = vadd.f32 0.0, %v2505
        %v2507 = vpop.f32.mrf.mxu0
        %v2508 = vpop.f32.mrf.mxu0
        %2509 = vdwg.mxu0
        %v2510 = vld [vmem:[#allocation3] sm:$0xff]
        %v2511 = vld [vmem:[#allocation3 + $0x8] sm:$0xff]
        %v2512 = vadd.f32 %v2510, %v2494
        %v2513 = vadd.f32 %v2511, %v2496
        %2514 = vst [vmem:[#allocation3] sm:$0xff] %v2512
        %2515 = vst [vmem:[#allocation3 + $0x8] sm:$0xff] %v2513
        %v2516 = vld [vmem:[#allocation3 + $0x40] sm:$0xff]
        %v2517 = vld [vmem:[#allocation3 + $0x48] sm:$0xff]
        %v2518 = vadd.f32 %v2516, %v2498
        %v2519 = vadd.f32 %v2517, %v2500
        %2520 = vst [vmem:[#allocation3 + $0x40] sm:$0xff] %v2518
        %2521 = vst [vmem:[#allocation3 + $0x48] sm:$0xff] %v2519
        %v2522 = vld [vmem:[#allocation3 + $0x70] sm:$0xff]
        %v2523 = vld [vmem:[#allocation3 + $0x78] sm:$0xff]
        %v2524 = vadd.f32 %v2522, %v2504
        %v2525 = vadd.f32 %v2523, %v2506
        %2526 = vst [vmem:[#allocation3 + $0x70] sm:$0xff] %v2524
        %2527 = vst [vmem:[#allocation3 + $0x78] sm:$0xff] %v2525
        %s2528 = scalar_lea.vmem %s3, 32
        %v2529 = vld [vmem:[%s2528] sm:$0xf]
        %v2530 = vld [vmem:[%s2528 + $0x4] sm:$0xf]
        %v2531 = vld [vmem:[%s2528 + $0x8] sm:$0xf]
        %v2532 = vld [vmem:[%s2528 + $0xc] sm:$0xf]
        %v2533 = vld [vmem:[%s1114] sm:$0xff]
        %v2534 = vld [vmem:[%s1114 + $0x8] sm:$0xff]
        %v2535 = vld [vmem:[%s1114 + $0x10] sm:$0xff]
        %v2536 = vld [vmem:[%s1114 + $0x18] sm:$0xff]
        %v2537 = vld [vmem:[%s1114 + $0x20] sm:$0xff]
        %v2538 = vld [vmem:[%s1114 + $0x28] sm:$0xff]
        %v2539 = vld [vmem:[%s1114 + $0x30] sm:$0xff]
        %v2540 = vld [vmem:[%s1114 + $0x38] sm:$0xff]
        %v2541 = vld [vmem:[%s1114 + $0x40] sm:$0xff]
        %v2542 = vld [vmem:[%s1114 + $0x48] sm:$0xff]
        %v2547 = vunpack.c.l.b16 %v2529
        %v2548 = vunpack.c.l.b16 %v2530
        %v2549 = vunpack.c.l.b16 %v2531
        %v2550 = vunpack.c.l.b16 %v2532
        %v2551 = vpack.c.b16 %v2548, %v2547
        %v2552 = vpack.c.b16 %v2550, %v2549
        %v2563 = vunpack.c.l.b16 %v2533
        %v2564 = vunpack.c.h.b16 %v2533
        %v2565 = vunpack.c.l.b16 %v2534
        %v2566 = vunpack.c.h.b16 %v2534
        %v2567 = vunpack.c.l.b16 %v2535
        %v2568 = vunpack.c.h.b16 %v2535
        %v2569 = vunpack.c.l.b16 %v2536
        %v2570 = vunpack.c.h.b16 %v2536
        %v2571 = vunpack.c.l.b16 %v2537
        %v2572 = vunpack.c.h.b16 %v2537
        %v2573 = vunpack.c.l.b16 %v2538
        %v2574 = vunpack.c.h.b16 %v2538
        %v2575 = vunpack.c.l.b16 %v2539
        %v2576 = vunpack.c.h.b16 %v2539
        %v2577 = vunpack.c.l.b16 %v2540
        %v2578 = vunpack.c.h.b16 %v2540
        %v2579 = vunpack.c.l.b16 %v2541
        %v2580 = vunpack.c.h.b16 %v2541
        %v2581 = vunpack.c.l.b16 %v2542
        %v2582 = vunpack.c.h.b16 %v2542
        %v2583 = vpack.c.b16 %v2565, %v2563
        %v2584 = vpack.c.b16 %v2566, %v2564
        %v2585 = vpack.c.b16 %v2569, %v2567
        %v2586 = vpack.c.b16 %v2570, %v2568
        %v2587 = vpack.c.b16 %v2573, %v2571
        %v2588 = vpack.c.b16 %v2574, %v2572
        %v2589 = vpack.c.b16 %v2577, %v2575
        %v2590 = vpack.c.b16 %v2578, %v2576
        %v2591 = vpack.c.b16 %v2581, %v2579
        %v2592 = vpack.c.b16 %v2582, %v2580
        %v2604 = vsel %vm2314, %v2551, 0
        %v2607 = vsel %vm2314, %v2552, 0
        %2609 = vmatprep.subr.bf16.mxu0 0
        %2610 = vmatpush1.bf16.msra.mxu0 0
        %2611 = vmatprep.subr.bf16.mxu0 0
        %2612 = vmatpush1.bf16.msra.mxu0 0
        %2613 = vmatprep.subr.bf16.mxu0 0
        %2614 = vmatpush1.bf16.msra.mxu0 0
        %2615 = vmatprep.subr.bf16.mxu0 %v2592
        %2616 = vmatpush1.bf16.msra.mxu0 %v2591
        %2617 = vmatprep.subr.bf16.mxu0 %v2590
        %2618 = vmatpush1.bf16.msra.mxu0 %v2589
        %2619 = vmatprep.subr.bf16.mxu0 %v2588
        %2620 = vmatpush1.bf16.msra.mxu0 %v2587
        %2621 = vmatprep.subr.bf16.mxu0 %v2586
        %2622 = vmatpush1.bf16.msra.mxu0 %v2585
        %2623 = vmatprep.subr.bf16.mxu0 %v2584
        %2624 = vmatpush1.bf16.msra.mxu0 %v2583
        %2625 = vmatprep.subr.bf16.mxu0 0
        %2626 = vmatpush2.bf16.msra.mxu0 0
        %2627 = vmatprep.subr.bf16.mxu0 0
        %2628 = vmatpush2.bf16.msra.mxu0 0
        %2629 = vmatprep.subr.bf16.mxu0 0
        %2630 = vmatpush2.bf16.msra.mxu0 0
        %2631 = vmatprep.subr.bf16.mxu0 0
        %2632 = vmatpush2.bf16.msra.mxu0 0
        %2633 = vmatprep.subr.bf16.mxu0 0
        %2634 = vmatpush2.bf16.msra.mxu0 0
        %2635 = vmatprep.subr.bf16.mxu0 0
        %2636 = vmatpush2.bf16.msra.mxu0 0
        %2637 = vmatprep.subr.bf16.mxu0 0
        %2638 = vmatpush2.bf16.msra.mxu0 0
        %2639 = vmatprep.subr.bf16.mxu0 0
        %2640 = vmatpush2.bf16.msra.mxu0 0
        %2641 = vmatprep.mubr.bf16.mxu0 0
        %2642 = vmatmul.mubr.bf16.gmra.mxu0 %v2604
        %v2643 = vpop.f32.mrf.mxu0
        %v2644 = vadd.f32 0.0, %v2643
        %v2645 = vpop.f32.mrf.mxu0
        %v2646 = vadd.f32 0.0, %v2645
        %v2647 = vpop.f32.mrf.mxu0
        %v2648 = vadd.f32 0.0, %v2647
        %v2649 = vpop.f32.mrf.mxu0
        %v2650 = vadd.f32 0.0, %v2649
        %2651 = vmatprep.mubr.bf16.mxu0 0
        %2652 = vmatmul.mubr.bf16.gmra.mxu0 %v2607
        %v2653 = vpop.f32.mrf.mxu0
        %v2654 = vadd.f32 0.0, %v2653
        %v2655 = vpop.f32.mrf.mxu0
        %v2656 = vadd.f32 0.0, %v2655
        %v2657 = vpop.f32.mrf.mxu0
        %v2658 = vadd.f32 0.0, %v2657
        %v2659 = vpop.f32.mrf.mxu0
        %v2660 = vadd.f32 0.0, %v2659
        %2661 = vdwg.mxu0
        %2662 = vst [vmem:[#allocation3 + $0x10] sm:$0xff] %v2644
        %2663 = vst [vmem:[#allocation3 + $0x18] sm:$0xff] %v2646
        %2664 = vst [vmem:[#allocation3 + $0x50] sm:$0xff] %v2648
        %2665 = vst [vmem:[#allocation3 + $0x58] sm:$0xff] %v2650
        %v2666 = vld [vmem:[#allocation3 + $0x40] sm:$0xff]
        %v2667 = vld [vmem:[#allocation3 + $0x48] sm:$0xff]
        %v2668 = vadd.f32 %v2666, %v2654
        %v2669 = vadd.f32 %v2667, %v2656
        %2670 = vst [vmem:[#allocation3 + $0x40] sm:$0xff] %v2668
        %2671 = vst [vmem:[#allocation3 + $0x48] sm:$0xff] %v2669
        %v2672 = vld [vmem:[#allocation3 + $0x70] sm:$0xff]
        %v2673 = vld [vmem:[#allocation3 + $0x78] sm:$0xff]
        %v2674 = vadd.f32 %v2672, %v2658
        %v2675 = vadd.f32 %v2673, %v2660
        %2676 = vst [vmem:[#allocation3 + $0x70] sm:$0xff] %v2674
        %2677 = vst [vmem:[#allocation3 + $0x78] sm:$0xff] %v2675
        %s2678 = scalar_lea.vmem %s3, 48
        %v2679 = vld [vmem:[%s2678] sm:$0xf]
        %v2680 = vld [vmem:[%s2678 + $0x4] sm:$0xf]
        %v2681 = vld [vmem:[%s2678 + $0x8] sm:$0xf]
        %v2682 = vld [vmem:[%s2678 + $0xc] sm:$0xf]
        %v2683 = vld [vmem:[%s1337] sm:$0xff]
        %v2684 = vld [vmem:[%s1337 + $0x8] sm:$0xff]
        %v2685 = vld [vmem:[%s1337 + $0x10] sm:$0xff]
        %v2686 = vld [vmem:[%s1337 + $0x18] sm:$0xff]
        %v2687 = vld [vmem:[%s1337 + $0x20] sm:$0xff]
        %v2688 = vld [vmem:[%s1337 + $0x28] sm:$0xff]
        %v2689 = vld [vmem:[%s1337 + $0x30] sm:$0xff]
        %v2690 = vld [vmem:[%s1337 + $0x38] sm:$0xff]
        %v2691 = vld [vmem:[%s1337 + $0x40] sm:$0xff]
        %v2692 = vld [vmem:[%s1337 + $0x48] sm:$0xff]
        %v2697 = vunpack.c.l.b16 %v2679
        %v2698 = vunpack.c.l.b16 %v2680
        %v2699 = vunpack.c.l.b16 %v2681
        %v2700 = vunpack.c.l.b16 %v2682
        %v2701 = vpack.c.b16 %v2698, %v2697
        %v2702 = vpack.c.b16 %v2700, %v2699
        %v2713 = vunpack.c.l.b16 %v2683
        %v2714 = vunpack.c.h.b16 %v2683
        %v2715 = vunpack.c.l.b16 %v2684
        %v2716 = vunpack.c.h.b16 %v2684
        %v2717 = vunpack.c.l.b16 %v2685
        %v2718 = vunpack.c.h.b16 %v2685
        %v2719 = vunpack.c.l.b16 %v2686
        %v2720 = vunpack.c.h.b16 %v2686
        %v2721 = vunpack.c.l.b16 %v2687
        %v2722 = vunpack.c.h.b16 %v2687
        %v2723 = vunpack.c.l.b16 %v2688
        %v2724 = vunpack.c.h.b16 %v2688
        %v2725 = vunpack.c.l.b16 %v2689
        %v2726 = vunpack.c.h.b16 %v2689
        %v2727 = vunpack.c.l.b16 %v2690
        %v2728 = vunpack.c.h.b16 %v2690
        %v2729 = vunpack.c.l.b16 %v2691
        %v2730 = vunpack.c.h.b16 %v2691
        %v2731 = vunpack.c.l.b16 %v2692
        %v2732 = vunpack.c.h.b16 %v2692
        %v2733 = vpack.c.b16 %v2715, %v2713
        %v2734 = vpack.c.b16 %v2716, %v2714
        %v2735 = vpack.c.b16 %v2719, %v2717
        %v2736 = vpack.c.b16 %v2720, %v2718
        %v2737 = vpack.c.b16 %v2723, %v2721
        %v2738 = vpack.c.b16 %v2724, %v2722
        %v2739 = vpack.c.b16 %v2727, %v2725
        %v2740 = vpack.c.b16 %v2728, %v2726
        %v2741 = vpack.c.b16 %v2731, %v2729
        %v2742 = vpack.c.b16 %v2732, %v2730
        %v2754 = vsel %vm2314, %v2701, 0
        %v2757 = vsel %vm2314, %v2702, 0
        %2759 = vmatprep.subr.bf16.mxu0 0
        %2760 = vmatpush1.bf16.msra.mxu0 0
        %2761 = vmatprep.subr.bf16.mxu0 0
        %2762 = vmatpush1.bf16.msra.mxu0 0
        %2763 = vmatprep.subr.bf16.mxu0 0
        %2764 = vmatpush1.bf16.msra.mxu0 0
        %2765 = vmatprep.subr.bf16.mxu0 %v2742
        %2766 = vmatpush1.bf16.msra.mxu0 %v2741
        %2767 = vmatprep.subr.bf16.mxu0 %v2740
        %2768 = vmatpush1.bf16.msra.mxu0 %v2739
        %2769 = vmatprep.subr.bf16.mxu0 %v2738
        %2770 = vmatpush1.bf16.msra.mxu0 %v2737
        %2771 = vmatprep.subr.bf16.mxu0 %v2736
        %2772 = vmatpush1.bf16.msra.mxu0 %v2735
        %2773 = vmatprep.subr.bf16.mxu0 %v2734
        %2774 = vmatpush1.bf16.msra.mxu0 %v2733
        %2775 = vmatprep.subr.bf16.mxu0 0
        %2776 = vmatpush2.bf16.msra.mxu0 0
        %2777 = vmatprep.subr.bf16.mxu0 0
        %2778 = vmatpush2.bf16.msra.mxu0 0
        %2779 = vmatprep.subr.bf16.mxu0 0
        %2780 = vmatpush2.bf16.msra.mxu0 0
        %2781 = vmatprep.subr.bf16.mxu0 0
        %2782 = vmatpush2.bf16.msra.mxu0 0
        %2783 = vmatprep.subr.bf16.mxu0 0
        %2784 = vmatpush2.bf16.msra.mxu0 0
        %2785 = vmatprep.subr.bf16.mxu0 0
        %2786 = vmatpush2.bf16.msra.mxu0 0
        %2787 = vmatprep.subr.bf16.mxu0 0
        %2788 = vmatpush2.bf16.msra.mxu0 0
        %2789 = vmatprep.subr.bf16.mxu0 0
        %2790 = vmatpush2.bf16.msra.mxu0 0
        %2791 = vmatprep.mubr.bf16.mxu0 0
        %2792 = vmatmul.mubr.bf16.gmra.mxu0 %v2754
        %v2793 = vpop.f32.mrf.mxu0
        %v2794 = vadd.f32 0.0, %v2793
        %v2795 = vpop.f32.mrf.mxu0
        %v2796 = vadd.f32 0.0, %v2795
        %v2797 = vpop.f32.mrf.mxu0
        %v2798 = vadd.f32 0.0, %v2797
        %v2799 = vpop.f32.mrf.mxu0
        %v2800 = vadd.f32 0.0, %v2799
        %2801 = vmatprep.mubr.bf16.mxu0 0
        %2802 = vmatmul.mubr.bf16.gmra.mxu0 %v2757
        %v2803 = vpop.f32.mrf.mxu0
        %v2804 = vadd.f32 0.0, %v2803
        %v2805 = vpop.f32.mrf.mxu0
        %v2806 = vadd.f32 0.0, %v2805
        %v2807 = vpop.f32.mrf.mxu0
        %v2808 = vadd.f32 0.0, %v2807
        %v2809 = vpop.f32.mrf.mxu0
        %v2810 = vadd.f32 0.0, %v2809
        %2811 = vdwg.mxu0
        %v2812 = vld [vmem:[#allocation3 + $0x10] sm:$0xff]
        %v2813 = vld [vmem:[#allocation3 + $0x18] sm:$0xff]
        %v2814 = vadd.f32 %v2812, %v2794
        %v2815 = vadd.f32 %v2813, %v2796
        %2816 = vst [vmem:[#allocation3 + $0x10] sm:$0xff] %v2814
        %2817 = vst [vmem:[#allocation3 + $0x18] sm:$0xff] %v2815
        %v2818 = vld [vmem:[#allocation3 + $0x50] sm:$0xff]
        %v2819 = vld [vmem:[#allocation3 + $0x58] sm:$0xff]
        %v2820 = vadd.f32 %v2818, %v2798
        %v2821 = vadd.f32 %v2819, %v2800
        %2822 = vst [vmem:[#allocation3 + $0x50] sm:$0xff] %v2820
        %2823 = vst [vmem:[#allocation3 + $0x58] sm:$0xff] %v2821
        %v2824 = vld [vmem:[#allocation3 + $0x40] sm:$0xff]
        %v2825 = vld [vmem:[#allocation3 + $0x48] sm:$0xff]
        %v2826 = vadd.f32 %v2824, %v2804
        %v2827 = vadd.f32 %v2825, %v2806
        %2828 = vst [vmem:[#allocation3 + $0x40] sm:$0xff] %v2826
        %2829 = vst [vmem:[#allocation3 + $0x48] sm:$0xff] %v2827
        %v2830 = vld [vmem:[#allocation3 + $0x70] sm:$0xff]
        %v2831 = vld [vmem:[#allocation3 + $0x78] sm:$0xff]
        %v2832 = vadd.f32 %v2830, %v2808
        %v2833 = vadd.f32 %v2831, %v2810
        %2834 = vst [vmem:[#allocation3 + $0x70] sm:$0xff] %v2832
        %2835 = vst [vmem:[#allocation3 + $0x78] sm:$0xff] %v2833
        %s2836 = scalar_lea.vmem %s3, 64
        %v2837 = vld [vmem:[%s2836] sm:$0xf]
        %v2838 = vld [vmem:[%s2836 + $0x4] sm:$0xf]
        %v2839 = vld [vmem:[%s2836 + $0x8] sm:$0xf]
        %v2840 = vld [vmem:[%s2836 + $0xc] sm:$0xf]
        %v2841 = vld [vmem:[%s1560] sm:$0xff]
        %v2842 = vld [vmem:[%s1560 + $0x8] sm:$0xff]
        %v2843 = vld [vmem:[%s1560 + $0x10] sm:$0xff]
        %v2844 = vld [vmem:[%s1560 + $0x18] sm:$0xff]
        %v2845 = vld [vmem:[%s1560 + $0x20] sm:$0xff]
        %v2846 = vld [vmem:[%s1560 + $0x28] sm:$0xff]
        %v2847 = vld [vmem:[%s1560 + $0x30] sm:$0xff]
        %v2848 = vld [vmem:[%s1560 + $0x38] sm:$0xff]
        %v2849 = vld [vmem:[%s1560 + $0x40] sm:$0xff]
        %v2850 = vld [vmem:[%s1560 + $0x48] sm:$0xff]
        %v2855 = vunpack.c.l.b16 %v2837
        %v2856 = vunpack.c.l.b16 %v2838
        %v2857 = vunpack.c.l.b16 %v2839
        %v2858 = vunpack.c.l.b16 %v2840
        %v2859 = vpack.c.b16 %v2856, %v2855
        %v2860 = vpack.c.b16 %v2858, %v2857
        %v2871 = vunpack.c.l.b16 %v2841
        %v2872 = vunpack.c.h.b16 %v2841
        %v2873 = vunpack.c.l.b16 %v2842
        %v2874 = vunpack.c.h.b16 %v2842
        %v2875 = vunpack.c.l.b16 %v2843
        %v2876 = vunpack.c.h.b16 %v2843
        %v2877 = vunpack.c.l.b16 %v2844
        %v2878 = vunpack.c.h.b16 %v2844
        %v2879 = vunpack.c.l.b16 %v2845
        %v2880 = vunpack.c.h.b16 %v2845
        %v2881 = vunpack.c.l.b16 %v2846
        %v2882 = vunpack.c.h.b16 %v2846
        %v2883 = vunpack.c.l.b16 %v2847
        %v2884 = vunpack.c.h.b16 %v2847
        %v2885 = vunpack.c.l.b16 %v2848
        %v2886 = vunpack.c.h.b16 %v2848
        %v2887 = vunpack.c.l.b16 %v2849
        %v2888 = vunpack.c.h.b16 %v2849
        %v2889 = vunpack.c.l.b16 %v2850
        %v2890 = vunpack.c.h.b16 %v2850
        %v2891 = vpack.c.b16 %v2873, %v2871
        %v2892 = vpack.c.b16 %v2874, %v2872
        %v2893 = vpack.c.b16 %v2877, %v2875
        %v2894 = vpack.c.b16 %v2878, %v2876
        %v2895 = vpack.c.b16 %v2881, %v2879
        %v2896 = vpack.c.b16 %v2882, %v2880
        %v2897 = vpack.c.b16 %v2885, %v2883
        %v2898 = vpack.c.b16 %v2886, %v2884
        %v2899 = vpack.c.b16 %v2889, %v2887
        %v2900 = vpack.c.b16 %v2890, %v2888
        %v2912 = vsel %vm2314, %v2859, 0
        %v2915 = vsel %vm2314, %v2860, 0
        %2917 = vmatprep.subr.bf16.mxu0 0
        %2918 = vmatpush1.bf16.msra.mxu0 0
        %2919 = vmatprep.subr.bf16.mxu0 0
        %2920 = vmatpush1.bf16.msra.mxu0 0
        %2921 = vmatprep.subr.bf16.mxu0 0
        %2922 = vmatpush1.bf16.msra.mxu0 0
        %2923 = vmatprep.subr.bf16.mxu0 %v2900
        %2924 = vmatpush1.bf16.msra.mxu0 %v2899
        %2925 = vmatprep.subr.bf16.mxu0 %v2898
        %2926 = vmatpush1.bf16.msra.mxu0 %v2897
        %2927 = vmatprep.subr.bf16.mxu0 %v2896
        %2928 = vmatpush1.bf16.msra.mxu0 %v2895
        %2929 = vmatprep.subr.bf16.mxu0 %v2894
        %2930 = vmatpush1.bf16.msra.mxu0 %v2893
        %2931 = vmatprep.subr.bf16.mxu0 %v2892
        %2932 = vmatpush1.bf16.msra.mxu0 %v2891
        %2933 = vmatprep.subr.bf16.mxu0 0
        %2934 = vmatpush2.bf16.msra.mxu0 0
        %2935 = vmatprep.subr.bf16.mxu0 0
        %2936 = vmatpush2.bf16.msra.mxu0 0
        %2937 = vmatprep.subr.bf16.mxu0 0
        %2938 = vmatpush2.bf16.msra.mxu0 0
        %2939 = vmatprep.subr.bf16.mxu0 0
        %2940 = vmatpush2.bf16.msra.mxu0 0
        %2941 = vmatprep.subr.bf16.mxu0 0
        %2942 = vmatpush2.bf16.msra.mxu0 0
        %2943 = vmatprep.subr.bf16.mxu0 0
        %2944 = vmatpush2.bf16.msra.mxu0 0
        %2945 = vmatprep.subr.bf16.mxu0 0
        %2946 = vmatpush2.bf16.msra.mxu0 0
        %2947 = vmatprep.subr.bf16.mxu0 0
        %2948 = vmatpush2.bf16.msra.mxu0 0
        %2949 = vmatprep.mubr.bf16.mxu0 0
        %2950 = vmatmul.mubr.bf16.gmra.mxu0 %v2912
        %v2951 = vpop.f32.mrf.mxu0
        %v2952 = vadd.f32 0.0, %v2951
        %v2953 = vpop.f32.mrf.mxu0
        %v2954 = vadd.f32 0.0, %v2953
        %v2955 = vpop.f32.mrf.mxu0
        %v2956 = vadd.f32 0.0, %v2955
        %v2957 = vpop.f32.mrf.mxu0
        %v2958 = vadd.f32 0.0, %v2957
        %2959 = vmatprep.mubr.bf16.mxu0 0
        %2960 = vmatmul.mubr.bf16.gmra.mxu0 %v2915
        %v2961 = vpop.f32.mrf.mxu0
        %v2962 = vadd.f32 0.0, %v2961
        %v2963 = vpop.f32.mrf.mxu0
        %v2964 = vadd.f32 0.0, %v2963
        %v2965 = vpop.f32.mrf.mxu0
        %v2966 = vadd.f32 0.0, %v2965
        %v2967 = vpop.f32.mrf.mxu0
        %v2968 = vadd.f32 0.0, %v2967
        %2969 = vdwg.mxu0
        %2970 = vst [vmem:[#allocation3 + $0x20] sm:$0xff] %v2952
        %2971 = vst [vmem:[#allocation3 + $0x28] sm:$0xff] %v2954
        %2972 = vst [vmem:[#allocation3 + $0x60] sm:$0xff] %v2956
        %2973 = vst [vmem:[#allocation3 + $0x68] sm:$0xff] %v2958
        %v2974 = vld [vmem:[#allocation3 + $0x50] sm:$0xff]
        %v2975 = vld [vmem:[#allocation3 + $0x58] sm:$0xff]
        %v2976 = vadd.f32 %v2974, %v2962
        %v2977 = vadd.f32 %v2975, %v2964
        %2978 = vst [vmem:[#allocation3 + $0x50] sm:$0xff] %v2976
        %2979 = vst [vmem:[#allocation3 + $0x58] sm:$0xff] %v2977
        %v2980 = vld [vmem:[#allocation3 + $0x70] sm:$0xff]
        %v2981 = vld [vmem:[#allocation3 + $0x78] sm:$0xff]
        %v2982 = vadd.f32 %v2980, %v2966
        %v2983 = vadd.f32 %v2981, %v2968
        %2984 = vst [vmem:[#allocation3 + $0x70] sm:$0xff] %v2982
        %2985 = vst [vmem:[#allocation3 + $0x78] sm:$0xff] %v2983
        %s2986 = scalar_lea.vmem %s3, 80
        %v2987 = vld [vmem:[%s2986] sm:$0xf]
        %v2988 = vld [vmem:[%s2986 + $0x4] sm:$0xf]
        %v2989 = vld [vmem:[%s2986 + $0x8] sm:$0xf]
        %v2990 = vld [vmem:[%s2986 + $0xc] sm:$0xf]
        %v2991 = vld [vmem:[%s1783] sm:$0xff]
        %v2992 = vld [vmem:[%s1783 + $0x8] sm:$0xff]
        %v2993 = vld [vmem:[%s1783 + $0x10] sm:$0xff]
        %v2994 = vld [vmem:[%s1783 + $0x18] sm:$0xff]
        %v2995 = vld [vmem:[%s1783 + $0x20] sm:$0xff]
        %v2996 = vld [vmem:[%s1783 + $0x28] sm:$0xff]
        %v2997 = vld [vmem:[%s1783 + $0x30] sm:$0xff]
        %v2998 = vld [vmem:[%s1783 + $0x38] sm:$0xff]
        %v2999 = vld [vmem:[%s1783 + $0x40] sm:$0xff]
        %v3000 = vld [vmem:[%s1783 + $0x48] sm:$0xff]
        %v3005 = vunpack.c.l.b16 %v2987
        %v3006 = vunpack.c.l.b16 %v2988
        %v3007 = vunpack.c.l.b16 %v2989
        %v3008 = vunpack.c.l.b16 %v2990
        %v3009 = vpack.c.b16 %v3006, %v3005
        %v3010 = vpack.c.b16 %v3008, %v3007
        %v3021 = vunpack.c.l.b16 %v2991
        %v3022 = vunpack.c.h.b16 %v2991
        %v3023 = vunpack.c.l.b16 %v2992
        %v3024 = vunpack.c.h.b16 %v2992
        %v3025 = vunpack.c.l.b16 %v2993
        %v3026 = vunpack.c.h.b16 %v2993
        %v3027 = vunpack.c.l.b16 %v2994
        %v3028 = vunpack.c.h.b16 %v2994
        %v3029 = vunpack.c.l.b16 %v2995
        %v3030 = vunpack.c.h.b16 %v2995
        %v3031 = vunpack.c.l.b16 %v2996
        %v3032 = vunpack.c.h.b16 %v2996
        %v3033 = vunpack.c.l.b16 %v2997
        %v3034 = vunpack.c.h.b16 %v2997
        %v3035 = vunpack.c.l.b16 %v2998
        %v3036 = vunpack.c.h.b16 %v2998
        %v3037 = vunpack.c.l.b16 %v2999
        %v3038 = vunpack.c.h.b16 %v2999
        %v3039 = vunpack.c.l.b16 %v3000
        %v3040 = vunpack.c.h.b16 %v3000
        %v3041 = vpack.c.b16 %v3023, %v3021
        %v3042 = vpack.c.b16 %v3024, %v3022
        %v3043 = vpack.c.b16 %v3027, %v3025
        %v3044 = vpack.c.b16 %v3028, %v3026
        %v3045 = vpack.c.b16 %v3031, %v3029
        %v3046 = vpack.c.b16 %v3032, %v3030
        %v3047 = vpack.c.b16 %v3035, %v3033
        %v3048 = vpack.c.b16 %v3036, %v3034
        %v3049 = vpack.c.b16 %v3039, %v3037
        %v3050 = vpack.c.b16 %v3040, %v3038
        %v3062 = vsel %vm2314, %v3009, 0
        %v3065 = vsel %vm2314, %v3010, 0
        %3067 = vmatprep.subr.bf16.mxu0 0
        %3068 = vmatpush1.bf16.msra.mxu0 0
        %3069 = vmatprep.subr.bf16.mxu0 0
        %3070 = vmatpush1.bf16.msra.mxu0 0
        %3071 = vmatprep.subr.bf16.mxu0 0
        %3072 = vmatpush1.bf16.msra.mxu0 0
        %3073 = vmatprep.subr.bf16.mxu0 %v3050
        %3074 = vmatpush1.bf16.msra.mxu0 %v3049
        %3075 = vmatprep.subr.bf16.mxu0 %v3048
        %3076 = vmatpush1.bf16.msra.mxu0 %v3047
        %3077 = vmatprep.subr.bf16.mxu0 %v3046
        %3078 = vmatpush1.bf16.msra.mxu0 %v3045
        %3079 = vmatprep.subr.bf16.mxu0 %v3044
        %3080 = vmatpush1.bf16.msra.mxu0 %v3043
        %3081 = vmatprep.subr.bf16.mxu0 %v3042
        %3082 = vmatpush1.bf16.msra.mxu0 %v3041
        %3083 = vmatprep.subr.bf16.mxu0 0
        %3084 = vmatpush2.bf16.msra.mxu0 0
        %3085 = vmatprep.subr.bf16.mxu0 0
        %3086 = vmatpush2.bf16.msra.mxu0 0
        %3087 = vmatprep.subr.bf16.mxu0 0
        %3088 = vmatpush2.bf16.msra.mxu0 0
        %3089 = vmatprep.subr.bf16.mxu0 0
        %3090 = vmatpush2.bf16.msra.mxu0 0
        %3091 = vmatprep.subr.bf16.mxu0 0
        %3092 = vmatpush2.bf16.msra.mxu0 0
        %3093 = vmatprep.subr.bf16.mxu0 0
        %3094 = vmatpush2.bf16.msra.mxu0 0
        %3095 = vmatprep.subr.bf16.mxu0 0
        %3096 = vmatpush2.bf16.msra.mxu0 0
        %3097 = vmatprep.subr.bf16.mxu0 0
        %3098 = vmatpush2.bf16.msra.mxu0 0
        %3099 = vmatprep.mubr.bf16.mxu0 0
        %3100 = vmatmul.mubr.bf16.gmra.mxu0 %v3062
        %v3101 = vpop.f32.mrf.mxu0
        %v3102 = vadd.f32 0.0, %v3101
        %v3103 = vpop.f32.mrf.mxu0
        %v3104 = vadd.f32 0.0, %v3103
        %v3105 = vpop.f32.mrf.mxu0
        %v3106 = vadd.f32 0.0, %v3105
        %v3107 = vpop.f32.mrf.mxu0
        %v3108 = vadd.f32 0.0, %v3107
        %3109 = vmatprep.mubr.bf16.mxu0 0
        %3110 = vmatmul.mubr.bf16.gmra.mxu0 %v3065
        %v3111 = vpop.f32.mrf.mxu0
        %v3112 = vadd.f32 0.0, %v3111
        %v3113 = vpop.f32.mrf.mxu0
        %v3114 = vadd.f32 0.0, %v3113
        %v3115 = vpop.f32.mrf.mxu0
        %v3116 = vadd.f32 0.0, %v3115
        %v3117 = vpop.f32.mrf.mxu0
        %v3118 = vadd.f32 0.0, %v3117
        %3119 = vdwg.mxu0
        %v3120 = vld [vmem:[#allocation3 + $0x20] sm:$0xff]
        %v3121 = vld [vmem:[#allocation3 + $0x28] sm:$0xff]
        %v3122 = vadd.f32 %v3120, %v3102
        %v3123 = vadd.f32 %v3121, %v3104
        %3124 = vst [vmem:[#allocation3 + $0x20] sm:$0xff] %v3122
        %3125 = vst [vmem:[#allocation3 + $0x28] sm:$0xff] %v3123
        %v3126 = vld [vmem:[#allocation3 + $0x60] sm:$0xff]
        %v3127 = vld [vmem:[#allocation3 + $0x68] sm:$0xff]
        %v3128 = vadd.f32 %v3126, %v3106
        %v3129 = vadd.f32 %v3127, %v3108
        %3130 = vst [vmem:[#allocation3 + $0x60] sm:$0xff] %v3128
        %3131 = vst [vmem:[#allocation3 + $0x68] sm:$0xff] %v3129
        %v3132 = vld [vmem:[#allocation3 + $0x50] sm:$0xff]
        %v3133 = vld [vmem:[#allocation3 + $0x58] sm:$0xff]
        %v3134 = vadd.f32 %v3132, %v3112
        %v3135 = vadd.f32 %v3133, %v3114
        %3136 = vst [vmem:[#allocation3 + $0x50] sm:$0xff] %v3134
        %3137 = vst [vmem:[#allocation3 + $0x58] sm:$0xff] %v3135
        %v3138 = vld [vmem:[#allocation3 + $0x70] sm:$0xff]
        %v3139 = vld [vmem:[#allocation3 + $0x78] sm:$0xff]
        %v3140 = vadd.f32 %v3138, %v3116
        %v3141 = vadd.f32 %v3139, %v3118
        %3142 = vst [vmem:[#allocation3 + $0x70] sm:$0xff] %v3140
        %3143 = vst [vmem:[#allocation3 + $0x78] sm:$0xff] %v3141
        %s3144 = scalar_lea.vmem %s3, 96
        %v3145 = vld [vmem:[%s3144] sm:$0xf]
        %v3146 = vld [vmem:[%s3144 + $0x4] sm:$0xf]
        %v3147 = vld [vmem:[%s3144 + $0x8] sm:$0xf]
        %v3148 = vld [vmem:[%s3144 + $0xc] sm:$0xf]
        %v3149 = vld [vmem:[%s2006] sm:$0xff]
        %v3150 = vld [vmem:[%s2006 + $0x8] sm:$0xff]
        %v3151 = vld [vmem:[%s2006 + $0x10] sm:$0xff]
        %v3152 = vld [vmem:[%s2006 + $0x18] sm:$0xff]
        %v3153 = vld [vmem:[%s2006 + $0x20] sm:$0xff]
        %v3154 = vld [vmem:[%s2006 + $0x28] sm:$0xff]
        %v3155 = vld [vmem:[%s2006 + $0x30] sm:$0xff]
        %v3156 = vld [vmem:[%s2006 + $0x38] sm:$0xff]
        %v3157 = vld [vmem:[%s2006 + $0x40] sm:$0xff]
        %v3158 = vld [vmem:[%s2006 + $0x48] sm:$0xff]
        %v3163 = vunpack.c.l.b16 %v3145
        %v3164 = vunpack.c.l.b16 %v3146
        %v3165 = vunpack.c.l.b16 %v3147
        %v3166 = vunpack.c.l.b16 %v3148
        %v3167 = vpack.c.b16 %v3164, %v3163
        %v3168 = vpack.c.b16 %v3166, %v3165
        %v3179 = vunpack.c.l.b16 %v3149
        %v3180 = vunpack.c.h.b16 %v3149
        %v3181 = vunpack.c.l.b16 %v3150
        %v3182 = vunpack.c.h.b16 %v3150
        %v3183 = vunpack.c.l.b16 %v3151
        %v3184 = vunpack.c.h.b16 %v3151
        %v3185 = vunpack.c.l.b16 %v3152
        %v3186 = vunpack.c.h.b16 %v3152
        %v3187 = vunpack.c.l.b16 %v3153
        %v3188 = vunpack.c.h.b16 %v3153
        %v3189 = vunpack.c.l.b16 %v3154
        %v3190 = vunpack.c.h.b16 %v3154
        %v3191 = vunpack.c.l.b16 %v3155
        %v3192 = vunpack.c.h.b16 %v3155
        %v3193 = vunpack.c.l.b16 %v3156
        %v3194 = vunpack.c.h.b16 %v3156
        %v3195 = vunpack.c.l.b16 %v3157
        %v3196 = vunpack.c.h.b16 %v3157
        %v3197 = vunpack.c.l.b16 %v3158
        %v3198 = vunpack.c.h.b16 %v3158
        %v3199 = vpack.c.b16 %v3181, %v3179
        %v3200 = vpack.c.b16 %v3182, %v3180
        %v3201 = vpack.c.b16 %v3185, %v3183
        %v3202 = vpack.c.b16 %v3186, %v3184
        %v3203 = vpack.c.b16 %v3189, %v3187
        %v3204 = vpack.c.b16 %v3190, %v3188
        %v3205 = vpack.c.b16 %v3193, %v3191
        %v3206 = vpack.c.b16 %v3194, %v3192
        %v3207 = vpack.c.b16 %v3197, %v3195
        %v3208 = vpack.c.b16 %v3198, %v3196
        %v3220 = vsel %vm2314, %v3167, 0
        %v3223 = vsel %vm2314, %v3168, 0
        %3225 = vmatprep.subr.bf16.mxu0 0
        %3226 = vmatpush1.bf16.msra.mxu0 0
        %3227 = vmatprep.subr.bf16.mxu0 0
        %3228 = vmatpush1.bf16.msra.mxu0 0
        %3229 = vmatprep.subr.bf16.mxu0 0
        %3230 = vmatpush1.bf16.msra.mxu0 0
        %3231 = vmatprep.subr.bf16.mxu0 %v3208
        %3232 = vmatpush1.bf16.msra.mxu0 %v3207
        %3233 = vmatprep.subr.bf16.mxu0 %v3206
        %3234 = vmatpush1.bf16.msra.mxu0 %v3205
        %3235 = vmatprep.subr.bf16.mxu0 %v3204
        %3236 = vmatpush1.bf16.msra.mxu0 %v3203
        %3237 = vmatprep.subr.bf16.mxu0 %v3202
        %3238 = vmatpush1.bf16.msra.mxu0 %v3201
        %3239 = vmatprep.subr.bf16.mxu0 %v3200
        %3240 = vmatpush1.bf16.msra.mxu0 %v3199
        %3241 = vmatprep.subr.bf16.mxu0 0
        %3242 = vmatpush2.bf16.msra.mxu0 0
        %3243 = vmatprep.subr.bf16.mxu0 0
        %3244 = vmatpush2.bf16.msra.mxu0 0
        %3245 = vmatprep.subr.bf16.mxu0 0
        %3246 = vmatpush2.bf16.msra.mxu0 0
        %3247 = vmatprep.subr.bf16.mxu0 0
        %3248 = vmatpush2.bf16.msra.mxu0 0
        %3249 = vmatprep.subr.bf16.mxu0 0
        %3250 = vmatpush2.bf16.msra.mxu0 0
        %3251 = vmatprep.subr.bf16.mxu0 0
        %3252 = vmatpush2.bf16.msra.mxu0 0
        %3253 = vmatprep.subr.bf16.mxu0 0
        %3254 = vmatpush2.bf16.msra.mxu0 0
        %3255 = vmatprep.subr.bf16.mxu0 0
        %3256 = vmatpush2.bf16.msra.mxu0 0
        %3257 = vmatprep.mubr.bf16.mxu0 0
        %3258 = vmatmul.mubr.bf16.gmra.mxu0 %v3220
        %v3259 = vpop.f32.mrf.mxu0
        %v3260 = vadd.f32 0.0, %v3259
        %v3261 = vpop.f32.mrf.mxu0
        %v3262 = vadd.f32 0.0, %v3261
        %v3263 = vpop.f32.mrf.mxu0
        %v3264 = vadd.f32 0.0, %v3263
        %v3265 = vpop.f32.mrf.mxu0
        %v3266 = vadd.f32 0.0, %v3265
        %3267 = vmatprep.mubr.bf16.mxu0 0
        %3268 = vmatmul.mubr.bf16.gmra.mxu0 %v3223
        %v3269 = vpop.f32.mrf.mxu0
        %v3270 = vadd.f32 0.0, %v3269
        %v3271 = vpop.f32.mrf.mxu0
        %v3272 = vadd.f32 0.0, %v3271
        %v3273 = vpop.f32.mrf.mxu0
        %v3274 = vpop.f32.mrf.mxu0
        %3275 = vdwg.mxu0
        %3276 = vst [vmem:[#allocation3 + $0x30] sm:$0xff] %v3260
        %3277 = vst [vmem:[#allocation3 + $0x38] sm:$0xff] %v3262
        %v3278 = vld [vmem:[#allocation3 + $0x60] sm:$0xff]
        %v3279 = vld [vmem:[#allocation3 + $0x68] sm:$0xff]
        %v3280 = vadd.f32 %v3278, %v3264
        %v3281 = vadd.f32 %v3279, %v3266
        %3282 = vst [vmem:[#allocation3 + $0x60] sm:$0xff] %v3280
        %3283 = vst [vmem:[#allocation3 + $0x68] sm:$0xff] %v3281
        %v3284 = vld [vmem:[#allocation3 + $0x70] sm:$0xff]
        %v3285 = vld [vmem:[#allocation3 + $0x78] sm:$0xff]
        %v3286 = vadd.f32 %v3284, %v3270
        %v3287 = vadd.f32 %v3285, %v3272
        %3288 = vst [vmem:[#allocation3 + $0x70] sm:$0xff] %v3286
        %3289 = vst [vmem:[#allocation3 + $0x78] sm:$0xff] %v3287
        %s3290 = scalar_lea.vmem %s3, 112
        %v3291 = vld [vmem:[%s3290] sm:$0xf]
        %v3292 = vld [vmem:[%s3290 + $0x4] sm:$0xf]
        %v3293 = vld [vmem:[%s3290 + $0x8] sm:$0xf]
        %v3294 = vld [vmem:[%s3290 + $0xc] sm:$0xf]
        %v3295 = vld [vmem:[%s2229] sm:$0xff]
        %v3296 = vld [vmem:[%s2229 + $0x8] sm:$0xff]
        %v3297 = vld [vmem:[%s2229 + $0x10] sm:$0xff]
        %v3298 = vld [vmem:[%s2229 + $0x18] sm:$0xff]
        %v3299 = vld [vmem:[%s2229 + $0x20] sm:$0xff]
        %v3300 = vld [vmem:[%s2229 + $0x28] sm:$0xff]
        %v3301 = vld [vmem:[%s2229 + $0x30] sm:$0xff]
        %v3302 = vld [vmem:[%s2229 + $0x38] sm:$0xff]
        %v3303 = vld [vmem:[%s2229 + $0x40] sm:$0xff]
        %v3304 = vld [vmem:[%s2229 + $0x48] sm:$0xff]
        %v3309 = vunpack.c.l.b16 %v3291
        %v3310 = vunpack.c.l.b16 %v3292
        %v3311 = vunpack.c.l.b16 %v3293
        %v3312 = vunpack.c.l.b16 %v3294
        %v3313 = vpack.c.b16 %v3310, %v3309
        %v3314 = vpack.c.b16 %v3312, %v3311
        %v3325 = vunpack.c.l.b16 %v3295
        %v3326 = vunpack.c.h.b16 %v3295
        %v3327 = vunpack.c.l.b16 %v3296
        %v3328 = vunpack.c.h.b16 %v3296
        %v3329 = vunpack.c.l.b16 %v3297
        %v3330 = vunpack.c.h.b16 %v3297
        %v3331 = vunpack.c.l.b16 %v3298
        %v3332 = vunpack.c.h.b16 %v3298
        %v3333 = vunpack.c.l.b16 %v3299
        %v3334 = vunpack.c.h.b16 %v3299
        %v3335 = vunpack.c.l.b16 %v3300
        %v3336 = vunpack.c.h.b16 %v3300
        %v3337 = vunpack.c.l.b16 %v3301
        %v3338 = vunpack.c.h.b16 %v3301
        %v3339 = vunpack.c.l.b16 %v3302
        %v3340 = vunpack.c.h.b16 %v3302
        %v3341 = vunpack.c.l.b16 %v3303
        %v3342 = vunpack.c.h.b16 %v3303
        %v3343 = vunpack.c.l.b16 %v3304
        %v3344 = vunpack.c.h.b16 %v3304
        %v3345 = vpack.c.b16 %v3327, %v3325
        %v3346 = vpack.c.b16 %v3328, %v3326
        %v3347 = vpack.c.b16 %v3331, %v3329
        %v3348 = vpack.c.b16 %v3332, %v3330
        %v3349 = vpack.c.b16 %v3335, %v3333
        %v3350 = vpack.c.b16 %v3336, %v3334
        %v3351 = vpack.c.b16 %v3339, %v3337
        %v3352 = vpack.c.b16 %v3340, %v3338
        %v3353 = vpack.c.b16 %v3343, %v3341
        %v3354 = vpack.c.b16 %v3344, %v3342
        %v3366 = vsel %vm2314, %v3313, 0
        %v3369 = vsel %vm2314, %v3314, 0
        %3371 = vmatprep.subr.bf16.mxu0 0
        %3372 = vmatpush1.bf16.msra.mxu0 0
        %3373 = vmatprep.subr.bf16.mxu0 0
        %3374 = vmatpush1.bf16.msra.mxu0 0
        %3375 = vmatprep.subr.bf16.mxu0 0
        %3376 = vmatpush1.bf16.msra.mxu0 0
        %3377 = vmatprep.subr.bf16.mxu0 %v3354
        %3378 = vmatpush1.bf16.msra.mxu0 %v3353
        %3379 = vmatprep.subr.bf16.mxu0 %v3352
        %3380 = vmatpush1.bf16.msra.mxu0 %v3351
        %3381 = vmatprep.subr.bf16.mxu0 %v3350
        %3382 = vmatpush1.bf16.msra.mxu0 %v3349
        %3383 = vmatprep.subr.bf16.mxu0 %v3348
        %3384 = vmatpush1.bf16.msra.mxu0 %v3347
        %3385 = vmatprep.subr.bf16.mxu0 %v3346
        %3386 = vmatpush1.bf16.msra.mxu0 %v3345
        %3387 = vmatprep.subr.bf16.mxu0 0
        %3388 = vmatpush2.bf16.msra.mxu0 0
        %3389 = vmatprep.subr.bf16.mxu0 0
        %3390 = vmatpush2.bf16.msra.mxu0 0
        %3391 = vmatprep.subr.bf16.mxu0 0
        %3392 = vmatpush2.bf16.msra.mxu0 0
        %3393 = vmatprep.subr.bf16.mxu0 0
        %3394 = vmatpush2.bf16.msra.mxu0 0
        %3395 = vmatprep.subr.bf16.mxu0 0
        %3396 = vmatpush2.bf16.msra.mxu0 0
        %3397 = vmatprep.subr.bf16.mxu0 0
        %3398 = vmatpush2.bf16.msra.mxu0 0
        %3399 = vmatprep.subr.bf16.mxu0 0
        %3400 = vmatpush2.bf16.msra.mxu0 0
        %3401 = vmatprep.subr.bf16.mxu0 0
        %3402 = vmatpush2.bf16.msra.mxu0 0
        %3403 = vmatprep.mubr.bf16.mxu0 0
        %3404 = vmatmul.mubr.bf16.gmra.mxu0 %v3366
        %v3405 = vpop.f32.mrf.mxu0
        %v3406 = vadd.f32 0.0, %v3405
        %v3407 = vpop.f32.mrf.mxu0
        %v3408 = vadd.f32 0.0, %v3407
        %v3409 = vpop.f32.mrf.mxu0
        %v3410 = vadd.f32 0.0, %v3409
        %v3411 = vpop.f32.mrf.mxu0
        %v3412 = vadd.f32 0.0, %v3411
        %3413 = vmatprep.mubr.bf16.mxu0 0
        %3414 = vmatmul.mubr.bf16.gmra.mxu0 %v3369
        %v3415 = vpop.f32.mrf.mxu0
        %v3416 = vpop.f32.mrf.mxu0
        %v3417 = vpop.f32.mrf.mxu0
        %v3418 = vpop.f32.mrf.mxu0
        %3419 = vdwg.mxu0
        %v3420 = vld [vmem:[#allocation3 + $0x30] sm:$0xff]
        %v3421 = vld [vmem:[#allocation3 + $0x38] sm:$0xff]
        %v3422 = vadd.f32 %v3420, %v3406
        %v3423 = vadd.f32 %v3421, %v3408
        %3424 = vst [vmem:[#allocation3 + $0x30] sm:$0xff] %v3422
        %3425 = vst [vmem:[#allocation3 + $0x38] sm:$0xff] %v3423
        %v3426 = vld [vmem:[#allocation3 + $0x60] sm:$0xff]
        %v3427 = vld [vmem:[#allocation3 + $0x68] sm:$0xff]
        %v3428 = vadd.f32 %v3426, %v3410
        %v3429 = vadd.f32 %v3427, %v3412
        %3430 = vst [vmem:[#allocation3 + $0x60] sm:$0xff] %v3428
        %3431 = vst [vmem:[#allocation3 + $0x68] sm:$0xff] %v3429
        %v3432 = vld [vmem:[#allocation3] sm:$0xff]
        %v3433 = vld [vmem:[#allocation3 + $0x8] sm:$0xff]
        %v3434 = vld [vmem:[#allocation3 + $0x10] sm:$0xff]
        %v3435 = vld [vmem:[#allocation3 + $0x18] sm:$0xff]
        %v3436 = vld [vmem:[#allocation3 + $0x20] sm:$0xff]
        %v3437 = vld [vmem:[#allocation3 + $0x28] sm:$0xff]
        %v3438 = vld [vmem:[#allocation3 + $0x30] sm:$0xff]
        %v3439 = vld [vmem:[#allocation3 + $0x38] sm:$0xff]
        %v3440 = vld [vmem:[#allocation3 + $0x40] sm:$0xff]
        %v3441 = vld [vmem:[#allocation3 + $0x48] sm:$0xff]
        %v3442 = vld [vmem:[#allocation3 + $0x50] sm:$0xff]
        %v3443 = vld [vmem:[#allocation3 + $0x58] sm:$0xff]
        %v3444 = vld [vmem:[#allocation3 + $0x60] sm:$0xff]
        %v3445 = vld [vmem:[#allocation3 + $0x68] sm:$0xff]
        %v3446 = vld [vmem:[#allocation3 + $0x70] sm:$0xff]
        %v3447 = vld [vmem:[#allocation3 + $0x78] sm:$0xff]
        %v3448 = vpack.c.bf16 %v3434, %v3432
        %v3449 = vpack.c.bf16 %v3435, %v3433
        %v3450 = vpack.c.bf16 %v3438, %v3436
        %v3451 = vpack.c.bf16 %v3439, %v3437
        %v3452 = vpack.c.bf16 %v3442, %v3440
        %v3453 = vpack.c.bf16 %v3443, %v3441
        %v3454 = vpack.c.bf16 %v3446, %v3444
        %v3455 = vpack.c.bf16 %v3447, %v3445
        %v3456 = vld [vmem:[%s6] sm:$0xf]
        %v3457 = vld [vmem:[%s6 + $0x4] sm:$0xf]
        %v3458 = vld [vmem:[%s6 + $0x8] sm:$0xf]
        %v3459 = vld [vmem:[%s6 + $0xc] sm:$0xf]
        %v3460 = vld [vmem:[%s6 + $0x10] sm:$0xf]
        %v3461 = vld [vmem:[%s6 + $0x14] sm:$0xf]
        %v3462 = vld [vmem:[%s6 + $0x18] sm:$0xf]
        %v3463 = vld [vmem:[%s6 + $0x1c] sm:$0xf]
        %v3464 = vld [vmem:[%s6 + $0x20] sm:$0xf]
        %v3465 = vld [vmem:[%s6 + $0x24] sm:$0xf]
        %v3466 = vld [vmem:[%s6 + $0x28] sm:$0xf]
        %v3467 = vld [vmem:[%s6 + $0x2c] sm:$0xf]
        %v3468 = vld [vmem:[%s6 + $0x30] sm:$0xf]
        %v3469 = vld [vmem:[%s6 + $0x34] sm:$0xf]
        %v3470 = vld [vmem:[%s6 + $0x38] sm:$0xf]
        %v3471 = vld [vmem:[%s6 + $0x3c] sm:$0xf]
        %v3472 = vld [vmem:[%s6 + $0x40] sm:$0xf]
        %v3473 = vld [vmem:[%s6 + $0x44] sm:$0xf]
        %v3474 = vld [vmem:[%s6 + $0x48] sm:$0xf]
        %v3475 = vld [vmem:[%s6 + $0x4c] sm:$0xf]
        %v3476 = vld [vmem:[%s6 + $0x50] sm:$0xf]
        %v3477 = vld [vmem:[%s6 + $0x54] sm:$0xf]
        %v3478 = vld [vmem:[%s6 + $0x58] sm:$0xf]
        %v3479 = vld [vmem:[%s6 + $0x5c] sm:$0xf]
        %v3480 = vld [vmem:[%s6 + $0x60] sm:$0xf]
        %v3481 = vld [vmem:[%s6 + $0x64] sm:$0xf]
        %v3482 = vld [vmem:[%s6 + $0x68] sm:$0xf]
        %v3483 = vld [vmem:[%s6 + $0x6c] sm:$0xf]
        %v3484 = vld [vmem:[%s6 + $0x70] sm:$0xf]
        %v3485 = vld [vmem:[%s6 + $0x74] sm:$0xf]
        %v3486 = vld [vmem:[%s6 + $0x78] sm:$0xf]
        %v3487 = vld [vmem:[%s6 + $0x7c] sm:$0xf]
        %v3488 = vld [vmem:[%s4] sm:$0xff]
        %v3489 = vld [vmem:[%s4 + $0x8] sm:$0xff]
        %v3490 = vld [vmem:[%s4 + $0x10] sm:$0xff]
        %v3491 = vld [vmem:[%s4 + $0x18] sm:$0xff]
        %v3492 = vld [vmem:[%s4 + $0x20] sm:$0xff]
        %v3493 = vld [vmem:[%s4 + $0x28] sm:$0xff]
        %v3494 = vld [vmem:[%s4 + $0x30] sm:$0xff]
        %v3495 = vld [vmem:[%s4 + $0x38] sm:$0xff]
        %3497 = vset.pattern.permute.xlu0 0
        %3498 = vperm.xlu0 %3497, %v3488
        %v3499 = vpop.permute.xlu0 %3498
        %3502 = vset.pattern.permute.xlu0 0
        %3503 = vperm.xlu0 %3502, %v3489
        %v3504 = vpop.permute.xlu0 %3503
        %3507 = vset.pattern.permute.xlu0 0
        %3508 = vperm.xlu0 %3507, %v3490
        %v3509 = vpop.permute.xlu0 %3508
        %3512 = vset.pattern.permute.xlu0 0
        %3513 = vperm.xlu0 %3512, %v3491
        %v3514 = vpop.permute.xlu0 %3513
        %3517 = vset.pattern.permute.xlu0 0
        %3518 = vperm.xlu0 %3517, %v3492
        %v3519 = vpop.permute.xlu0 %3518
        %3522 = vset.pattern.permute.xlu0 0
        %3523 = vperm.xlu0 %3522, %v3493
        %v3524 = vpop.permute.xlu0 %3523
        %3527 = vset.pattern.permute.xlu0 0
        %3528 = vperm.xlu0 %3527, %v3494
        %v3529 = vpop.permute.xlu0 %3528
        %3532 = vset.pattern.permute.xlu0 0
        %3533 = vperm.xlu0 %3532, %v3495
        %v3534 = vpop.permute.xlu0 %3533
        %v3568 = vunpack.c.l.b16 %v3456
        %v3569 = vunpack.c.l.b16 %v3457
        %v3570 = vunpack.c.l.b16 %v3458
        %v3571 = vunpack.c.l.b16 %v3459
        %v3572 = vunpack.c.l.b16 %v3460
        %v3573 = vunpack.c.l.b16 %v3461
        %v3574 = vunpack.c.l.b16 %v3462
        %v3575 = vunpack.c.l.b16 %v3463
        %v3576 = vunpack.c.l.b16 %v3464
        %v3577 = vunpack.c.l.b16 %v3465
        %v3578 = vunpack.c.l.b16 %v3466
        %v3579 = vunpack.c.l.b16 %v3467
        %v3580 = vunpack.c.l.b16 %v3468
        %v3581 = vunpack.c.l.b16 %v3469
        %v3582 = vunpack.c.l.b16 %v3470
        %v3583 = vunpack.c.l.b16 %v3471
        %v3584 = vunpack.c.l.b16 %v3472
        %v3585 = vunpack.c.l.b16 %v3473
        %v3586 = vunpack.c.l.b16 %v3474
        %v3587 = vunpack.c.l.b16 %v3475
        %v3588 = vunpack.c.l.b16 %v3476
        %v3589 = vunpack.c.l.b16 %v3477
        %v3590 = vunpack.c.l.b16 %v3478
        %v3591 = vunpack.c.l.b16 %v3479
        %v3592 = vunpack.c.l.b16 %v3480
        %v3593 = vunpack.c.l.b16 %v3481
        %v3594 = vunpack.c.l.b16 %v3482
        %v3595 = vunpack.c.l.b16 %v3483
        %v3596 = vunpack.c.l.b16 %v3484
        %v3597 = vunpack.c.l.b16 %v3485
        %v3598 = vunpack.c.l.b16 %v3486
        %v3599 = vunpack.c.l.b16 %v3487
        %v3600 = vpack.c.b16 %v3569, %v3568
        %v3601 = vpack.c.b16 %v3571, %v3570
        %v3602 = vpack.c.b16 %v3573, %v3572
        %v3603 = vpack.c.b16 %v3575, %v3574
        %v3604 = vpack.c.b16 %v3577, %v3576
        %v3605 = vpack.c.b16 %v3579, %v3578
        %v3606 = vpack.c.b16 %v3581, %v3580
        %v3607 = vpack.c.b16 %v3583, %v3582
        %v3608 = vpack.c.b16 %v3585, %v3584
        %v3609 = vpack.c.b16 %v3587, %v3586
        %v3610 = vpack.c.b16 %v3589, %v3588
        %v3611 = vpack.c.b16 %v3591, %v3590
        %v3612 = vpack.c.b16 %v3593, %v3592
        %v3613 = vpack.c.b16 %v3595, %v3594
        %v3614 = vpack.c.b16 %v3597, %v3596
        %v3615 = vpack.c.b16 %v3599, %v3598
        %3632 = vmatprep.subr.bf16.mxu0 0
        %3633 = vmatpush1.bf16.msra.mxu0 %v3607
        %3634 = vmatprep.subr.bf16.mxu0 0
        %3635 = vmatpush1.bf16.msra.mxu0 %v3606
        %3636 = vmatprep.subr.bf16.mxu0 0
        %3637 = vmatpush1.bf16.msra.mxu0 %v3605
        %3638 = vmatprep.subr.bf16.mxu0 0
        %3639 = vmatpush1.bf16.msra.mxu0 %v3604
        %3640 = vmatprep.subr.bf16.mxu0 0
        %3641 = vmatpush1.bf16.msra.mxu0 %v3603
        %3642 = vmatprep.subr.bf16.mxu0 0
        %3643 = vmatpush1.bf16.msra.mxu0 %v3602
        %3644 = vmatprep.subr.bf16.mxu0 0
        %3645 = vmatpush1.bf16.msra.mxu0 %v3601
        %3646 = vmatprep.subr.bf16.mxu0 0
        %3647 = vmatpush1.bf16.msra.mxu0 %v3600
        %3648 = vmatprep.subr.bf16.mxu0 0
        %3649 = vmatpush2.bf16.msra.mxu0 %v3615
        %3650 = vmatprep.subr.bf16.mxu0 0
        %3651 = vmatpush2.bf16.msra.mxu0 %v3614
        %3652 = vmatprep.subr.bf16.mxu0 0
        %3653 = vmatpush2.bf16.msra.mxu0 %v3613
        %3654 = vmatprep.subr.bf16.mxu0 0
        %3655 = vmatpush2.bf16.msra.mxu0 %v3612
        %3656 = vmatprep.subr.bf16.mxu0 0
        %3657 = vmatpush2.bf16.msra.mxu0 %v3611
        %3658 = vmatprep.subr.bf16.mxu0 0
        %3659 = vmatpush2.bf16.msra.mxu0 %v3610
        %3660 = vmatprep.subr.bf16.mxu0 0
        %3661 = vmatpush2.bf16.msra.mxu0 %v3609
        %3662 = vmatprep.subr.bf16.mxu0 0
        %3663 = vmatpush2.bf16.msra.mxu0 %v3608
        %3664 = vmatprep.mubr.bf16.mxu0 %v3449
        %3665 = vmatmul.mubr.bf16.gmra.mxu0 %v3448
        %v3666 = vpop.f32.mrf.mxu0
        %v3667 = vadd.f32 %v3499, %v3666
        %v3668 = vpop.f32.mrf.mxu0
        %v3669 = vpop.f32.mrf.mxu0
        %v3670 = vadd.f32 %v3504, %v3669
        %v3671 = vpop.f32.mrf.mxu0
        %3672 = vmatprep.mubr.bf16.mxu0 %v3451
        %3673 = vmatmul.mubr.bf16.gmra.mxu0 %v3450
        %v3674 = vpop.f32.mrf.mxu0
        %v3675 = vadd.f32 %v3509, %v3674
        %v3676 = vpop.f32.mrf.mxu0
        %v3677 = vpop.f32.mrf.mxu0
        %v3678 = vadd.f32 %v3514, %v3677
        %v3679 = vpop.f32.mrf.mxu0
        %3680 = vmatprep.mubr.bf16.mxu0 %v3453
        %3681 = vmatmul.mubr.bf16.gmra.mxu0 %v3452
        %v3682 = vpop.f32.mrf.mxu0
        %v3683 = vadd.f32 %v3519, %v3682
        %v3684 = vpop.f32.mrf.mxu0
        %v3685 = vpop.f32.mrf.mxu0
        %v3686 = vadd.f32 %v3524, %v3685
        %v3687 = vpop.f32.mrf.mxu0
        %3688 = vmatprep.mubr.bf16.mxu0 %v3455
        %3689 = vmatmul.mubr.bf16.gmra.mxu0 %v3454
        %v3690 = vpop.f32.mrf.mxu0
        %v3691 = vadd.f32 %v3529, %v3690
        %v3692 = vpop.f32.mrf.mxu0
        %v3693 = vpop.f32.mrf.mxu0
        %v3694 = vadd.f32 %v3534, %v3693
        %v3695 = vpop.f32.mrf.mxu0
        %3696 = vdwg.mxu0
        %vm3697 = vcmask 523264
        %3698 = vst.msk [vmem:[%s296] sm:$0xff] %vm3697, %v3667
        %3699 = vst.msk [vmem:[%s296 + $0x8] sm:$0xff] %vm3697, %v3670
        %3700 = vst.msk [vmem:[%s296 + $0x10] sm:$0xff] %vm3697, %v3675
        %3701 = vst.msk [vmem:[%s296 + $0x18] sm:$0xff] %vm3697, %v3678
        %3702 = vst.msk [vmem:[%s296 + $0x20] sm:$0xff] %vm3697, %v3683
        %3703 = vst.msk [vmem:[%s296 + $0x28] sm:$0xff] %vm3697, %v3686
        %3704 = vst.msk [vmem:[%s296 + $0x30] sm:$0xff] %vm3697, %v3691
        %3705 = vst.msk [vmem:[%s296 + $0x38] sm:$0xff] %vm3697, %v3694
        %s3706 = sand.u32 %s184, 1
        %s3707 = scalar_lea.sflag [#allocation6], %s3706
        %s3708 = sand.u32 %s184, 1
        %s3709 = smul.addr %s3708, 64
        %s3710 = scalar_lea.vmem [#allocation7], %s3709
        // Predicated region
        $region53: #{tpu_custom_call.1} parent=47 // pred_check
          %p3711 = pneg %p194
        $region54: #{tpu_custom_call.1} parent=47 // pred_check_branch
          %3713 = sbr.rel (%p3711) target = $region56
        $region55: #{tpu_custom_call.1} parent=47 // pred_region
          %s3715 = ssub.s32 1024, 1024
          %3716 = vsyncadd %s3707, %s3715
          %s3717 = smul.addr %s24, 8
          %s3718 = smul.addr %s3717, 128
          %s3719 = scalar_lea.hbm %s7, %s3718
          %s3720 = sshll.u32 %s3710, 4
          %s3721 = int_to_ptr.vmem [resolvable:$true] %s3720
          %3726 = dma.vmem_to_hbm [thread:$0]  %s3721, 1024, %s3719, %s3707, 128, 128, 8
        $region56: #{tpu_custom_call.1} parent=47 // pred_fallthru
          _
      $region48: #{tpu_custom_call.1} parent=5 // pred_fallthru
        _
      %p3727 = scmp.le.s32.totalorder 2, %s19
      // Predicated region
      $region57: #{tpu_custom_call.1} parent=5 // pred_check
        %p3728 = pneg %p3727
      $region58: #{tpu_custom_call.1} parent=5 // pred_check_branch
        %3730 = sbr.rel (%p3728) target = $region60
      $region59: #{tpu_custom_call.1} parent=5 // pred_region
        %s3731 = ssub.s32 %s19, 2
        // Predicated region
        $region61: #{tpu_custom_call.1} parent=59 // pred_check
          %p3732 = pneg %p200
        $region62: #{tpu_custom_call.1} parent=59 // pred_check_branch
          %3734 = sbr.rel (%p3732) target = $region64
        $region63: #{tpu_custom_call.1} parent=59 // pred_region
          %s3735 = sand.u32 %s185, 1
          %s3736 = scalar_lea.sflag [#allocation6], %s3735
          %s3737 = sand.u32 %s185, 1
          %s3738 = smul.addr %s3737, 64
          %s3739 = scalar_lea.vmem [#allocation7], %s3738
          %3740 = dma.done %s3736, 1024
        $region64: #{tpu_custom_call.1} parent=59 // pred_fallthru
          _
      $region60: #{tpu_custom_call.1} parent=5 // pred_fallthru
        _
    $region6: #{tpu_custom_call.1} parent=1 // loop_footer
      %s23 = sadd.s32 1, %s19
    $region7: #{tpu_custom_call.1} parent=1 // loop_footer_branch
      %18 = sbr.rel target = $region3
    $region8: #{tpu_custom_call.1} parent=1 // loop_exit
      _
    %3741 = vsyncpa [#allocation5], 1
    %s3742 = scalar_lea.sflag [#allocation5], 1
    %3743 = vsyncpa %s3742, 1
    %3744 = vsyncpa [#allocation6], 1
    %s3745 = scalar_lea.sflag [#allocation6], 1
    %3746 = vsyncpa %s3745, 1

</llo_original>
